<compile_context>
chip_gen: v5e
topology: v5e:2x2
jax: 0.10.0
libtpu: 0.0.40
codegen_flags: <defaults>
</compile_context>

<pallas_src>
import functools

import jax
import jax.numpy as jnp
from jax.experimental import pallas as pl
from jax.experimental.pallas import tpu as pltpu


# ----------------------------------------------------------------------------
# Single fused kernel
# ----------------------------------------------------------------------------

def _paragen_kernel(e1_ref, emb_sim_ref,
                    eb1_ref, ew2_ref, eb2_ref,
                    ewih_ref, ewhh_ref, ebih_ref, ebhh_ref,
                    elw_ref, elb_ref,
                    ew1_ref,
                    gwih_ref, gwhh_ref, gb_ref,
                    glw_ref, glb_ref,
                    out_ref, enc_out_ref, enc_sim_ref,
                    gi_tok, gi_lstm, hs_scr, gi_re,
                    *, S, B):
    N = 2 * B                                   # phrase + sim_phrase batched rows

    # -------- emb_layer tail on gathered emb_w1 rows (both phrases) ----------
    h1 = e1_ref[...] + eb1_ref[...]
    h1 = jnp.where(h1 > 1e-6, h1, 0.0)          # Threshold(1e-6, 0)
    e = jnp.dot(h1, ew2_ref[...], preferred_element_type=jnp.float32) + eb2_ref[...]
    e = jnp.where(e > 1e-6, e, 0.0)             # Threshold(1e-6, 0)

    ewih = ewih_ref[...]
    ewhh = ewhh_ref[...]
    ebih = ebih_ref[...]
    ebhh = ebhh_ref[...]
    He = ewhh.shape[0]

    # Hoisted GRU input projection for every timestep (one MXU matmul).
    gi_tok[...] = jnp.dot(e, ewih, preferred_element_type=jnp.float32) + ebih

    def gru_step_tok(t, h):
        base = pl.multiple_of(t * N, N)
        gi = gi_tok[pl.ds(base, N), :]                          # (N, 3He)
        gh = jnp.dot(h, ewhh, preferred_element_type=jnp.float32) + ebhh
        # PyTorch GRU gate order: r, z, n ; n = tanh(gi_n + r * (Whh h + bhh_n))
        r = jax.nn.sigmoid(gi[:, 0 * He:1 * He] + gh[:, 0 * He:1 * He])
        z = jax.nn.sigmoid(gi[:, 1 * He:2 * He] + gh[:, 1 * He:2 * He])
        n = jnp.tanh(gi[:, 2 * He:3 * He] + r * gh[:, 2 * He:3 * He])
        return (1.0 - z) * n + z * h

    hn = jax.lax.fori_loop(0, S, gru_step_tok,
                           jnp.zeros((N, He), jnp.float32), unroll=True)
    enc_both = (jnp.dot(hn, elw_ref[...], preferred_element_type=jnp.float32)
                + elb_ref[...])                                  # (2B, enc_dim)
    enc_phrase = enc_both[0:B, :]
    enc_sim_ref[...] = enc_both[B:, :]

    # -------- generator LSTM over [enc_phrase ; gen_emb(sim_phrase)[:-1]] ----
    gwih = gwih_ref[...]
    gwhh = gwhh_ref[...]
    gb = gb_ref[...]
    Hg = gwhh.shape[0]

    # Hoisted input projection written directly into gate scratch, two slabs.
    gi_lstm[pl.ds(0, B), :] = (
        jnp.dot(enc_phrase, gwih, preferred_element_type=jnp.float32) + gb)
    gi_lstm[pl.ds(B, (S - 1) * B), :] = (
        jnp.dot(emb_sim_ref[...], gwih, preferred_element_type=jnp.float32) + gb)

    def lstm_step(t, carry):
        h, c = carry
        base = pl.multiple_of(t * B, B)
        g = gi_lstm[pl.ds(base, B), :] + jnp.dot(
            h, gwhh, preferred_element_type=jnp.float32)
        # PyTorch LSTM gate order: i, f, g, o
        i = jax.nn.sigmoid(g[:, 0 * Hg:1 * Hg])
        f = jax.nn.sigmoid(g[:, 1 * Hg:2 * Hg])
        gg = jnp.tanh(g[:, 2 * Hg:3 * Hg])
        o = jax.nn.sigmoid(g[:, 3 * Hg:4 * Hg])
        c = f * c + i * gg
        h = o * jnp.tanh(c)
        hs_scr[pl.ds(base, B), :] = h
        return (h, c)

    h0 = jnp.zeros((B, Hg), jnp.float32)
    jax.lax.fori_loop(0, S, lstm_step, (h0, h0), unroll=True)

    # -------- gen_lin: Linear + LogSoftmax ------------------------------------
    logits = (jnp.dot(hs_scr[...], glw_ref[...],
                      preferred_element_type=jnp.float32) + glb_ref[...])
    m = jnp.max(logits, axis=-1, keepdims=True)
    zexp = jnp.exp(logits - m)
    ssum = jnp.sum(zexp, axis=-1, keepdims=True)
    out_ref[...] = logits - m - jnp.log(ssum)                    # log-softmax

    # -------- enc_out = encode(exp(out))  (exp fused; reuse zexp) -------------
    probs = zexp * (1.0 / ssum)                                  # == exp(log_softmax)
    p1 = (jnp.dot(probs, ew1_ref[...], preferred_element_type=jnp.float32)
          + eb1_ref[...])
    p1 = jnp.where(p1 > 1e-6, p1, 0.0)
    pe = (jnp.dot(p1, ew2_ref[...], preferred_element_type=jnp.float32)
          + eb2_ref[...])
    pe = jnp.where(pe > 1e-6, pe, 0.0)

    gi_re[...] = jnp.dot(pe, ewih, preferred_element_type=jnp.float32) + ebih

    def gru_step_re(t, h):
        base = pl.multiple_of(t * B, B)
        gi = gi_re[pl.ds(base, B), :]
        gh = jnp.dot(h, ewhh, preferred_element_type=jnp.float32) + ebhh
        r = jax.nn.sigmoid(gi[:, 0 * He:1 * He] + gh[:, 0 * He:1 * He])
        z = jax.nn.sigmoid(gi[:, 1 * He:2 * He] + gh[:, 1 * He:2 * He])
        n = jnp.tanh(gi[:, 2 * He:3 * He] + r * gh[:, 2 * He:3 * He])
        return (1.0 - z) * n + z * h

    hn2 = jax.lax.fori_loop(0, S, gru_step_re,
                            jnp.zeros((B, He), jnp.float32), unroll=True)
    enc_out_ref[...] = (jnp.dot(hn2, elw_ref[...],
                                preferred_element_type=jnp.float32)
                        + elb_ref[...])


# ----------------------------------------------------------------------------
# Full forward (train / teacher-forcing path)
# ----------------------------------------------------------------------------

@functools.partial(jax.jit, static_argnames=("vocab_sz",))
def paraphrase_generator_forward(phrase, sim_phrase, params, vocab_sz):
    """phrase, sim_phrase: int32 (S, B).  Returns (out, enc_out, enc_sim_phrase)."""
    S, B = phrase.shape
    V = vocab_sz
    He = params["enc_rnn_whh"].shape[0]
    Hg = params["gen_rnn_whh"].shape[0]
    enc_dim = params["enc_lin_w"].shape[1]

    # one_hot(x) @ emb_w1  ==  row gather of emb_w1 (JAX glue, bias added in-kernel)
    tokens_cat = jnp.concatenate([phrase, sim_phrase], axis=1)            # (S, 2B)
    e1_rows = jnp.take(params["emb_w1"], tokens_cat.reshape(-1), axis=0)  # (S*2B, emb_hid)
    # gen_emb lookup for sim_phrase[:-1]
    emb_sim = jnp.take(params["gen_emb"], sim_phrase[:-1].reshape(-1), axis=0)  # ((S-1)*B, E)
    gen_bias = (params["gen_rnn_bih"] + params["gen_rnn_bhh"]).reshape(1, -1)

    kern = functools.partial(_paragen_kernel, S=S, B=B)
    out2d, enc_out, enc_sim = pl.pallas_call(
        kern,
        out_shape=(jax.ShapeDtypeStruct((S * B, V), jnp.float32),
                   jax.ShapeDtypeStruct((B, enc_dim), jnp.float32),
                   jax.ShapeDtypeStruct((B, enc_dim), jnp.float32)),
        scratch_shapes=[pltpu.VMEM((S * 2 * B, 3 * He), jnp.float32),   # gi_tok
                        pltpu.VMEM((S * B, 4 * Hg), jnp.float32),       # gi_lstm
                        pltpu.VMEM((S * B, Hg), jnp.float32),           # hs
                        pltpu.VMEM((S * B, 3 * He), jnp.float32)],      # gi_re
    )(e1_rows, emb_sim,
      params["emb_b1"].reshape(1, -1), params["emb_w2"], params["emb_b2"].reshape(1, -1),
      params["enc_rnn_wih"], params["enc_rnn_whh"],
      params["enc_rnn_bih"].reshape(1, -1), params["enc_rnn_bhh"].reshape(1, -1),
      params["enc_lin_w"], params["enc_lin_b"].reshape(1, -1),
      params["emb_w1"],
      params["gen_rnn_wih"], params["gen_rnn_whh"], gen_bias,
      params["gen_lin_w"], params["gen_lin_b"].reshape(1, -1))

    out = out2d.reshape(S, B, V)
    return out, enc_out, enc_sim


# ----------------------------------------------------------------------------
# Pure-JAX reference (for correctness check)
# ----------------------------------------------------------------------------

def reference_forward(phrase, sim_phrase, params, vocab_sz):
    S, B = phrase.shape

    def emb_layer(x2d):
        h = x2d @ params["emb_w1"] + params["emb_b1"]
        h = jnp.where(h > 1e-6, h, 0.0)
        e = h @ params["emb_w2"] + params["emb_b2"]
        return jnp.where(e > 1e-6, e, 0.0)

    He = params["enc_rnn_whh"].shape[0]

    def gru(seq):
        def step(h, x):
            gi = x @ params["enc_rnn_wih"] + params["enc_rnn_bih"]
            gh = h @ params["enc_rnn_whh"] + params["enc_rnn_bhh"]
            r = jax.nn.sigmoid(gi[:, :He] + gh[:, :He])
            z = jax.nn.sigmoid(gi[:, He:2 * He] + gh[:, He:2 * He])
            n = jnp.tanh(gi[:, 2 * He:] + r * gh[:, 2 * He:])
            return (1.0 - z) * n + z * h, None
        h0 = jnp.zeros((seq.shape[1], He), jnp.float32)
        hn, _ = jax.lax.scan(step, h0, seq)
        return hn

    def encode(x2d, n):
        e = emb_layer(x2d).reshape(S, n, -1)
        return gru(e) @ params["enc_lin_w"] + params["enc_lin_b"]

    oh_p = jax.nn.one_hot(phrase, vocab_sz, dtype=jnp.float32).reshape(S * B, vocab_sz)
    oh_s = jax.nn.one_hot(sim_phrase, vocab_sz, dtype=jnp.float32).reshape(S * B, vocab_sz)
    enc_phrase = encode(oh_p, B)
    enc_sim = encode(oh_s, B)

    emb_sim = params["gen_emb"][sim_phrase]
    gen_in = jnp.concatenate([enc_phrase[None], emb_sim[:-1]], axis=0)
    Hg = params["gen_rnn_whh"].shape[0]

    def lstm_step(carry, x):
        h, c = carry
        g = (x @ params["gen_rnn_wih"] + params["gen_rnn_bih"]
             + h @ params["gen_rnn_whh"] + params["gen_rnn_bhh"])
        i = jax.nn.sigmoid(g[:, :Hg])
        f = jax.nn.sigmoid(g[:, Hg:2 * Hg])
        gg = jnp.tanh(g[:, 2 * Hg:3 * Hg])
        o = jax.nn.sigmoid(g[:, 3 * Hg:])
        c = f * c + i * gg
        h = o * jnp.tanh(c)
        return (h, c), h

    h0 = jnp.zeros((B, Hg), jnp.float32)
    _, hs = jax.lax.scan(lstm_step, (h0, h0), gen_in)
    logits = hs @ params["gen_lin_w"] + params["gen_lin_b"]
    out = jax.nn.log_softmax(logits, axis=-1)
    enc_out = encode(jnp.exp(out).reshape(S * B, vocab_sz), B)
    return out, enc_out, enc_sim


# ----------------------------------------------------------------------------
# Deterministic parameter construction
# ----------------------------------------------------------------------------

def make_params(key, V, emb_hid, E, Henc, enc_dim, Hgen):
    ks = list(jax.random.split(key, 16))

    def u(k, shape, fan_in):
        s = 1.0 / jnp.sqrt(float(fan_in))
        return jax.random.uniform(k, shape, jnp.float32, -s, s)

    return {
        # emb_layer (weights stored already transposed: (in, out))
        "emb_w1": u(ks[0], (V, emb_hid), V),
        "emb_b1": u(ks[1], (emb_hid,), V),
        "emb_w2": u(ks[2], (emb_hid, E), emb_hid),
        "emb_b2": u(ks[3], (E,), emb_hid),
        # enc_rnn GRU (gate order r, z, n), transposed to (in, 3H)
        "enc_rnn_wih": u(ks[4], (E, 3 * Henc), Henc),
        "enc_rnn_whh": u(ks[5], (Henc, 3 * Henc), Henc),
        "enc_rnn_bih": u(ks[6], (3 * Henc,), Henc),
        "enc_rnn_bhh": u(ks[7], (3 * Henc,), Henc),
        # enc_lin
        "enc_lin_w": u(ks[8], (Henc, enc_dim), Henc),
        "enc_lin_b": u(ks[9], (enc_dim,), Henc),
        # gen_emb
        "gen_emb": jax.random.normal(ks[10], (V, E), jnp.float32),
        # gen_rnn LSTM (gate order i, f, g, o), transposed to (in, 4H)
        "gen_rnn_wih": u(ks[11], (enc_dim, 4 * Hgen), Hgen),
        "gen_rnn_whh": u(ks[12], (Hgen, 4 * Hgen), Hgen),
        "gen_rnn_bih": u(ks[13], (4 * Hgen,), Hgen),
        "gen_rnn_bhh": u(ks[14], (4 * Hgen,), Hgen),
        # gen_lin
        "gen_lin_w": u(ks[15], (Hgen, V), Hgen),
        "gen_lin_b": jnp.zeros((V,), jnp.float32),
    }


# ----------------------------------------------------------------------------
# Main
# ----------------------------------------------------------------------------

if __name__ == "__main__":
    # op config (emb_dim must equal enc_dim — the PyTorch module concatenates
    # enc_phrase with gen_emb outputs along the sequence axis).
    S = 8          # max_seq_len
    B = 8          # batch size (sublane-aligned rows)
    V = 128        # vocab_sz   (lane-dense log-softmax output)
    EMB_HID = 64   # emb_hid_dim
    E = 32         # emb_dim
    HENC = 64      # enc_rnn_dim
    ENC_DIM = 32   # enc_dim (== emb_dim)
    HGEN = 64      # gen_rnn_dim

    key = jax.random.PRNGKey(0)
    k_par, k_phr, k_sim = jax.random.split(key, 3)

    params = make_params(k_par, V, EMB_HID, E, HENC, ENC_DIM, HGEN)
    phrase = jax.random.randint(k_phr, (S, B), 0, V, dtype=jnp.int32)
    sim_phrase = jax.random.randint(k_sim, (S, B), 0, V, dtype=jnp.int32)

    out, enc_out, enc_sim_phrase = paraphrase_generator_forward(
        phrase, sim_phrase, params, vocab_sz=V)
    jax.block_until_ready((out, enc_out, enc_sim_phrase))

    assert out.shape == (S, B, V)
    assert enc_out.shape == (B, ENC_DIM)
    assert enc_sim_phrase.shape == (B, ENC_DIM)
    # log-softmax rows should sum to ~1 in prob space
    assert bool(jnp.allclose(jnp.sum(jnp.exp(out), axis=-1), 1.0, atol=1e-4))

    # pure-JAX reference check
    with jax.default_matmul_precision("highest"):
        r_out, r_enc_out, r_enc_sim = reference_forward(
            phrase, sim_phrase, params, V)
    assert bool(jnp.allclose(out, r_out, atol=2e-3, rtol=2e-3))
    assert bool(jnp.allclose(enc_out, r_enc_out, atol=2e-3, rtol=2e-3))
    assert bool(jnp.allclose(enc_sim_phrase, r_enc_sim, atol=2e-3, rtol=2e-3))

    print("KERNEL_OK")
</pallas_src>

<mosaic_0001>
module attributes {stable_mosaic.version = 11 : i64} {
  func.func @_paragen_kernel(%arg0: memref<128x64xf32, #tpu.memory_space<vmem>>, %arg1: memref<56x32xf32, #tpu.memory_space<vmem>>, %arg2: memref<1x64xf32, #tpu.memory_space<vmem>>, %arg3: memref<64x32xf32, #tpu.memory_space<vmem>>, %arg4: memref<1x32xf32, #tpu.memory_space<vmem>>, %arg5: memref<32x192xf32, #tpu.memory_space<vmem>>, %arg6: memref<64x192xf32, #tpu.memory_space<vmem>>, %arg7: memref<1x192xf32, #tpu.memory_space<vmem>>, %arg8: memref<1x192xf32, #tpu.memory_space<vmem>>, %arg9: memref<64x32xf32, #tpu.memory_space<vmem>>, %arg10: memref<1x32xf32, #tpu.memory_space<vmem>>, %arg11: memref<128x64xf32, #tpu.memory_space<vmem>>, %arg12: memref<32x256xf32, #tpu.memory_space<vmem>>, %arg13: memref<64x256xf32, #tpu.memory_space<vmem>>, %arg14: memref<1x256xf32, #tpu.memory_space<vmem>>, %arg15: memref<64x128xf32, #tpu.memory_space<vmem>>, %arg16: memref<1x128xf32, #tpu.memory_space<vmem>>, %arg17: memref<64x128xf32, #tpu.memory_space<vmem>>, %arg18: memref<8x32xf32, #tpu.memory_space<vmem>>, %arg19: memref<8x32xf32, #tpu.memory_space<vmem>>, %arg20: memref<128x192xf32, #tpu.memory_space<vmem>>, %arg21: memref<64x256xf32, #tpu.memory_space<vmem>>, %arg22: memref<64x64xf32, #tpu.memory_space<vmem>>, %arg23: memref<64x192xf32, #tpu.memory_space<vmem>>) attributes {dimension_semantics = [], scalar_prefetch = 0 : i64, scratch_operands = 4 : i64, tpu.core_type = #tpu.core_type<tc>} {
    %c0 = arith.constant 0 : index
    %c0_0 = arith.constant 0 : index
    %0 = vector.load %arg0[%c0, %c0_0] : memref<128x64xf32, #tpu.memory_space<vmem>>, vector<128x64xf32>
    %c0_1 = arith.constant 0 : index
    %c0_2 = arith.constant 0 : index
    %1 = vector.load %arg2[%c0_1, %c0_2] : memref<1x64xf32, #tpu.memory_space<vmem>>, vector<1x64xf32>
    %2 = vector.broadcast %1 : vector<1x64xf32> to vector<128x64xf32>
    %3 = arith.addf %0, %2 : vector<128x64xf32>
    %cst = arith.constant 9.99999997E-7 : f32
    %4 = vector.broadcast %cst : f32 to vector<128x64xf32>
    %5 = arith.cmpf ogt, %3, %4 : vector<128x64xf32>
    %cst_3 = arith.constant 0.000000e+00 : f32
    %6 = vector.broadcast %cst_3 : f32 to vector<128x64xf32>
    %7 = arith.select %5, %3, %6 : vector<128x64xi1>, vector<128x64xf32>
    %c0_4 = arith.constant 0 : index
    %c0_5 = arith.constant 0 : index
    %8 = vector.load %arg3[%c0_4, %c0_5] : memref<64x32xf32, #tpu.memory_space<vmem>>, vector<64x32xf32>
    %cst_6 = arith.constant dense<0.000000e+00> : vector<128x32xf32>
    %9 = tpu.matmul %7, %8, %cst_6 {dimension_numbers = #tpu.dot_dimension_numbers<[1], [0], [0], [1], [0, 0, 1, 1], [], []>} : vector<128x64xf32>, vector<64x32xf32>, vector<128x32xf32> -> vector<128x32xf32>
    %c0_7 = arith.constant 0 : index
    %c0_8 = arith.constant 0 : index
    %10 = vector.load %arg4[%c0_7, %c0_8] : memref<1x32xf32, #tpu.memory_space<vmem>>, vector<1x32xf32>
    %11 = vector.broadcast %10 : vector<1x32xf32> to vector<128x32xf32>
    %12 = arith.addf %9, %11 : vector<128x32xf32>
    %cst_9 = arith.constant 9.99999997E-7 : f32
    %13 = vector.broadcast %cst_9 : f32 to vector<128x32xf32>
    %14 = arith.cmpf ogt, %12, %13 : vector<128x32xf32>
    %cst_10 = arith.constant 0.000000e+00 : f32
    %15 = vector.broadcast %cst_10 : f32 to vector<128x32xf32>
    %16 = arith.select %14, %12, %15 : vector<128x32xi1>, vector<128x32xf32>
    %c0_11 = arith.constant 0 : index
    %c0_12 = arith.constant 0 : index
    %17 = vector.load %arg5[%c0_11, %c0_12] : memref<32x192xf32, #tpu.memory_space<vmem>>, vector<32x192xf32>
    %c0_13 = arith.constant 0 : index
    %c0_14 = arith.constant 0 : index
    %18 = vector.load %arg6[%c0_13, %c0_14] : memref<64x192xf32, #tpu.memory_space<vmem>>, vector<64x192xf32>
    %c0_15 = arith.constant 0 : index
    %c0_16 = arith.constant 0 : index
    %19 = vector.load %arg7[%c0_15, %c0_16] : memref<1x192xf32, #tpu.memory_space<vmem>>, vector<1x192xf32>
    %c0_17 = arith.constant 0 : index
    %c0_18 = arith.constant 0 : index
    %20 = vector.load %arg8[%c0_17, %c0_18] : memref<1x192xf32, #tpu.memory_space<vmem>>, vector<1x192xf32>
    %cst_19 = arith.constant dense<0.000000e+00> : vector<128x192xf32>
    %21 = tpu.matmul %16, %17, %cst_19 {dimension_numbers = #tpu.dot_dimension_numbers<[1], [0], [0], [1], [0, 0, 1, 1], [], []>} : vector<128x32xf32>, vector<32x192xf32>, vector<128x192xf32> -> vector<128x192xf32>
    %22 = vector.broadcast %19 : vector<1x192xf32> to vector<128x192xf32>
    %23 = arith.addf %21, %22 : vector<128x192xf32>
    %c0_20 = arith.constant 0 : index
    %c0_21 = arith.constant 0 : index
    %24 = vector.load %arg20[%c0_20, %c0_21] : memref<128x192xf32, #tpu.memory_space<vmem>>, vector<128x192xf32>
    tpu.vector_store %arg20[%c0_20, %c0_21], %23 {strides = array<i32>} : memref<128x192xf32, #tpu.memory_space<vmem>>, vector<128x192xf32>,
    %cst_22 = arith.constant 0.000000e+00 : f32
    %25 = vector.broadcast %cst_22 : f32 to vector<16x64xf32>
    %c0_i32 = arith.constant 0 : i32
    %c16_i32 = arith.constant 16 : i32
    %26 = arith.muli %c0_i32, %c16_i32 : i32
    %27 = tpu.assume_multiple %26, 16 : i32
    %28 = arith.index_cast %27 : i32 to index
    %c0_23 = arith.constant 0 : index
    %29 = vector.load %arg20[%28, %c0_23] : memref<128x192xf32, #tpu.memory_space<vmem>>, vector<16x192xf32>
    %cst_24 = arith.constant dense<0.000000e+00> : vector<16x192xf32>
    %30 = tpu.matmul %25, %18, %cst_24 {dimension_numbers = #tpu.dot_dimension_numbers<[1], [0], [0], [1], [0, 0, 1, 1], [], []>} : vector<16x64xf32>, vector<64x192xf32>, vector<16x192xf32> -> vector<16x192xf32>
    %31 = vector.broadcast %20 : vector<1x192xf32> to vector<16x192xf32>
    %32 = arith.addf %30, %31 : vector<16x192xf32>
    %33 = vector.extract_strided_slice %29 {offsets = [0, 0], sizes = [16, 64], strides = [1, 1]} : vector<16x192xf32> to vector<16x64xf32>
    %34 = vector.extract_strided_slice %32 {offsets = [0, 0], sizes = [16, 64], strides = [1, 1]} : vector<16x192xf32> to vector<16x64xf32>
    %35 = arith.addf %33, %34 : vector<16x64xf32>
    %36 = arith.negf %35 : vector<16x64xf32>
    %37 = math.exp %36 : vector<16x64xf32>
    %cst_25 = arith.constant 1.000000e+00 : f32
    %38 = vector.broadcast %cst_25 : f32 to vector<16x64xf32>
    %39 = arith.addf %38, %37 : vector<16x64xf32>
    %40 = arith.divf %38, %39 : vector<16x64xf32>
    %41 = vector.extract_strided_slice %29 {offsets = [0, 64], sizes = [16, 64], strides = [1, 1]} : vector<16x192xf32> to vector<16x64xf32>
    %42 = vector.extract_strided_slice %32 {offsets = [0, 64], sizes = [16, 64], strides = [1, 1]} : vector<16x192xf32> to vector<16x64xf32>
    %43 = arith.addf %41, %42 : vector<16x64xf32>
    %44 = arith.negf %43 : vector<16x64xf32>
    %45 = math.exp %44 : vector<16x64xf32>
    %cst_26 = arith.constant 1.000000e+00 : f32
    %46 = vector.broadcast %cst_26 : f32 to vector<16x64xf32>
    %47 = arith.addf %46, %45 : vector<16x64xf32>
    %48 = arith.divf %46, %47 : vector<16x64xf32>
    %49 = vector.extract_strided_slice %29 {offsets = [0, 128], sizes = [16, 64], strides = [1, 1]} : vector<16x192xf32> to vector<16x64xf32>
    %50 = vector.extract_strided_slice %32 {offsets = [0, 128], sizes = [16, 64], strides = [1, 1]} : vector<16x192xf32> to vector<16x64xf32>
    %51 = arith.mulf %40, %50 : vector<16x64xf32>
    %52 = arith.addf %49, %51 : vector<16x64xf32>
    %53 = math.tanh %52 : vector<16x64xf32>
    %cst_27 = arith.constant 1.000000e+00 : f32
    %54 = vector.broadcast %cst_27 : f32 to vector<16x64xf32>
    %55 = arith.subf %54, %48 : vector<16x64xf32>
    %56 = arith.mulf %55, %53 : vector<16x64xf32>
    %57 = arith.mulf %48, %25 : vector<16x64xf32>
    %58 = arith.addf %56, %57 : vector<16x64xf32>
    %c1_i32 = arith.constant 1 : i32
    %c16_i32_28 = arith.constant 16 : i32
    %59 = arith.muli %c1_i32, %c16_i32_28 : i32
    %60 = tpu.assume_multiple %59, 16 : i32
    %61 = arith.index_cast %60 : i32 to index
    %c0_29 = arith.constant 0 : index
    %62 = vector.load %arg20[%61, %c0_29] : memref<128x192xf32, #tpu.memory_space<vmem>>, vector<16x192xf32>
    %cst_30 = arith.constant dense<0.000000e+00> : vector<16x192xf32>
    %63 = tpu.matmul %58, %18, %cst_30 {dimension_numbers = #tpu.dot_dimension_numbers<[1], [0], [0], [1], [0, 0, 1, 1], [], []>} : vector<16x64xf32>, vector<64x192xf32>, vector<16x192xf32> -> vector<16x192xf32>
    %64 = vector.broadcast %20 : vector<1x192xf32> to vector<16x192xf32>
    %65 = arith.addf %63, %64 : vector<16x192xf32>
    %66 = vector.extract_strided_slice %62 {offsets = [0, 0], sizes = [16, 64], strides = [1, 1]} : vector<16x192xf32> to vector<16x64xf32>
    %67 = vector.extract_strided_slice %65 {offsets = [0, 0], sizes = [16, 64], strides = [1, 1]} : vector<16x192xf32> to vector<16x64xf32>
    %68 = arith.addf %66, %67 : vector<16x64xf32>
    %69 = arith.negf %68 : vector<16x64xf32>
    %70 = math.exp %69 : vector<16x64xf32>
    %cst_31 = arith.constant 1.000000e+00 : f32
    %71 = vector.broadcast %cst_31 : f32 to vector<16x64xf32>
    %72 = arith.addf %71, %70 : vector<16x64xf32>
    %73 = arith.divf %71, %72 : vector<16x64xf32>
    %74 = vector.extract_strided_slice %62 {offsets = [0, 64], sizes = [16, 64], strides = [1, 1]} : vector<16x192xf32> to vector<16x64xf32>
    %75 = vector.extract_strided_slice %65 {offsets = [0, 64], sizes = [16, 64], strides = [1, 1]} : vector<16x192xf32> to vector<16x64xf32>
    %76 = arith.addf %74, %75 : vector<16x64xf32>
    %77 = arith.negf %76 : vector<16x64xf32>
    %78 = math.exp %77 : vector<16x64xf32>
    %cst_32 = arith.constant 1.000000e+00 : f32
    %79 = vector.broadcast %cst_32 : f32 to vector<16x64xf32>
    %80 = arith.addf %79, %78 : vector<16x64xf32>
    %81 = arith.divf %79, %80 : vector<16x64xf32>
    %82 = vector.extract_strided_slice %62 {offsets = [0, 128], sizes = [16, 64], strides = [1, 1]} : vector<16x192xf32> to vector<16x64xf32>
    %83 = vector.extract_strided_slice %65 {offsets = [0, 128], sizes = [16, 64], strides = [1, 1]} : vector<16x192xf32> to vector<16x64xf32>
    %84 = arith.mulf %73, %83 : vector<16x64xf32>
    %85 = arith.addf %82, %84 : vector<16x64xf32>
    %86 = math.tanh %85 : vector<16x64xf32>
    %cst_33 = arith.constant 1.000000e+00 : f32
    %87 = vector.broadcast %cst_33 : f32 to vector<16x64xf32>
    %88 = arith.subf %87, %81 : vector<16x64xf32>
    %89 = arith.mulf %88, %86 : vector<16x64xf32>
    %90 = arith.mulf %81, %58 : vector<16x64xf32>
    %91 = arith.addf %89, %90 : vector<16x64xf32>
    %c2_i32 = arith.constant 2 : i32
    %c16_i32_34 = arith.constant 16 : i32
    %92 = arith.muli %c2_i32, %c16_i32_34 : i32
    %93 = tpu.assume_multiple %92, 16 : i32
    %94 = arith.index_cast %93 : i32 to index
    %c0_35 = arith.constant 0 : index
    %95 = vector.load %arg20[%94, %c0_35] : memref<128x192xf32, #tpu.memory_space<vmem>>, vector<16x192xf32>
    %cst_36 = arith.constant dense<0.000000e+00> : vector<16x192xf32>
    %96 = tpu.matmul %91, %18, %cst_36 {dimension_numbers = #tpu.dot_dimension_numbers<[1], [0], [0], [1], [0, 0, 1, 1], [], []>} : vector<16x64xf32>, vector<64x192xf32>, vector<16x192xf32> -> vector<16x192xf32>
    %97 = vector.broadcast %20 : vector<1x192xf32> to vector<16x192xf32>
    %98 = arith.addf %96, %97 : vector<16x192xf32>
    %99 = vector.extract_strided_slice %95 {offsets = [0, 0], sizes = [16, 64], strides = [1, 1]} : vector<16x192xf32> to vector<16x64xf32>
    %100 = vector.extract_strided_slice %98 {offsets = [0, 0], sizes = [16, 64], strides = [1, 1]} : vector<16x192xf32> to vector<16x64xf32>
    %101 = arith.addf %99, %100 : vector<16x64xf32>
    %102 = arith.negf %101 : vector<16x64xf32>
    %103 = math.exp %102 : vector<16x64xf32>
    %cst_37 = arith.constant 1.000000e+00 : f32
    %104 = vector.broadcast %cst_37 : f32 to vector<16x64xf32>
    %105 = arith.addf %104, %103 : vector<16x64xf32>
    %106 = arith.divf %104, %105 : vector<16x64xf32>
    %107 = vector.extract_strided_slice %95 {offsets = [0, 64], sizes = [16, 64], strides = [1, 1]} : vector<16x192xf32> to vector<16x64xf32>
    %108 = vector.extract_strided_slice %98 {offsets = [0, 64], sizes = [16, 64], strides = [1, 1]} : vector<16x192xf32> to vector<16x64xf32>
    %109 = arith.addf %107, %108 : vector<16x64xf32>
    %110 = arith.negf %109 : vector<16x64xf32>
    %111 = math.exp %110 : vector<16x64xf32>
    %cst_38 = arith.constant 1.000000e+00 : f32
    %112 = vector.broadcast %cst_38 : f32 to vector<16x64xf32>
    %113 = arith.addf %112, %111 : vector<16x64xf32>
    %114 = arith.divf %112, %113 : vector<16x64xf32>
    %115 = vector.extract_strided_slice %95 {offsets = [0, 128], sizes = [16, 64], strides = [1, 1]} : vector<16x192xf32> to vector<16x64xf32>
    %116 = vector.extract_strided_slice %98 {offsets = [0, 128], sizes = [16, 64], strides = [1, 1]} : vector<16x192xf32> to vector<16x64xf32>
    %117 = arith.mulf %106, %116 : vector<16x64xf32>
    %118 = arith.addf %115, %117 : vector<16x64xf32>
    %119 = math.tanh %118 : vector<16x64xf32>
    %cst_39 = arith.constant 1.000000e+00 : f32
    %120 = vector.broadcast %cst_39 : f32 to vector<16x64xf32>
    %121 = arith.subf %120, %114 : vector<16x64xf32>
    %122 = arith.mulf %121, %119 : vector<16x64xf32>
    %123 = arith.mulf %114, %91 : vector<16x64xf32>
    %124 = arith.addf %122, %123 : vector<16x64xf32>
    %c3_i32 = arith.constant 3 : i32
    %c16_i32_40 = arith.constant 16 : i32
    %125 = arith.muli %c3_i32, %c16_i32_40 : i32
    %126 = tpu.assume_multiple %125, 16 : i32
    %127 = arith.index_cast %126 : i32 to index
    %c0_41 = arith.constant 0 : index
    %128 = vector.load %arg20[%127, %c0_41] : memref<128x192xf32, #tpu.memory_space<vmem>>, vector<16x192xf32>
    %cst_42 = arith.constant dense<0.000000e+00> : vector<16x192xf32>
    %129 = tpu.matmul %124, %18, %cst_42 {dimension_numbers = #tpu.dot_dimension_numbers<[1], [0], [0], [1], [0, 0, 1, 1], [], []>} : vector<16x64xf32>, vector<64x192xf32>, vector<16x192xf32> -> vector<16x192xf32>
    %130 = vector.broadcast %20 : vector<1x192xf32> to vector<16x192xf32>
    %131 = arith.addf %129, %130 : vector<16x192xf32>
    %132 = vector.extract_strided_slice %128 {offsets = [0, 0], sizes = [16, 64], strides = [1, 1]} : vector<16x192xf32> to vector<16x64xf32>
    %133 = vector.extract_strided_slice %131 {offsets = [0, 0], sizes = [16, 64], strides = [1, 1]} : vector<16x192xf32> to vector<16x64xf32>
    %134 = arith.addf %132, %133 : vector<16x64xf32>
    %135 = arith.negf %134 : vector<16x64xf32>
    %136 = math.exp %135 : vector<16x64xf32>
    %cst_43 = arith.constant 1.000000e+00 : f32
    %137 = vector.broadcast %cst_43 : f32 to vector<16x64xf32>
    %138 = arith.addf %137, %136 : vector<16x64xf32>
    %139 = arith.divf %137, %138 : vector<16x64xf32>
    %140 = vector.extract_strided_slice %128 {offsets = [0, 64], sizes = [16, 64], strides = [1, 1]} : vector<16x192xf32> to vector<16x64xf32>
    %141 = vector.extract_strided_slice %131 {offsets = [0, 64], sizes = [16, 64], strides = [1, 1]} : vector<16x192xf32> to vector<16x64xf32>
    %142 = arith.addf %140, %141 : vector<16x64xf32>
    %143 = arith.negf %142 : vector<16x64xf32>
    %144 = math.exp %143 : vector<16x64xf32>
    %cst_44 = arith.constant 1.000000e+00 : f32
    %145 = vector.broadcast %cst_44 : f32 to vector<16x64xf32>
    %146 = arith.addf %145, %144 : vector<16x64xf32>
    %147 = arith.divf %145, %146 : vector<16x64xf32>
    %148 = vector.extract_strided_slice %128 {offsets = [0, 128], sizes = [16, 64], strides = [1, 1]} : vector<16x192xf32> to vector<16x64xf32>
    %149 = vector.extract_strided_slice %131 {offsets = [0, 128], sizes = [16, 64], strides = [1, 1]} : vector<16x192xf32> to vector<16x64xf32>
    %150 = arith.mulf %139, %149 : vector<16x64xf32>
    %151 = arith.addf %148, %150 : vector<16x64xf32>
    %152 = math.tanh %151 : vector<16x64xf32>
    %cst_45 = arith.constant 1.000000e+00 : f32
    %153 = vector.broadcast %cst_45 : f32 to vector<16x64xf32>
    %154 = arith.subf %153, %147 : vector<16x64xf32>
    %155 = arith.mulf %154, %152 : vector<16x64xf32>
    %156 = arith.mulf %147, %124 : vector<16x64xf32>
    %157 = arith.addf %155, %156 : vector<16x64xf32>
    %c4_i32 = arith.constant 4 : i32
    %c16_i32_46 = arith.constant 16 : i32
    %158 = arith.muli %c4_i32, %c16_i32_46 : i32
    %159 = tpu.assume_multiple %158, 16 : i32
    %160 = arith.index_cast %159 : i32 to index
    %c0_47 = arith.constant 0 : index
    %161 = vector.load %arg20[%160, %c0_47] : memref<128x192xf32, #tpu.memory_space<vmem>>, vector<16x192xf32>
    %cst_48 = arith.constant dense<0.000000e+00> : vector<16x192xf32>
    %162 = tpu.matmul %157, %18, %cst_48 {dimension_numbers = #tpu.dot_dimension_numbers<[1], [0], [0], [1], [0, 0, 1, 1], [], []>} : vector<16x64xf32>, vector<64x192xf32>, vector<16x192xf32> -> vector<16x192xf32>
    %163 = vector.broadcast %20 : vector<1x192xf32> to vector<16x192xf32>
    %164 = arith.addf %162, %163 : vector<16x192xf32>
    %165 = vector.extract_strided_slice %161 {offsets = [0, 0], sizes = [16, 64], strides = [1, 1]} : vector<16x192xf32> to vector<16x64xf32>
    %166 = vector.extract_strided_slice %164 {offsets = [0, 0], sizes = [16, 64], strides = [1, 1]} : vector<16x192xf32> to vector<16x64xf32>
    %167 = arith.addf %165, %166 : vector<16x64xf32>
    %168 = arith.negf %167 : vector<16x64xf32>
    %169 = math.exp %168 : vector<16x64xf32>
    %cst_49 = arith.constant 1.000000e+00 : f32
    %170 = vector.broadcast %cst_49 : f32 to vector<16x64xf32>
    %171 = arith.addf %170, %169 : vector<16x64xf32>
    %172 = arith.divf %170, %171 : vector<16x64xf32>
    %173 = vector.extract_strided_slice %161 {offsets = [0, 64], sizes = [16, 64], strides = [1, 1]} : vector<16x192xf32> to vector<16x64xf32>
    %174 = vector.extract_strided_slice %164 {offsets = [0, 64], sizes = [16, 64], strides = [1, 1]} : vector<16x192xf32> to vector<16x64xf32>
    %175 = arith.addf %173, %174 : vector<16x64xf32>
    %176 = arith.negf %175 : vector<16x64xf32>
    %177 = math.exp %176 : vector<16x64xf32>
    %cst_50 = arith.constant 1.000000e+00 : f32
    %178 = vector.broadcast %cst_50 : f32 to vector<16x64xf32>
    %179 = arith.addf %178, %177 : vector<16x64xf32>
    %180 = arith.divf %178, %179 : vector<16x64xf32>
    %181 = vector.extract_strided_slice %161 {offsets = [0, 128], sizes = [16, 64], strides = [1, 1]} : vector<16x192xf32> to vector<16x64xf32>
    %182 = vector.extract_strided_slice %164 {offsets = [0, 128], sizes = [16, 64], strides = [1, 1]} : vector<16x192xf32> to vector<16x64xf32>
    %183 = arith.mulf %172, %182 : vector<16x64xf32>
    %184 = arith.addf %181, %183 : vector<16x64xf32>
    %185 = math.tanh %184 : vector<16x64xf32>
    %cst_51 = arith.constant 1.000000e+00 : f32
    %186 = vector.broadcast %cst_51 : f32 to vector<16x64xf32>
    %187 = arith.subf %186, %180 : vector<16x64xf32>
    %188 = arith.mulf %187, %185 : vector<16x64xf32>
    %189 = arith.mulf %180, %157 : vector<16x64xf32>
    %190 = arith.addf %188, %189 : vector<16x64xf32>
    %c5_i32 = arith.constant 5 : i32
    %c16_i32_52 = arith.constant 16 : i32
    %191 = arith.muli %c5_i32, %c16_i32_52 : i32
    %192 = tpu.assume_multiple %191, 16 : i32
    %193 = arith.index_cast %192 : i32 to index
    %c0_53 = arith.constant 0 : index
    %194 = vector.load %arg20[%193, %c0_53] : memref<128x192xf32, #tpu.memory_space<vmem>>, vector<16x192xf32>
    %cst_54 = arith.constant dense<0.000000e+00> : vector<16x192xf32>
    %195 = tpu.matmul %190, %18, %cst_54 {dimension_numbers = #tpu.dot_dimension_numbers<[1], [0], [0], [1], [0, 0, 1, 1], [], []>} : vector<16x64xf32>, vector<64x192xf32>, vector<16x192xf32> -> vector<16x192xf32>
    %196 = vector.broadcast %20 : vector<1x192xf32> to vector<16x192xf32>
    %197 = arith.addf %195, %196 : vector<16x192xf32>
    %198 = vector.extract_strided_slice %194 {offsets = [0, 0], sizes = [16, 64], strides = [1, 1]} : vector<16x192xf32> to vector<16x64xf32>
    %199 = vector.extract_strided_slice %197 {offsets = [0, 0], sizes = [16, 64], strides = [1, 1]} : vector<16x192xf32> to vector<16x64xf32>
    %200 = arith.addf %198, %199 : vector<16x64xf32>
    %201 = arith.negf %200 : vector<16x64xf32>
    %202 = math.exp %201 : vector<16x64xf32>
    %cst_55 = arith.constant 1.000000e+00 : f32
    %203 = vector.broadcast %cst_55 : f32 to vector<16x64xf32>
    %204 = arith.addf %203, %202 : vector<16x64xf32>
    %205 = arith.divf %203, %204 : vector<16x64xf32>
    %206 = vector.extract_strided_slice %194 {offsets = [0, 64], sizes = [16, 64], strides = [1, 1]} : vector<16x192xf32> to vector<16x64xf32>
    %207 = vector.extract_strided_slice %197 {offsets = [0, 64], sizes = [16, 64], strides = [1, 1]} : vector<16x192xf32> to vector<16x64xf32>
    %208 = arith.addf %206, %207 : vector<16x64xf32>
    %209 = arith.negf %208 : vector<16x64xf32>
    %210 = math.exp %209 : vector<16x64xf32>
    %cst_56 = arith.constant 1.000000e+00 : f32
    %211 = vector.broadcast %cst_56 : f32 to vector<16x64xf32>
    %212 = arith.addf %211, %210 : vector<16x64xf32>
    %213 = arith.divf %211, %212 : vector<16x64xf32>
    %214 = vector.extract_strided_slice %194 {offsets = [0, 128], sizes = [16, 64], strides = [1, 1]} : vector<16x192xf32> to vector<16x64xf32>
    %215 = vector.extract_strided_slice %197 {offsets = [0, 128], sizes = [16, 64], strides = [1, 1]} : vector<16x192xf32> to vector<16x64xf32>
    %216 = arith.mulf %205, %215 : vector<16x64xf32>
    %217 = arith.addf %214, %216 : vector<16x64xf32>
    %218 = math.tanh %217 : vector<16x64xf32>
    %cst_57 = arith.constant 1.000000e+00 : f32
    %219 = vector.broadcast %cst_57 : f32 to vector<16x64xf32>
    %220 = arith.subf %219, %213 : vector<16x64xf32>
    %221 = arith.mulf %220, %218 : vector<16x64xf32>
    %222 = arith.mulf %213, %190 : vector<16x64xf32>
    %223 = arith.addf %221, %222 : vector<16x64xf32>
    %c6_i32 = arith.constant 6 : i32
    %c16_i32_58 = arith.constant 16 : i32
    %224 = arith.muli %c6_i32, %c16_i32_58 : i32
    %225 = tpu.assume_multiple %224, 16 : i32
    %226 = arith.index_cast %225 : i32 to index
    %c0_59 = arith.constant 0 : index
    %227 = vector.load %arg20[%226, %c0_59] : memref<128x192xf32, #tpu.memory_space<vmem>>, vector<16x192xf32>
    %cst_60 = arith.constant dense<0.000000e+00> : vector<16x192xf32>
    %228 = tpu.matmul %223, %18, %cst_60 {dimension_numbers = #tpu.dot_dimension_numbers<[1], [0], [0], [1], [0, 0, 1, 1], [], []>} : vector<16x64xf32>, vector<64x192xf32>, vector<16x192xf32> -> vector<16x192xf32>
    %229 = vector.broadcast %20 : vector<1x192xf32> to vector<16x192xf32>
    %230 = arith.addf %228, %229 : vector<16x192xf32>
    %231 = vector.extract_strided_slice %227 {offsets = [0, 0], sizes = [16, 64], strides = [1, 1]} : vector<16x192xf32> to vector<16x64xf32>
    %232 = vector.extract_strided_slice %230 {offsets = [0, 0], sizes = [16, 64], strides = [1, 1]} : vector<16x192xf32> to vector<16x64xf32>
    %233 = arith.addf %231, %232 : vector<16x64xf32>
    %234 = arith.negf %233 : vector<16x64xf32>
    %235 = math.exp %234 : vector<16x64xf32>
    %cst_61 = arith.constant 1.000000e+00 : f32
    %236 = vector.broadcast %cst_61 : f32 to vector<16x64xf32>
    %237 = arith.addf %236, %235 : vector<16x64xf32>
    %238 = arith.divf %236, %237 : vector<16x64xf32>
    %239 = vector.extract_strided_slice %227 {offsets = [0, 64], sizes = [16, 64], strides = [1, 1]} : vector<16x192xf32> to vector<16x64xf32>
    %240 = vector.extract_strided_slice %230 {offsets = [0, 64], sizes = [16, 64], strides = [1, 1]} : vector<16x192xf32> to vector<16x64xf32>
    %241 = arith.addf %239, %240 : vector<16x64xf32>
    %242 = arith.negf %241 : vector<16x64xf32>
    %243 = math.exp %242 : vector<16x64xf32>
    %cst_62 = arith.constant 1.000000e+00 : f32
    %244 = vector.broadcast %cst_62 : f32 to vector<16x64xf32>
    %245 = arith.addf %244, %243 : vector<16x64xf32>
    %246 = arith.divf %244, %245 : vector<16x64xf32>
    %247 = vector.extract_strided_slice %227 {offsets = [0, 128], sizes = [16, 64], strides = [1, 1]} : vector<16x192xf32> to vector<16x64xf32>
    %248 = vector.extract_strided_slice %230 {offsets = [0, 128], sizes = [16, 64], strides = [1, 1]} : vector<16x192xf32> to vector<16x64xf32>
    %249 = arith.mulf %238, %248 : vector<16x64xf32>
    %250 = arith.addf %247, %249 : vector<16x64xf32>
    %251 = math.tanh %250 : vector<16x64xf32>
    %cst_63 = arith.constant 1.000000e+00 : f32
    %252 = vector.broadcast %cst_63 : f32 to vector<16x64xf32>
    %253 = arith.subf %252, %246 : vector<16x64xf32>
    %254 = arith.mulf %253, %251 : vector<16x64xf32>
    %255 = arith.mulf %246, %223 : vector<16x64xf32>
    %256 = arith.addf %254, %255 : vector<16x64xf32>
    %c7_i32 = arith.constant 7 : i32
    %c16_i32_64 = arith.constant 16 : i32
    %257 = arith.muli %c7_i32, %c16_i32_64 : i32
    %258 = tpu.assume_multiple %257, 16 : i32
    %259 = arith.index_cast %258 : i32 to index
    %c0_65 = arith.constant 0 : index
    %260 = vector.load %arg20[%259, %c0_65] : memref<128x192xf32, #tpu.memory_space<vmem>>, vector<16x192xf32>
    %cst_66 = arith.constant dense<0.000000e+00> : vector<16x192xf32>
    %261 = tpu.matmul %256, %18, %cst_66 {dimension_numbers = #tpu.dot_dimension_numbers<[1], [0], [0], [1], [0, 0, 1, 1], [], []>} : vector<16x64xf32>, vector<64x192xf32>, vector<16x192xf32> -> vector<16x192xf32>
    %262 = vector.broadcast %20 : vector<1x192xf32> to vector<16x192xf32>
    %263 = arith.addf %261, %262 : vector<16x192xf32>
    %264 = vector.extract_strided_slice %260 {offsets = [0, 0], sizes = [16, 64], strides = [1, 1]} : vector<16x192xf32> to vector<16x64xf32>
    %265 = vector.extract_strided_slice %263 {offsets = [0, 0], sizes = [16, 64], strides = [1, 1]} : vector<16x192xf32> to vector<16x64xf32>
    %266 = arith.addf %264, %265 : vector<16x64xf32>
    %267 = arith.negf %266 : vector<16x64xf32>
    %268 = math.exp %267 : vector<16x64xf32>
    %cst_67 = arith.constant 1.000000e+00 : f32
    %269 = vector.broadcast %cst_67 : f32 to vector<16x64xf32>
    %270 = arith.addf %269, %268 : vector<16x64xf32>
    %271 = arith.divf %269, %270 : vector<16x64xf32>
    %272 = vector.extract_strided_slice %260 {offsets = [0, 64], sizes = [16, 64], strides = [1, 1]} : vector<16x192xf32> to vector<16x64xf32>
    %273 = vector.extract_strided_slice %263 {offsets = [0, 64], sizes = [16, 64], strides = [1, 1]} : vector<16x192xf32> to vector<16x64xf32>
    %274 = arith.addf %272, %273 : vector<16x64xf32>
    %275 = arith.negf %274 : vector<16x64xf32>
    %276 = math.exp %275 : vector<16x64xf32>
    %cst_68 = arith.constant 1.000000e+00 : f32
    %277 = vector.broadcast %cst_68 : f32 to vector<16x64xf32>
    %278 = arith.addf %277, %276 : vector<16x64xf32>
    %279 = arith.divf %277, %278 : vector<16x64xf32>
    %280 = vector.extract_strided_slice %260 {offsets = [0, 128], sizes = [16, 64], strides = [1, 1]} : vector<16x192xf32> to vector<16x64xf32>
    %281 = vector.extract_strided_slice %263 {offsets = [0, 128], sizes = [16, 64], strides = [1, 1]} : vector<16x192xf32> to vector<16x64xf32>
    %282 = arith.mulf %271, %281 : vector<16x64xf32>
    %283 = arith.addf %280, %282 : vector<16x64xf32>
    %284 = math.tanh %283 : vector<16x64xf32>
    %cst_69 = arith.constant 1.000000e+00 : f32
    %285 = vector.broadcast %cst_69 : f32 to vector<16x64xf32>
    %286 = arith.subf %285, %279 : vector<16x64xf32>
    %287 = arith.mulf %286, %284 : vector<16x64xf32>
    %288 = arith.mulf %279, %256 : vector<16x64xf32>
    %289 = arith.addf %287, %288 : vector<16x64xf32>
    %c8_i32 = arith.constant 8 : i32
    %c0_70 = arith.constant 0 : index
    %c0_71 = arith.constant 0 : index
    %290 = vector.load %arg9[%c0_70, %c0_71] : memref<64x32xf32, #tpu.memory_space<vmem>>, vector<64x32xf32>
    %cst_72 = arith.constant dense<0.000000e+00> : vector<16x32xf32>
    %291 = tpu.matmul %289, %290, %cst_72 {dimension_numbers = #tpu.dot_dimension_numbers<[1], [0], [0], [1], [0, 0, 1, 1], [], []>} : vector<16x64xf32>, vector<64x32xf32>, vector<16x32xf32> -> vector<16x32xf32>
    %c0_73 = arith.constant 0 : index
    %c0_74 = arith.constant 0 : index
    %292 = vector.load %arg10[%c0_73, %c0_74] : memref<1x32xf32, #tpu.memory_space<vmem>>, vector<1x32xf32>
    %293 = vector.broadcast %292 : vector<1x32xf32> to vector<16x32xf32>
    %294 = arith.addf %291, %293 : vector<16x32xf32>
    %295 = vector.extract_strided_slice %294 {offsets = [0, 0], sizes = [8, 32], strides = [1, 1]} : vector<16x32xf32> to vector<8x32xf32>
    %296 = vector.extract_strided_slice %294 {offsets = [8, 0], sizes = [8, 32], strides = [1, 1]} : vector<16x32xf32> to vector<8x32xf32>
    %c0_75 = arith.constant 0 : index
    %c0_76 = arith.constant 0 : index
    %297 = vector.load %arg19[%c0_75, %c0_76] : memref<8x32xf32, #tpu.memory_space<vmem>>, vector<8x32xf32>
    tpu.vector_store %arg19[%c0_75, %c0_76], %296 {strides = array<i32>} : memref<8x32xf32, #tpu.memory_space<vmem>>, vector<8x32xf32>,
    %c0_77 = arith.constant 0 : index
    %c0_78 = arith.constant 0 : index
    %298 = vector.load %arg12[%c0_77, %c0_78] : memref<32x256xf32, #tpu.memory_space<vmem>>, vector<32x256xf32>
    %c0_79 = arith.constant 0 : index
    %c0_80 = arith.constant 0 : index
    %299 = vector.load %arg13[%c0_79, %c0_80] : memref<64x256xf32, #tpu.memory_space<vmem>>, vector<64x256xf32>
    %c0_81 = arith.constant 0 : index
    %c0_82 = arith.constant 0 : index
    %300 = vector.load %arg14[%c0_81, %c0_82] : memref<1x256xf32, #tpu.memory_space<vmem>>, vector<1x256xf32>
    %cst_83 = arith.constant dense<0.000000e+00> : vector<8x256xf32>
    %301 = tpu.matmul %295, %298, %cst_83 {dimension_numbers = #tpu.dot_dimension_numbers<[1], [0], [0], [1], [0, 0, 1, 1], [], []>} : vector<8x32xf32>, vector<32x256xf32>, vector<8x256xf32> -> vector<8x256xf32>
    %302 = vector.broadcast %300 : vector<1x256xf32> to vector<8x256xf32>
    %303 = arith.addf %301, %302 : vector<8x256xf32>
    %c0_84 = arith.constant 0 : index
    %c0_85 = arith.constant 0 : index
    %304 = vector.load %arg21[%c0_84, %c0_85] : memref<64x256xf32, #tpu.memory_space<vmem>>, vector<8x256xf32>
    tpu.vector_store %arg21[%c0_84, %c0_85], %303 {strides = array<i32>} : memref<64x256xf32, #tpu.memory_space<vmem>>, vector<8x256xf32>,
    %c0_86 = arith.constant 0 : index
    %c0_87 = arith.constant 0 : index
    %305 = vector.load %arg1[%c0_86, %c0_87] : memref<56x32xf32, #tpu.memory_space<vmem>>, vector<56x32xf32>
    %cst_88 = arith.constant dense<0.000000e+00> : vector<56x256xf32>
    %306 = tpu.matmul %305, %298, %cst_88 {dimension_numbers = #tpu.dot_dimension_numbers<[1], [0], [0], [1], [0, 0, 1, 1], [], []>} : vector<56x32xf32>, vector<32x256xf32>, vector<56x256xf32> -> vector<56x256xf32>
    %307 = vector.broadcast %300 : vector<1x256xf32> to vector<56x256xf32>
    %308 = arith.addf %306, %307 : vector<56x256xf32>
    %c8 = arith.constant 8 : index
    %c0_89 = arith.constant 0 : index
    %309 = vector.load %arg21[%c8, %c0_89] : memref<64x256xf32, #tpu.memory_space<vmem>>, vector<56x256xf32>
    tpu.vector_store %arg21[%c8, %c0_89], %308 {strides = array<i32>} : memref<64x256xf32, #tpu.memory_space<vmem>>, vector<56x256xf32>,
    %cst_90 = arith.constant 0.000000e+00 : f32
    %310 = vector.broadcast %cst_90 : f32 to vector<8x64xf32>
    %c0_i32_91 = arith.constant 0 : i32
    %c8_i32_92 = arith.constant 8 : i32
    %311 = arith.muli %c0_i32_91, %c8_i32_92 : i32
    %312 = tpu.assume_multiple %311, 8 : i32
    %313 = arith.index_cast %312 : i32 to index
    %c0_93 = arith.constant 0 : index
    %314 = vector.load %arg21[%313, %c0_93] : memref<64x256xf32, #tpu.memory_space<vmem>>, vector<8x256xf32>
    %cst_94 = arith.constant dense<0.000000e+00> : vector<8x256xf32>
    %315 = tpu.matmul %310, %299, %cst_94 {dimension_numbers = #tpu.dot_dimension_numbers<[1], [0], [0], [1], [0, 0, 1, 1], [], []>} : vector<8x64xf32>, vector<64x256xf32>, vector<8x256xf32> -> vector<8x256xf32>
    %316 = arith.addf %314, %315 : vector<8x256xf32>
    %317 = vector.extract_strided_slice %316 {offsets = [0, 0], sizes = [8, 64], strides = [1, 1]} : vector<8x256xf32> to vector<8x64xf32>
    %318 = arith.negf %317 : vector<8x64xf32>
    %319 = math.exp %318 : vector<8x64xf32>
    %cst_95 = arith.constant 1.000000e+00 : f32
    %320 = vector.broadcast %cst_95 : f32 to vector<8x64xf32>
    %321 = arith.addf %320, %319 : vector<8x64xf32>
    %322 = arith.divf %320, %321 : vector<8x64xf32>
    %323 = vector.extract_strided_slice %316 {offsets = [0, 64], sizes = [8, 64], strides = [1, 1]} : vector<8x256xf32> to vector<8x64xf32>
    %324 = arith.negf %323 : vector<8x64xf32>
    %325 = math.exp %324 : vector<8x64xf32>
    %cst_96 = arith.constant 1.000000e+00 : f32
    %326 = vector.broadcast %cst_96 : f32 to vector<8x64xf32>
    %327 = arith.addf %326, %325 : vector<8x64xf32>
    %328 = arith.divf %326, %327 : vector<8x64xf32>
    %329 = vector.extract_strided_slice %316 {offsets = [0, 128], sizes = [8, 64], strides = [1, 1]} : vector<8x256xf32> to vector<8x64xf32>
    %330 = math.tanh %329 : vector<8x64xf32>
    %331 = vector.extract_strided_slice %316 {offsets = [0, 192], sizes = [8, 64], strides = [1, 1]} : vector<8x256xf32> to vector<8x64xf32>
    %332 = arith.negf %331 : vector<8x64xf32>
    %333 = math.exp %332 : vector<8x64xf32>
    %cst_97 = arith.constant 1.000000e+00 : f32
    %334 = vector.broadcast %cst_97 : f32 to vector<8x64xf32>
    %335 = arith.addf %334, %333 : vector<8x64xf32>
    %336 = arith.divf %334, %335 : vector<8x64xf32>
    %337 = arith.mulf %328, %310 : vector<8x64xf32>
    %338 = arith.mulf %322, %330 : vector<8x64xf32>
    %339 = arith.addf %337, %338 : vector<8x64xf32>
    %340 = math.tanh %339 : vector<8x64xf32>
    %341 = arith.mulf %336, %340 : vector<8x64xf32>
    %342 = arith.index_cast %312 : i32 to index
    %c0_98 = arith.constant 0 : index
    %343 = vector.load %arg22[%342, %c0_98] : memref<64x64xf32, #tpu.memory_space<vmem>>, vector<8x64xf32>
    tpu.vector_store %arg22[%342, %c0_98], %341 {strides = array<i32>} : memref<64x64xf32, #tpu.memory_space<vmem>>, vector<8x64xf32>,
    %c1_i32_99 = arith.constant 1 : i32
    %c8_i32_100 = arith.constant 8 : i32
    %344 = arith.muli %c1_i32_99, %c8_i32_100 : i32
    %345 = tpu.assume_multiple %344, 8 : i32
    %346 = arith.index_cast %345 : i32 to index
    %c0_101 = arith.constant 0 : index
    %347 = vector.load %arg21[%346, %c0_101] : memref<64x256xf32, #tpu.memory_space<vmem>>, vector<8x256xf32>
    %cst_102 = arith.constant dense<0.000000e+00> : vector<8x256xf32>
    %348 = tpu.matmul %341, %299, %cst_102 {dimension_numbers = #tpu.dot_dimension_numbers<[1], [0], [0], [1], [0, 0, 1, 1], [], []>} : vector<8x64xf32>, vector<64x256xf32>, vector<8x256xf32> -> vector<8x256xf32>
    %349 = arith.addf %347, %348 : vector<8x256xf32>
    %350 = vector.extract_strided_slice %349 {offsets = [0, 0], sizes = [8, 64], strides = [1, 1]} : vector<8x256xf32> to vector<8x64xf32>
    %351 = arith.negf %350 : vector<8x64xf32>
    %352 = math.exp %351 : vector<8x64xf32>
    %cst_103 = arith.constant 1.000000e+00 : f32
    %353 = vector.broadcast %cst_103 : f32 to vector<8x64xf32>
    %354 = arith.addf %353, %352 : vector<8x64xf32>
    %355 = arith.divf %353, %354 : vector<8x64xf32>
    %356 = vector.extract_strided_slice %349 {offsets = [0, 64], sizes = [8, 64], strides = [1, 1]} : vector<8x256xf32> to vector<8x64xf32>
    %357 = arith.negf %356 : vector<8x64xf32>
    %358 = math.exp %357 : vector<8x64xf32>
    %cst_104 = arith.constant 1.000000e+00 : f32
    %359 = vector.broadcast %cst_104 : f32 to vector<8x64xf32>
    %360 = arith.addf %359, %358 : vector<8x64xf32>
    %361 = arith.divf %359, %360 : vector<8x64xf32>
    %362 = vector.extract_strided_slice %349 {offsets = [0, 128], sizes = [8, 64], strides = [1, 1]} : vector<8x256xf32> to vector<8x64xf32>
    %363 = math.tanh %362 : vector<8x64xf32>
    %364 = vector.extract_strided_slice %349 {offsets = [0, 192], sizes = [8, 64], strides = [1, 1]} : vector<8x256xf32> to vector<8x64xf32>
    %365 = arith.negf %364 : vector<8x64xf32>
    %366 = math.exp %365 : vector<8x64xf32>
    %cst_105 = arith.constant 1.000000e+00 : f32
    %367 = vector.broadcast %cst_105 : f32 to vector<8x64xf32>
    %368 = arith.addf %367, %366 : vector<8x64xf32>
    %369 = arith.divf %367, %368 : vector<8x64xf32>
    %370 = arith.mulf %361, %339 : vector<8x64xf32>
    %371 = arith.mulf %355, %363 : vector<8x64xf32>
    %372 = arith.addf %370, %371 : vector<8x64xf32>
    %373 = math.tanh %372 : vector<8x64xf32>
    %374 = arith.mulf %369, %373 : vector<8x64xf32>
    %375 = arith.index_cast %345 : i32 to index
    %c0_106 = arith.constant 0 : index
    %376 = vector.load %arg22[%375, %c0_106] : memref<64x64xf32, #tpu.memory_space<vmem>>, vector<8x64xf32>
    tpu.vector_store %arg22[%375, %c0_106], %374 {strides = array<i32>} : memref<64x64xf32, #tpu.memory_space<vmem>>, vector<8x64xf32>,
    %c2_i32_107 = arith.constant 2 : i32
    %c8_i32_108 = arith.constant 8 : i32
    %377 = arith.muli %c2_i32_107, %c8_i32_108 : i32
    %378 = tpu.assume_multiple %377, 8 : i32
    %379 = arith.index_cast %378 : i32 to index
    %c0_109 = arith.constant 0 : index
    %380 = vector.load %arg21[%379, %c0_109] : memref<64x256xf32, #tpu.memory_space<vmem>>, vector<8x256xf32>
    %cst_110 = arith.constant dense<0.000000e+00> : vector<8x256xf32>
    %381 = tpu.matmul %374, %299, %cst_110 {dimension_numbers = #tpu.dot_dimension_numbers<[1], [0], [0], [1], [0, 0, 1, 1], [], []>} : vector<8x64xf32>, vector<64x256xf32>, vector<8x256xf32> -> vector<8x256xf32>
    %382 = arith.addf %380, %381 : vector<8x256xf32>
    %383 = vector.extract_strided_slice %382 {offsets = [0, 0], sizes = [8, 64], strides = [1, 1]} : vector<8x256xf32> to vector<8x64xf32>
    %384 = arith.negf %383 : vector<8x64xf32>
    %385 = math.exp %384 : vector<8x64xf32>
    %cst_111 = arith.constant 1.000000e+00 : f32
    %386 = vector.broadcast %cst_111 : f32 to vector<8x64xf32>
    %387 = arith.addf %386, %385 : vector<8x64xf32>
    %388 = arith.divf %386, %387 : vector<8x64xf32>
    %389 = vector.extract_strided_slice %382 {offsets = [0, 64], sizes = [8, 64], strides = [1, 1]} : vector<8x256xf32> to vector<8x64xf32>
    %390 = arith.negf %389 : vector<8x64xf32>
    %391 = math.exp %390 : vector<8x64xf32>
    %cst_112 = arith.constant 1.000000e+00 : f32
    %392 = vector.broadcast %cst_112 : f32 to vector<8x64xf32>
    %393 = arith.addf %392, %391 : vector<8x64xf32>
    %394 = arith.divf %392, %393 : vector<8x64xf32>
    %395 = vector.extract_strided_slice %382 {offsets = [0, 128], sizes = [8, 64], strides = [1, 1]} : vector<8x256xf32> to vector<8x64xf32>
    %396 = math.tanh %395 : vector<8x64xf32>
    %397 = vector.extract_strided_slice %382 {offsets = [0, 192], sizes = [8, 64], strides = [1, 1]} : vector<8x256xf32> to vector<8x64xf32>
    %398 = arith.negf %397 : vector<8x64xf32>
    %399 = math.exp %398 : vector<8x64xf32>
    %cst_113 = arith.constant 1.000000e+00 : f32
    %400 = vector.broadcast %cst_113 : f32 to vector<8x64xf32>
    %401 = arith.addf %400, %399 : vector<8x64xf32>
    %402 = arith.divf %400, %401 : vector<8x64xf32>
    %403 = arith.mulf %394, %372 : vector<8x64xf32>
    %404 = arith.mulf %388, %396 : vector<8x64xf32>
    %405 = arith.addf %403, %404 : vector<8x64xf32>
    %406 = math.tanh %405 : vector<8x64xf32>
    %407 = arith.mulf %402, %406 : vector<8x64xf32>
    %408 = arith.index_cast %378 : i32 to index
    %c0_114 = arith.constant 0 : index
    %409 = vector.load %arg22[%408, %c0_114] : memref<64x64xf32, #tpu.memory_space<vmem>>, vector<8x64xf32>
    tpu.vector_store %arg22[%408, %c0_114], %407 {strides = array<i32>} : memref<64x64xf32, #tpu.memory_space<vmem>>, vector<8x64xf32>,
    %c3_i32_115 = arith.constant 3 : i32
    %c8_i32_116 = arith.constant 8 : i32
    %410 = arith.muli %c3_i32_115, %c8_i32_116 : i32
    %411 = tpu.assume_multiple %410, 8 : i32
    %412 = arith.index_cast %411 : i32 to index
    %c0_117 = arith.constant 0 : index
    %413 = vector.load %arg21[%412, %c0_117] : memref<64x256xf32, #tpu.memory_space<vmem>>, vector<8x256xf32>
    %cst_118 = arith.constant dense<0.000000e+00> : vector<8x256xf32>
    %414 = tpu.matmul %407, %299, %cst_118 {dimension_numbers = #tpu.dot_dimension_numbers<[1], [0], [0], [1], [0, 0, 1, 1], [], []>} : vector<8x64xf32>, vector<64x256xf32>, vector<8x256xf32> -> vector<8x256xf32>
    %415 = arith.addf %413, %414 : vector<8x256xf32>
    %416 = vector.extract_strided_slice %415 {offsets = [0, 0], sizes = [8, 64], strides = [1, 1]} : vector<8x256xf32> to vector<8x64xf32>
    %417 = arith.negf %416 : vector<8x64xf32>
    %418 = math.exp %417 : vector<8x64xf32>
    %cst_119 = arith.constant 1.000000e+00 : f32
    %419 = vector.broadcast %cst_119 : f32 to vector<8x64xf32>
    %420 = arith.addf %419, %418 : vector<8x64xf32>
    %421 = arith.divf %419, %420 : vector<8x64xf32>
    %422 = vector.extract_strided_slice %415 {offsets = [0, 64], sizes = [8, 64], strides = [1, 1]} : vector<8x256xf32> to vector<8x64xf32>
    %423 = arith.negf %422 : vector<8x64xf32>
    %424 = math.exp %423 : vector<8x64xf32>
    %cst_120 = arith.constant 1.000000e+00 : f32
    %425 = vector.broadcast %cst_120 : f32 to vector<8x64xf32>
    %426 = arith.addf %425, %424 : vector<8x64xf32>
    %427 = arith.divf %425, %426 : vector<8x64xf32>
    %428 = vector.extract_strided_slice %415 {offsets = [0, 128], sizes = [8, 64], strides = [1, 1]} : vector<8x256xf32> to vector<8x64xf32>
    %429 = math.tanh %428 : vector<8x64xf32>
    %430 = vector.extract_strided_slice %415 {offsets = [0, 192], sizes = [8, 64], strides = [1, 1]} : vector<8x256xf32> to vector<8x64xf32>
    %431 = arith.negf %430 : vector<8x64xf32>
    %432 = math.exp %431 : vector<8x64xf32>
    %cst_121 = arith.constant 1.000000e+00 : f32
    %433 = vector.broadcast %cst_121 : f32 to vector<8x64xf32>
    %434 = arith.addf %433, %432 : vector<8x64xf32>
    %435 = arith.divf %433, %434 : vector<8x64xf32>
    %436 = arith.mulf %427, %405 : vector<8x64xf32>
    %437 = arith.mulf %421, %429 : vector<8x64xf32>
    %438 = arith.addf %436, %437 : vector<8x64xf32>
    %439 = math.tanh %438 : vector<8x64xf32>
    %440 = arith.mulf %435, %439 : vector<8x64xf32>
    %441 = arith.index_cast %411 : i32 to index
    %c0_122 = arith.constant 0 : index
    %442 = vector.load %arg22[%441, %c0_122] : memref<64x64xf32, #tpu.memory_space<vmem>>, vector<8x64xf32>
    tpu.vector_store %arg22[%441, %c0_122], %440 {strides = array<i32>} : memref<64x64xf32, #tpu.memory_space<vmem>>, vector<8x64xf32>,
    %c4_i32_123 = arith.constant 4 : i32
    %c8_i32_124 = arith.constant 8 : i32
    %443 = arith.muli %c4_i32_123, %c8_i32_124 : i32
    %444 = tpu.assume_multiple %443, 8 : i32
    %445 = arith.index_cast %444 : i32 to index
    %c0_125 = arith.constant 0 : index
    %446 = vector.load %arg21[%445, %c0_125] : memref<64x256xf32, #tpu.memory_space<vmem>>, vector<8x256xf32>
    %cst_126 = arith.constant dense<0.000000e+00> : vector<8x256xf32>
    %447 = tpu.matmul %440, %299, %cst_126 {dimension_numbers = #tpu.dot_dimension_numbers<[1], [0], [0], [1], [0, 0, 1, 1], [], []>} : vector<8x64xf32>, vector<64x256xf32>, vector<8x256xf32> -> vector<8x256xf32>
    %448 = arith.addf %446, %447 : vector<8x256xf32>
    %449 = vector.extract_strided_slice %448 {offsets = [0, 0], sizes = [8, 64], strides = [1, 1]} : vector<8x256xf32> to vector<8x64xf32>
    %450 = arith.negf %449 : vector<8x64xf32>
    %451 = math.exp %450 : vector<8x64xf32>
    %cst_127 = arith.constant 1.000000e+00 : f32
    %452 = vector.broadcast %cst_127 : f32 to vector<8x64xf32>
    %453 = arith.addf %452, %451 : vector<8x64xf32>
    %454 = arith.divf %452, %453 : vector<8x64xf32>
    %455 = vector.extract_strided_slice %448 {offsets = [0, 64], sizes = [8, 64], strides = [1, 1]} : vector<8x256xf32> to vector<8x64xf32>
    %456 = arith.negf %455 : vector<8x64xf32>
    %457 = math.exp %456 : vector<8x64xf32>
    %cst_128 = arith.constant 1.000000e+00 : f32
    %458 = vector.broadcast %cst_128 : f32 to vector<8x64xf32>
    %459 = arith.addf %458, %457 : vector<8x64xf32>
    %460 = arith.divf %458, %459 : vector<8x64xf32>
    %461 = vector.extract_strided_slice %448 {offsets = [0, 128], sizes = [8, 64], strides = [1, 1]} : vector<8x256xf32> to vector<8x64xf32>
    %462 = math.tanh %461 : vector<8x64xf32>
    %463 = vector.extract_strided_slice %448 {offsets = [0, 192], sizes = [8, 64], strides = [1, 1]} : vector<8x256xf32> to vector<8x64xf32>
    %464 = arith.negf %463 : vector<8x64xf32>
    %465 = math.exp %464 : vector<8x64xf32>
    %cst_129 = arith.constant 1.000000e+00 : f32
    %466 = vector.broadcast %cst_129 : f32 to vector<8x64xf32>
    %467 = arith.addf %466, %465 : vector<8x64xf32>
    %468 = arith.divf %466, %467 : vector<8x64xf32>
    %469 = arith.mulf %460, %438 : vector<8x64xf32>
    %470 = arith.mulf %454, %462 : vector<8x64xf32>
    %471 = arith.addf %469, %470 : vector<8x64xf32>
    %472 = math.tanh %471 : vector<8x64xf32>
    %473 = arith.mulf %468, %472 : vector<8x64xf32>
    %474 = arith.index_cast %444 : i32 to index
    %c0_130 = arith.constant 0 : index
    %475 = vector.load %arg22[%474, %c0_130] : memref<64x64xf32, #tpu.memory_space<vmem>>, vector<8x64xf32>
    tpu.vector_store %arg22[%474, %c0_130], %473 {strides = array<i32>} : memref<64x64xf32, #tpu.memory_space<vmem>>, vector<8x64xf32>,
    %c5_i32_131 = arith.constant 5 : i32
    %c8_i32_132 = arith.constant 8 : i32
    %476 = arith.muli %c5_i32_131, %c8_i32_132 : i32
    %477 = tpu.assume_multiple %476, 8 : i32
    %478 = arith.index_cast %477 : i32 to index
    %c0_133 = arith.constant 0 : index
    %479 = vector.load %arg21[%478, %c0_133] : memref<64x256xf32, #tpu.memory_space<vmem>>, vector<8x256xf32>
    %cst_134 = arith.constant dense<0.000000e+00> : vector<8x256xf32>
    %480 = tpu.matmul %473, %299, %cst_134 {dimension_numbers = #tpu.dot_dimension_numbers<[1], [0], [0], [1], [0, 0, 1, 1], [], []>} : vector<8x64xf32>, vector<64x256xf32>, vector<8x256xf32> -> vector<8x256xf32>
    %481 = arith.addf %479, %480 : vector<8x256xf32>
    %482 = vector.extract_strided_slice %481 {offsets = [0, 0], sizes = [8, 64], strides = [1, 1]} : vector<8x256xf32> to vector<8x64xf32>
    %483 = arith.negf %482 : vector<8x64xf32>
    %484 = math.exp %483 : vector<8x64xf32>
    %cst_135 = arith.constant 1.000000e+00 : f32
    %485 = vector.broadcast %cst_135 : f32 to vector<8x64xf32>
    %486 = arith.addf %485, %484 : vector<8x64xf32>
    %487 = arith.divf %485, %486 : vector<8x64xf32>
    %488 = vector.extract_strided_slice %481 {offsets = [0, 64], sizes = [8, 64], strides = [1, 1]} : vector<8x256xf32> to vector<8x64xf32>
    %489 = arith.negf %488 : vector<8x64xf32>
    %490 = math.exp %489 : vector<8x64xf32>
    %cst_136 = arith.constant 1.000000e+00 : f32
    %491 = vector.broadcast %cst_136 : f32 to vector<8x64xf32>
    %492 = arith.addf %491, %490 : vector<8x64xf32>
    %493 = arith.divf %491, %492 : vector<8x64xf32>
    %494 = vector.extract_strided_slice %481 {offsets = [0, 128], sizes = [8, 64], strides = [1, 1]} : vector<8x256xf32> to vector<8x64xf32>
    %495 = math.tanh %494 : vector<8x64xf32>
    %496 = vector.extract_strided_slice %481 {offsets = [0, 192], sizes = [8, 64], strides = [1, 1]} : vector<8x256xf32> to vector<8x64xf32>
    %497 = arith.negf %496 : vector<8x64xf32>
    %498 = math.exp %497 : vector<8x64xf32>
    %cst_137 = arith.constant 1.000000e+00 : f32
    %499 = vector.broadcast %cst_137 : f32 to vector<8x64xf32>
    %500 = arith.addf %499, %498 : vector<8x64xf32>
    %501 = arith.divf %499, %500 : vector<8x64xf32>
    %502 = arith.mulf %493, %471 : vector<8x64xf32>
    %503 = arith.mulf %487, %495 : vector<8x64xf32>
    %504 = arith.addf %502, %503 : vector<8x64xf32>
    %505 = math.tanh %504 : vector<8x64xf32>
    %506 = arith.mulf %501, %505 : vector<8x64xf32>
    %507 = arith.index_cast %477 : i32 to index
    %c0_138 = arith.constant 0 : index
    %508 = vector.load %arg22[%507, %c0_138] : memref<64x64xf32, #tpu.memory_space<vmem>>, vector<8x64xf32>
    tpu.vector_store %arg22[%507, %c0_138], %506 {strides = array<i32>} : memref<64x64xf32, #tpu.memory_space<vmem>>, vector<8x64xf32>,
    %c6_i32_139 = arith.constant 6 : i32
    %c8_i32_140 = arith.constant 8 : i32
    %509 = arith.muli %c6_i32_139, %c8_i32_140 : i32
    %510 = tpu.assume_multiple %509, 8 : i32
    %511 = arith.index_cast %510 : i32 to index
    %c0_141 = arith.constant 0 : index
    %512 = vector.load %arg21[%511, %c0_141] : memref<64x256xf32, #tpu.memory_space<vmem>>, vector<8x256xf32>
    %cst_142 = arith.constant dense<0.000000e+00> : vector<8x256xf32>
    %513 = tpu.matmul %506, %299, %cst_142 {dimension_numbers = #tpu.dot_dimension_numbers<[1], [0], [0], [1], [0, 0, 1, 1], [], []>} : vector<8x64xf32>, vector<64x256xf32>, vector<8x256xf32> -> vector<8x256xf32>
    %514 = arith.addf %512, %513 : vector<8x256xf32>
    %515 = vector.extract_strided_slice %514 {offsets = [0, 0], sizes = [8, 64], strides = [1, 1]} : vector<8x256xf32> to vector<8x64xf32>
    %516 = arith.negf %515 : vector<8x64xf32>
    %517 = math.exp %516 : vector<8x64xf32>
    %cst_143 = arith.constant 1.000000e+00 : f32
    %518 = vector.broadcast %cst_143 : f32 to vector<8x64xf32>
    %519 = arith.addf %518, %517 : vector<8x64xf32>
    %520 = arith.divf %518, %519 : vector<8x64xf32>
    %521 = vector.extract_strided_slice %514 {offsets = [0, 64], sizes = [8, 64], strides = [1, 1]} : vector<8x256xf32> to vector<8x64xf32>
    %522 = arith.negf %521 : vector<8x64xf32>
    %523 = math.exp %522 : vector<8x64xf32>
    %cst_144 = arith.constant 1.000000e+00 : f32
    %524 = vector.broadcast %cst_144 : f32 to vector<8x64xf32>
    %525 = arith.addf %524, %523 : vector<8x64xf32>
    %526 = arith.divf %524, %525 : vector<8x64xf32>
    %527 = vector.extract_strided_slice %514 {offsets = [0, 128], sizes = [8, 64], strides = [1, 1]} : vector<8x256xf32> to vector<8x64xf32>
    %528 = math.tanh %527 : vector<8x64xf32>
    %529 = vector.extract_strided_slice %514 {offsets = [0, 192], sizes = [8, 64], strides = [1, 1]} : vector<8x256xf32> to vector<8x64xf32>
    %530 = arith.negf %529 : vector<8x64xf32>
    %531 = math.exp %530 : vector<8x64xf32>
    %cst_145 = arith.constant 1.000000e+00 : f32
    %532 = vector.broadcast %cst_145 : f32 to vector<8x64xf32>
    %533 = arith.addf %532, %531 : vector<8x64xf32>
    %534 = arith.divf %532, %533 : vector<8x64xf32>
    %535 = arith.mulf %526, %504 : vector<8x64xf32>
    %536 = arith.mulf %520, %528 : vector<8x64xf32>
    %537 = arith.addf %535, %536 : vector<8x64xf32>
    %538 = math.tanh %537 : vector<8x64xf32>
    %539 = arith.mulf %534, %538 : vector<8x64xf32>
    %540 = arith.index_cast %510 : i32 to index
    %c0_146 = arith.constant 0 : index
    %541 = vector.load %arg22[%540, %c0_146] : memref<64x64xf32, #tpu.memory_space<vmem>>, vector<8x64xf32>
    tpu.vector_store %arg22[%540, %c0_146], %539 {strides = array<i32>} : memref<64x64xf32, #tpu.memory_space<vmem>>, vector<8x64xf32>,
    %c7_i32_147 = arith.constant 7 : i32
    %c8_i32_148 = arith.constant 8 : i32
    %542 = arith.muli %c7_i32_147, %c8_i32_148 : i32
    %543 = tpu.assume_multiple %542, 8 : i32
    %544 = arith.index_cast %543 : i32 to index
    %c0_149 = arith.constant 0 : index
    %545 = vector.load %arg21[%544, %c0_149] : memref<64x256xf32, #tpu.memory_space<vmem>>, vector<8x256xf32>
    %cst_150 = arith.constant dense<0.000000e+00> : vector<8x256xf32>
    %546 = tpu.matmul %539, %299, %cst_150 {dimension_numbers = #tpu.dot_dimension_numbers<[1], [0], [0], [1], [0, 0, 1, 1], [], []>} : vector<8x64xf32>, vector<64x256xf32>, vector<8x256xf32> -> vector<8x256xf32>
    %547 = arith.addf %545, %546 : vector<8x256xf32>
    %548 = vector.extract_strided_slice %547 {offsets = [0, 0], sizes = [8, 64], strides = [1, 1]} : vector<8x256xf32> to vector<8x64xf32>
    %549 = arith.negf %548 : vector<8x64xf32>
    %550 = math.exp %549 : vector<8x64xf32>
    %cst_151 = arith.constant 1.000000e+00 : f32
    %551 = vector.broadcast %cst_151 : f32 to vector<8x64xf32>
    %552 = arith.addf %551, %550 : vector<8x64xf32>
    %553 = arith.divf %551, %552 : vector<8x64xf32>
    %554 = vector.extract_strided_slice %547 {offsets = [0, 64], sizes = [8, 64], strides = [1, 1]} : vector<8x256xf32> to vector<8x64xf32>
    %555 = arith.negf %554 : vector<8x64xf32>
    %556 = math.exp %555 : vector<8x64xf32>
    %cst_152 = arith.constant 1.000000e+00 : f32
    %557 = vector.broadcast %cst_152 : f32 to vector<8x64xf32>
    %558 = arith.addf %557, %556 : vector<8x64xf32>
    %559 = arith.divf %557, %558 : vector<8x64xf32>
    %560 = vector.extract_strided_slice %547 {offsets = [0, 128], sizes = [8, 64], strides = [1, 1]} : vector<8x256xf32> to vector<8x64xf32>
    %561 = math.tanh %560 : vector<8x64xf32>
    %562 = vector.extract_strided_slice %547 {offsets = [0, 192], sizes = [8, 64], strides = [1, 1]} : vector<8x256xf32> to vector<8x64xf32>
    %563 = arith.negf %562 : vector<8x64xf32>
    %564 = math.exp %563 : vector<8x64xf32>
    %cst_153 = arith.constant 1.000000e+00 : f32
    %565 = vector.broadcast %cst_153 : f32 to vector<8x64xf32>
    %566 = arith.addf %565, %564 : vector<8x64xf32>
    %567 = arith.divf %565, %566 : vector<8x64xf32>
    %568 = arith.mulf %559, %537 : vector<8x64xf32>
    %569 = arith.mulf %553, %561 : vector<8x64xf32>
    %570 = arith.addf %568, %569 : vector<8x64xf32>
    %571 = math.tanh %570 : vector<8x64xf32>
    %572 = arith.mulf %567, %571 : vector<8x64xf32>
    %573 = arith.index_cast %543 : i32 to index
    %c0_154 = arith.constant 0 : index
    %574 = vector.load %arg22[%573, %c0_154] : memref<64x64xf32, #tpu.memory_space<vmem>>, vector<8x64xf32>
    tpu.vector_store %arg22[%573, %c0_154], %572 {strides = array<i32>} : memref<64x64xf32, #tpu.memory_space<vmem>>, vector<8x64xf32>,
    %c8_i32_155 = arith.constant 8 : i32
    %c0_156 = arith.constant 0 : index
    %c0_157 = arith.constant 0 : index
    %575 = vector.load %arg22[%c0_156, %c0_157] : memref<64x64xf32, #tpu.memory_space<vmem>>, vector<64x64xf32>
    %c0_158 = arith.constant 0 : index
    %c0_159 = arith.constant 0 : index
    %576 = vector.load %arg15[%c0_158, %c0_159] : memref<64x128xf32, #tpu.memory_space<vmem>>, vector<64x128xf32>
    %cst_160 = arith.constant dense<0.000000e+00> : vector<64x128xf32>
    %577 = tpu.matmul %575, %576, %cst_160 {dimension_numbers = #tpu.dot_dimension_numbers<[1], [0], [0], [1], [0, 0, 1, 1], [], []>} : vector<64x64xf32>, vector<64x128xf32>, vector<64x128xf32> -> vector<64x128xf32>
    %c0_161 = arith.constant 0 : index
    %c0_162 = arith.constant 0 : index
    %578 = vector.load %arg16[%c0_161, %c0_162] : memref<1x128xf32, #tpu.memory_space<vmem>>, vector<1x128xf32>
    %579 = vector.broadcast %578 : vector<1x128xf32> to vector<64x128xf32>
    %580 = arith.addf %577, %579 : vector<64x128xf32>
    %cst_163 = arith.constant dense<0xFF800000> : vector<64xf32>
    %581 = vector.multi_reduction <maximumf>, %580, %cst_163 [1] : vector<64x128xf32> to vector<64xf32>
    %582 = vector.shape_cast %581 : vector<64xf32> to vector<64x1xf32>
    %583 = vector.broadcast %582 : vector<64x1xf32> to vector<64x128xf32>
    %584 = arith.subf %580, %583 : vector<64x128xf32>
    %585 = math.exp %584 : vector<64x128xf32>
    %cst_164 = arith.constant dense<0.000000e+00> : vector<64xf32>
    %586 = vector.multi_reduction <add>, %585, %cst_164 [1] : vector<64x128xf32> to vector<64xf32>
    %587 = vector.shape_cast %586 : vector<64xf32> to vector<64x1xf32>
    %588 = vector.broadcast %582 : vector<64x1xf32> to vector<64x128xf32>
    %589 = arith.subf %580, %588 : vector<64x128xf32>
    %590 = math.log %587 : vector<64x1xf32>
    %591 = vector.broadcast %590 : vector<64x1xf32> to vector<64x128xf32>
    %592 = arith.subf %589, %591 : vector<64x128xf32>
    %c0_165 = arith.constant 0 : index
    %c0_166 = arith.constant 0 : index
    %593 = vector.load %arg17[%c0_165, %c0_166] : memref<64x128xf32, #tpu.memory_space<vmem>>, vector<64x128xf32>
    tpu.vector_store %arg17[%c0_165, %c0_166], %592 {strides = array<i32>} : memref<64x128xf32, #tpu.memory_space<vmem>>, vector<64x128xf32>,
    %cst_167 = arith.constant 1.000000e+00 : f32
    %594 = vector.broadcast %cst_167 : f32 to vector<64x1xf32>
    %595 = arith.divf %594, %587 : vector<64x1xf32>
    %596 = vector.broadcast %595 : vector<64x1xf32> to vector<64x128xf32>
    %597 = arith.mulf %585, %596 : vector<64x128xf32>
    %c0_168 = arith.constant 0 : index
    %c0_169 = arith.constant 0 : index
    %598 = vector.load %arg11[%c0_168, %c0_169] : memref<128x64xf32, #tpu.memory_space<vmem>>, vector<128x64xf32>
    %cst_170 = arith.constant dense<0.000000e+00> : vector<64x64xf32>
    %599 = tpu.matmul %597, %598, %cst_170 {dimension_numbers = #tpu.dot_dimension_numbers<[1], [0], [0], [1], [0, 0, 1, 1], [], []>} : vector<64x128xf32>, vector<128x64xf32>, vector<64x64xf32> -> vector<64x64xf32>
    %c0_171 = arith.constant 0 : index
    %c0_172 = arith.constant 0 : index
    %600 = vector.load %arg2[%c0_171, %c0_172] : memref<1x64xf32, #tpu.memory_space<vmem>>, vector<1x64xf32>
    %601 = vector.broadcast %600 : vector<1x64xf32> to vector<64x64xf32>
    %602 = arith.addf %599, %601 : vector<64x64xf32>
    %cst_173 = arith.constant 9.99999997E-7 : f32
    %603 = vector.broadcast %cst_173 : f32 to vector<64x64xf32>
    %604 = arith.cmpf ogt, %602, %603 : vector<64x64xf32>
    %cst_174 = arith.constant 0.000000e+00 : f32
    %605 = vector.broadcast %cst_174 : f32 to vector<64x64xf32>
    %606 = arith.select %604, %602, %605 : vector<64x64xi1>, vector<64x64xf32>
    %c0_175 = arith.constant 0 : index
    %c0_176 = arith.constant 0 : index
    %607 = vector.load %arg3[%c0_175, %c0_176] : memref<64x32xf32, #tpu.memory_space<vmem>>, vector<64x32xf32>
    %cst_177 = arith.constant dense<0.000000e+00> : vector<64x32xf32>
    %608 = tpu.matmul %606, %607, %cst_177 {dimension_numbers = #tpu.dot_dimension_numbers<[1], [0], [0], [1], [0, 0, 1, 1], [], []>} : vector<64x64xf32>, vector<64x32xf32>, vector<64x32xf32> -> vector<64x32xf32>
    %c0_178 = arith.constant 0 : index
    %c0_179 = arith.constant 0 : index
    %609 = vector.load %arg4[%c0_178, %c0_179] : memref<1x32xf32, #tpu.memory_space<vmem>>, vector<1x32xf32>
    %610 = vector.broadcast %609 : vector<1x32xf32> to vector<64x32xf32>
    %611 = arith.addf %608, %610 : vector<64x32xf32>
    %cst_180 = arith.constant 9.99999997E-7 : f32
    %612 = vector.broadcast %cst_180 : f32 to vector<64x32xf32>
    %613 = arith.cmpf ogt, %611, %612 : vector<64x32xf32>
    %cst_181 = arith.constant 0.000000e+00 : f32
    %614 = vector.broadcast %cst_181 : f32 to vector<64x32xf32>
    %615 = arith.select %613, %611, %614 : vector<64x32xi1>, vector<64x32xf32>
    %cst_182 = arith.constant dense<0.000000e+00> : vector<64x192xf32>
    %616 = tpu.matmul %615, %17, %cst_182 {dimension_numbers = #tpu.dot_dimension_numbers<[1], [0], [0], [1], [0, 0, 1, 1], [], []>} : vector<64x32xf32>, vector<32x192xf32>, vector<64x192xf32> -> vector<64x192xf32>
    %617 = vector.broadcast %19 : vector<1x192xf32> to vector<64x192xf32>
    %618 = arith.addf %616, %617 : vector<64x192xf32>
    %c0_183 = arith.constant 0 : index
    %c0_184 = arith.constant 0 : index
    %619 = vector.load %arg23[%c0_183, %c0_184] : memref<64x192xf32, #tpu.memory_space<vmem>>, vector<64x192xf32>
    tpu.vector_store %arg23[%c0_183, %c0_184], %618 {strides = array<i32>} : memref<64x192xf32, #tpu.memory_space<vmem>>, vector<64x192xf32>,
    %cst_185 = arith.constant 0.000000e+00 : f32
    %620 = vector.broadcast %cst_185 : f32 to vector<8x64xf32>
    %c0_i32_186 = arith.constant 0 : i32
    %c8_i32_187 = arith.constant 8 : i32
    %621 = arith.muli %c0_i32_186, %c8_i32_187 : i32
    %622 = tpu.assume_multiple %621, 8 : i32
    %623 = arith.index_cast %622 : i32 to index
    %c0_188 = arith.constant 0 : index
    %624 = vector.load %arg23[%623, %c0_188] : memref<64x192xf32, #tpu.memory_space<vmem>>, vector<8x192xf32>
    %cst_189 = arith.constant dense<0.000000e+00> : vector<8x192xf32>
    %625 = tpu.matmul %620, %18, %cst_189 {dimension_numbers = #tpu.dot_dimension_numbers<[1], [0], [0], [1], [0, 0, 1, 1], [], []>} : vector<8x64xf32>, vector<64x192xf32>, vector<8x192xf32> -> vector<8x192xf32>
    %626 = vector.broadcast %20 : vector<1x192xf32> to vector<8x192xf32>
    %627 = arith.addf %625, %626 : vector<8x192xf32>
    %628 = vector.extract_strided_slice %624 {offsets = [0, 0], sizes = [8, 64], strides = [1, 1]} : vector<8x192xf32> to vector<8x64xf32>
    %629 = vector.extract_strided_slice %627 {offsets = [0, 0], sizes = [8, 64], strides = [1, 1]} : vector<8x192xf32> to vector<8x64xf32>
    %630 = arith.addf %628, %629 : vector<8x64xf32>
    %631 = arith.negf %630 : vector<8x64xf32>
    %632 = math.exp %631 : vector<8x64xf32>
    %cst_190 = arith.constant 1.000000e+00 : f32
    %633 = vector.broadcast %cst_190 : f32 to vector<8x64xf32>
    %634 = arith.addf %633, %632 : vector<8x64xf32>
    %635 = arith.divf %633, %634 : vector<8x64xf32>
    %636 = vector.extract_strided_slice %624 {offsets = [0, 64], sizes = [8, 64], strides = [1, 1]} : vector<8x192xf32> to vector<8x64xf32>
    %637 = vector.extract_strided_slice %627 {offsets = [0, 64], sizes = [8, 64], strides = [1, 1]} : vector<8x192xf32> to vector<8x64xf32>
    %638 = arith.addf %636, %637 : vector<8x64xf32>
    %639 = arith.negf %638 : vector<8x64xf32>
    %640 = math.exp %639 : vector<8x64xf32>
    %cst_191 = arith.constant 1.000000e+00 : f32
    %641 = vector.broadcast %cst_191 : f32 to vector<8x64xf32>
    %642 = arith.addf %641, %640 : vector<8x64xf32>
    %643 = arith.divf %641, %642 : vector<8x64xf32>
    %644 = vector.extract_strided_slice %624 {offsets = [0, 128], sizes = [8, 64], strides = [1, 1]} : vector<8x192xf32> to vector<8x64xf32>
    %645 = vector.extract_strided_slice %627 {offsets = [0, 128], sizes = [8, 64], strides = [1, 1]} : vector<8x192xf32> to vector<8x64xf32>
    %646 = arith.mulf %635, %645 : vector<8x64xf32>
    %647 = arith.addf %644, %646 : vector<8x64xf32>
    %648 = math.tanh %647 : vector<8x64xf32>
    %cst_192 = arith.constant 1.000000e+00 : f32
    %649 = vector.broadcast %cst_192 : f32 to vector<8x64xf32>
    %650 = arith.subf %649, %643 : vector<8x64xf32>
    %651 = arith.mulf %650, %648 : vector<8x64xf32>
    %652 = arith.mulf %643, %620 : vector<8x64xf32>
    %653 = arith.addf %651, %652 : vector<8x64xf32>
    %c1_i32_193 = arith.constant 1 : i32
    %c8_i32_194 = arith.constant 8 : i32
    %654 = arith.muli %c1_i32_193, %c8_i32_194 : i32
    %655 = tpu.assume_multiple %654, 8 : i32
    %656 = arith.index_cast %655 : i32 to index
    %c0_195 = arith.constant 0 : index
    %657 = vector.load %arg23[%656, %c0_195] : memref<64x192xf32, #tpu.memory_space<vmem>>, vector<8x192xf32>
    %cst_196 = arith.constant dense<0.000000e+00> : vector<8x192xf32>
    %658 = tpu.matmul %653, %18, %cst_196 {dimension_numbers = #tpu.dot_dimension_numbers<[1], [0], [0], [1], [0, 0, 1, 1], [], []>} : vector<8x64xf32>, vector<64x192xf32>, vector<8x192xf32> -> vector<8x192xf32>
    %659 = vector.broadcast %20 : vector<1x192xf32> to vector<8x192xf32>
    %660 = arith.addf %658, %659 : vector<8x192xf32>
    %661 = vector.extract_strided_slice %657 {offsets = [0, 0], sizes = [8, 64], strides = [1, 1]} : vector<8x192xf32> to vector<8x64xf32>
    %662 = vector.extract_strided_slice %660 {offsets = [0, 0], sizes = [8, 64], strides = [1, 1]} : vector<8x192xf32> to vector<8x64xf32>
    %663 = arith.addf %661, %662 : vector<8x64xf32>
    %664 = arith.negf %663 : vector<8x64xf32>
    %665 = math.exp %664 : vector<8x64xf32>
    %cst_197 = arith.constant 1.000000e+00 : f32
    %666 = vector.broadcast %cst_197 : f32 to vector<8x64xf32>
    %667 = arith.addf %666, %665 : vector<8x64xf32>
    %668 = arith.divf %666, %667 : vector<8x64xf32>
    %669 = vector.extract_strided_slice %657 {offsets = [0, 64], sizes = [8, 64], strides = [1, 1]} : vector<8x192xf32> to vector<8x64xf32>
    %670 = vector.extract_strided_slice %660 {offsets = [0, 64], sizes = [8, 64], strides = [1, 1]} : vector<8x192xf32> to vector<8x64xf32>
    %671 = arith.addf %669, %670 : vector<8x64xf32>
    %672 = arith.negf %671 : vector<8x64xf32>
    %673 = math.exp %672 : vector<8x64xf32>
    %cst_198 = arith.constant 1.000000e+00 : f32
    %674 = vector.broadcast %cst_198 : f32 to vector<8x64xf32>
    %675 = arith.addf %674, %673 : vector<8x64xf32>
    %676 = arith.divf %674, %675 : vector<8x64xf32>
    %677 = vector.extract_strided_slice %657 {offsets = [0, 128], sizes = [8, 64], strides = [1, 1]} : vector<8x192xf32> to vector<8x64xf32>
    %678 = vector.extract_strided_slice %660 {offsets = [0, 128], sizes = [8, 64], strides = [1, 1]} : vector<8x192xf32> to vector<8x64xf32>
    %679 = arith.mulf %668, %678 : vector<8x64xf32>
    %680 = arith.addf %677, %679 : vector<8x64xf32>
    %681 = math.tanh %680 : vector<8x64xf32>
    %cst_199 = arith.constant 1.000000e+00 : f32
    %682 = vector.broadcast %cst_199 : f32 to vector<8x64xf32>
    %683 = arith.subf %682, %676 : vector<8x64xf32>
    %684 = arith.mulf %683, %681 : vector<8x64xf32>
    %685 = arith.mulf %676, %653 : vector<8x64xf32>
    %686 = arith.addf %684, %685 : vector<8x64xf32>
    %c2_i32_200 = arith.constant 2 : i32
    %c8_i32_201 = arith.constant 8 : i32
    %687 = arith.muli %c2_i32_200, %c8_i32_201 : i32
    %688 = tpu.assume_multiple %687, 8 : i32
    %689 = arith.index_cast %688 : i32 to index
    %c0_202 = arith.constant 0 : index
    %690 = vector.load %arg23[%689, %c0_202] : memref<64x192xf32, #tpu.memory_space<vmem>>, vector<8x192xf32>
    %cst_203 = arith.constant dense<0.000000e+00> : vector<8x192xf32>
    %691 = tpu.matmul %686, %18, %cst_203 {dimension_numbers = #tpu.dot_dimension_numbers<[1], [0], [0], [1], [0, 0, 1, 1], [], []>} : vector<8x64xf32>, vector<64x192xf32>, vector<8x192xf32> -> vector<8x192xf32>
    %692 = vector.broadcast %20 : vector<1x192xf32> to vector<8x192xf32>
    %693 = arith.addf %691, %692 : vector<8x192xf32>
    %694 = vector.extract_strided_slice %690 {offsets = [0, 0], sizes = [8, 64], strides = [1, 1]} : vector<8x192xf32> to vector<8x64xf32>
    %695 = vector.extract_strided_slice %693 {offsets = [0, 0], sizes = [8, 64], strides = [1, 1]} : vector<8x192xf32> to vector<8x64xf32>
    %696 = arith.addf %694, %695 : vector<8x64xf32>
    %697 = arith.negf %696 : vector<8x64xf32>
    %698 = math.exp %697 : vector<8x64xf32>
    %cst_204 = arith.constant 1.000000e+00 : f32
    %699 = vector.broadcast %cst_204 : f32 to vector<8x64xf32>
    %700 = arith.addf %699, %698 : vector<8x64xf32>
    %701 = arith.divf %699, %700 : vector<8x64xf32>
    %702 = vector.extract_strided_slice %690 {offsets = [0, 64], sizes = [8, 64], strides = [1, 1]} : vector<8x192xf32> to vector<8x64xf32>
    %703 = vector.extract_strided_slice %693 {offsets = [0, 64], sizes = [8, 64], strides = [1, 1]} : vector<8x192xf32> to vector<8x64xf32>
    %704 = arith.addf %702, %703 : vector<8x64xf32>
    %705 = arith.negf %704 : vector<8x64xf32>
    %706 = math.exp %705 : vector<8x64xf32>
    %cst_205 = arith.constant 1.000000e+00 : f32
    %707 = vector.broadcast %cst_205 : f32 to vector<8x64xf32>
    %708 = arith.addf %707, %706 : vector<8x64xf32>
    %709 = arith.divf %707, %708 : vector<8x64xf32>
    %710 = vector.extract_strided_slice %690 {offsets = [0, 128], sizes = [8, 64], strides = [1, 1]} : vector<8x192xf32> to vector<8x64xf32>
    %711 = vector.extract_strided_slice %693 {offsets = [0, 128], sizes = [8, 64], strides = [1, 1]} : vector<8x192xf32> to vector<8x64xf32>
    %712 = arith.mulf %701, %711 : vector<8x64xf32>
    %713 = arith.addf %710, %712 : vector<8x64xf32>
    %714 = math.tanh %713 : vector<8x64xf32>
    %cst_206 = arith.constant 1.000000e+00 : f32
    %715 = vector.broadcast %cst_206 : f32 to vector<8x64xf32>
    %716 = arith.subf %715, %709 : vector<8x64xf32>
    %717 = arith.mulf %716, %714 : vector<8x64xf32>
    %718 = arith.mulf %709, %686 : vector<8x64xf32>
    %719 = arith.addf %717, %718 : vector<8x64xf32>
    %c3_i32_207 = arith.constant 3 : i32
    %c8_i32_208 = arith.constant 8 : i32
    %720 = arith.muli %c3_i32_207, %c8_i32_208 : i32
    %721 = tpu.assume_multiple %720, 8 : i32
    %722 = arith.index_cast %721 : i32 to index
    %c0_209 = arith.constant 0 : index
    %723 = vector.load %arg23[%722, %c0_209] : memref<64x192xf32, #tpu.memory_space<vmem>>, vector<8x192xf32>
    %cst_210 = arith.constant dense<0.000000e+00> : vector<8x192xf32>
    %724 = tpu.matmul %719, %18, %cst_210 {dimension_numbers = #tpu.dot_dimension_numbers<[1], [0], [0], [1], [0, 0, 1, 1], [], []>} : vector<8x64xf32>, vector<64x192xf32>, vector<8x192xf32> -> vector<8x192xf32>
    %725 = vector.broadcast %20 : vector<1x192xf32> to vector<8x192xf32>
    %726 = arith.addf %724, %725 : vector<8x192xf32>
    %727 = vector.extract_strided_slice %723 {offsets = [0, 0], sizes = [8, 64], strides = [1, 1]} : vector<8x192xf32> to vector<8x64xf32>
    %728 = vector.extract_strided_slice %726 {offsets = [0, 0], sizes = [8, 64], strides = [1, 1]} : vector<8x192xf32> to vector<8x64xf32>
    %729 = arith.addf %727, %728 : vector<8x64xf32>
    %730 = arith.negf %729 : vector<8x64xf32>
    %731 = math.exp %730 : vector<8x64xf32>
    %cst_211 = arith.constant 1.000000e+00 : f32
    %732 = vector.broadcast %cst_211 : f32 to vector<8x64xf32>
    %733 = arith.addf %732, %731 : vector<8x64xf32>
    %734 = arith.divf %732, %733 : vector<8x64xf32>
    %735 = vector.extract_strided_slice %723 {offsets = [0, 64], sizes = [8, 64], strides = [1, 1]} : vector<8x192xf32> to vector<8x64xf32>
    %736 = vector.extract_strided_slice %726 {offsets = [0, 64], sizes = [8, 64], strides = [1, 1]} : vector<8x192xf32> to vector<8x64xf32>
    %737 = arith.addf %735, %736 : vector<8x64xf32>
    %738 = arith.negf %737 : vector<8x64xf32>
    %739 = math.exp %738 : vector<8x64xf32>
    %cst_212 = arith.constant 1.000000e+00 : f32
    %740 = vector.broadcast %cst_212 : f32 to vector<8x64xf32>
    %741 = arith.addf %740, %739 : vector<8x64xf32>
    %742 = arith.divf %740, %741 : vector<8x64xf32>
    %743 = vector.extract_strided_slice %723 {offsets = [0, 128], sizes = [8, 64], strides = [1, 1]} : vector<8x192xf32> to vector<8x64xf32>
    %744 = vector.extract_strided_slice %726 {offsets = [0, 128], sizes = [8, 64], strides = [1, 1]} : vector<8x192xf32> to vector<8x64xf32>
    %745 = arith.mulf %734, %744 : vector<8x64xf32>
    %746 = arith.addf %743, %745 : vector<8x64xf32>
    %747 = math.tanh %746 : vector<8x64xf32>
    %cst_213 = arith.constant 1.000000e+00 : f32
    %748 = vector.broadcast %cst_213 : f32 to vector<8x64xf32>
    %749 = arith.subf %748, %742 : vector<8x64xf32>
    %750 = arith.mulf %749, %747 : vector<8x64xf32>
    %751 = arith.mulf %742, %719 : vector<8x64xf32>
    %752 = arith.addf %750, %751 : vector<8x64xf32>
    %c4_i32_214 = arith.constant 4 : i32
    %c8_i32_215 = arith.constant 8 : i32
    %753 = arith.muli %c4_i32_214, %c8_i32_215 : i32
    %754 = tpu.assume_multiple %753, 8 : i32
    %755 = arith.index_cast %754 : i32 to index
    %c0_216 = arith.constant 0 : index
    %756 = vector.load %arg23[%755, %c0_216] : memref<64x192xf32, #tpu.memory_space<vmem>>, vector<8x192xf32>
    %cst_217 = arith.constant dense<0.000000e+00> : vector<8x192xf32>
    %757 = tpu.matmul %752, %18, %cst_217 {dimension_numbers = #tpu.dot_dimension_numbers<[1], [0], [0], [1], [0, 0, 1, 1], [], []>} : vector<8x64xf32>, vector<64x192xf32>, vector<8x192xf32> -> vector<8x192xf32>
    %758 = vector.broadcast %20 : vector<1x192xf32> to vector<8x192xf32>
    %759 = arith.addf %757, %758 : vector<8x192xf32>
    %760 = vector.extract_strided_slice %756 {offsets = [0, 0], sizes = [8, 64], strides = [1, 1]} : vector<8x192xf32> to vector<8x64xf32>
    %761 = vector.extract_strided_slice %759 {offsets = [0, 0], sizes = [8, 64], strides = [1, 1]} : vector<8x192xf32> to vector<8x64xf32>
    %762 = arith.addf %760, %761 : vector<8x64xf32>
    %763 = arith.negf %762 : vector<8x64xf32>
    %764 = math.exp %763 : vector<8x64xf32>
    %cst_218 = arith.constant 1.000000e+00 : f32
    %765 = vector.broadcast %cst_218 : f32 to vector<8x64xf32>
    %766 = arith.addf %765, %764 : vector<8x64xf32>
    %767 = arith.divf %765, %766 : vector<8x64xf32>
    %768 = vector.extract_strided_slice %756 {offsets = [0, 64], sizes = [8, 64], strides = [1, 1]} : vector<8x192xf32> to vector<8x64xf32>
    %769 = vector.extract_strided_slice %759 {offsets = [0, 64], sizes = [8, 64], strides = [1, 1]} : vector<8x192xf32> to vector<8x64xf32>
    %770 = arith.addf %768, %769 : vector<8x64xf32>
    %771 = arith.negf %770 : vector<8x64xf32>
    %772 = math.exp %771 : vector<8x64xf32>
    %cst_219 = arith.constant 1.000000e+00 : f32
    %773 = vector.broadcast %cst_219 : f32 to vector<8x64xf32>
    %774 = arith.addf %773, %772 : vector<8x64xf32>
    %775 = arith.divf %773, %774 : vector<8x64xf32>
    %776 = vector.extract_strided_slice %756 {offsets = [0, 128], sizes = [8, 64], strides = [1, 1]} : vector<8x192xf32> to vector<8x64xf32>
    %777 = vector.extract_strided_slice %759 {offsets = [0, 128], sizes = [8, 64], strides = [1, 1]} : vector<8x192xf32> to vector<8x64xf32>
    %778 = arith.mulf %767, %777 : vector<8x64xf32>
    %779 = arith.addf %776, %778 : vector<8x64xf32>
    %780 = math.tanh %779 : vector<8x64xf32>
    %cst_220 = arith.constant 1.000000e+00 : f32
    %781 = vector.broadcast %cst_220 : f32 to vector<8x64xf32>
    %782 = arith.subf %781, %775 : vector<8x64xf32>
    %783 = arith.mulf %782, %780 : vector<8x64xf32>
    %784 = arith.mulf %775, %752 : vector<8x64xf32>
    %785 = arith.addf %783, %784 : vector<8x64xf32>
    %c5_i32_221 = arith.constant 5 : i32
    %c8_i32_222 = arith.constant 8 : i32
    %786 = arith.muli %c5_i32_221, %c8_i32_222 : i32
    %787 = tpu.assume_multiple %786, 8 : i32
    %788 = arith.index_cast %787 : i32 to index
    %c0_223 = arith.constant 0 : index
    %789 = vector.load %arg23[%788, %c0_223] : memref<64x192xf32, #tpu.memory_space<vmem>>, vector<8x192xf32>
    %cst_224 = arith.constant dense<0.000000e+00> : vector<8x192xf32>
    %790 = tpu.matmul %785, %18, %cst_224 {dimension_numbers = #tpu.dot_dimension_numbers<[1], [0], [0], [1], [0, 0, 1, 1], [], []>} : vector<8x64xf32>, vector<64x192xf32>, vector<8x192xf32> -> vector<8x192xf32>
    %791 = vector.broadcast %20 : vector<1x192xf32> to vector<8x192xf32>
    %792 = arith.addf %790, %791 : vector<8x192xf32>
    %793 = vector.extract_strided_slice %789 {offsets = [0, 0], sizes = [8, 64], strides = [1, 1]} : vector<8x192xf32> to vector<8x64xf32>
    %794 = vector.extract_strided_slice %792 {offsets = [0, 0], sizes = [8, 64], strides = [1, 1]} : vector<8x192xf32> to vector<8x64xf32>
    %795 = arith.addf %793, %794 : vector<8x64xf32>
    %796 = arith.negf %795 : vector<8x64xf32>
    %797 = math.exp %796 : vector<8x64xf32>
    %cst_225 = arith.constant 1.000000e+00 : f32
    %798 = vector.broadcast %cst_225 : f32 to vector<8x64xf32>
    %799 = arith.addf %798, %797 : vector<8x64xf32>
    %800 = arith.divf %798, %799 : vector<8x64xf32>
    %801 = vector.extract_strided_slice %789 {offsets = [0, 64], sizes = [8, 64], strides = [1, 1]} : vector<8x192xf32> to vector<8x64xf32>
    %802 = vector.extract_strided_slice %792 {offsets = [0, 64], sizes = [8, 64], strides = [1, 1]} : vector<8x192xf32> to vector<8x64xf32>
    %803 = arith.addf %801, %802 : vector<8x64xf32>
    %804 = arith.negf %803 : vector<8x64xf32>
    %805 = math.exp %804 : vector<8x64xf32>
    %cst_226 = arith.constant 1.000000e+00 : f32
    %806 = vector.broadcast %cst_226 : f32 to vector<8x64xf32>
    %807 = arith.addf %806, %805 : vector<8x64xf32>
    %808 = arith.divf %806, %807 : vector<8x64xf32>
    %809 = vector.extract_strided_slice %789 {offsets = [0, 128], sizes = [8, 64], strides = [1, 1]} : vector<8x192xf32> to vector<8x64xf32>
    %810 = vector.extract_strided_slice %792 {offsets = [0, 128], sizes = [8, 64], strides = [1, 1]} : vector<8x192xf32> to vector<8x64xf32>
    %811 = arith.mulf %800, %810 : vector<8x64xf32>
    %812 = arith.addf %809, %811 : vector<8x64xf32>
    %813 = math.tanh %812 : vector<8x64xf32>
    %cst_227 = arith.constant 1.000000e+00 : f32
    %814 = vector.broadcast %cst_227 : f32 to vector<8x64xf32>
    %815 = arith.subf %814, %808 : vector<8x64xf32>
    %816 = arith.mulf %815, %813 : vector<8x64xf32>
    %817 = arith.mulf %808, %785 : vector<8x64xf32>
    %818 = arith.addf %816, %817 : vector<8x64xf32>
    %c6_i32_228 = arith.constant 6 : i32
    %c8_i32_229 = arith.constant 8 : i32
    %819 = arith.muli %c6_i32_228, %c8_i32_229 : i32
    %820 = tpu.assume_multiple %819, 8 : i32
    %821 = arith.index_cast %820 : i32 to index
    %c0_230 = arith.constant 0 : index
    %822 = vector.load %arg23[%821, %c0_230] : memref<64x192xf32, #tpu.memory_space<vmem>>, vector<8x192xf32>
    %cst_231 = arith.constant dense<0.000000e+00> : vector<8x192xf32>
    %823 = tpu.matmul %818, %18, %cst_231 {dimension_numbers = #tpu.dot_dimension_numbers<[1], [0], [0], [1], [0, 0, 1, 1], [], []>} : vector<8x64xf32>, vector<64x192xf32>, vector<8x192xf32> -> vector<8x192xf32>
    %824 = vector.broadcast %20 : vector<1x192xf32> to vector<8x192xf32>
    %825 = arith.addf %823, %824 : vector<8x192xf32>
    %826 = vector.extract_strided_slice %822 {offsets = [0, 0], sizes = [8, 64], strides = [1, 1]} : vector<8x192xf32> to vector<8x64xf32>
    %827 = vector.extract_strided_slice %825 {offsets = [0, 0], sizes = [8, 64], strides = [1, 1]} : vector<8x192xf32> to vector<8x64xf32>
    %828 = arith.addf %826, %827 : vector<8x64xf32>
    %829 = arith.negf %828 : vector<8x64xf32>
    %830 = math.exp %829 : vector<8x64xf32>
    %cst_232 = arith.constant 1.000000e+00 : f32
    %831 = vector.broadcast %cst_232 : f32 to vector<8x64xf32>
    %832 = arith.addf %831, %830 : vector<8x64xf32>
    %833 = arith.divf %831, %832 : vector<8x64xf32>
    %834 = vector.extract_strided_slice %822 {offsets = [0, 64], sizes = [8, 64], strides = [1, 1]} : vector<8x192xf32> to vector<8x64xf32>
    %835 = vector.extract_strided_slice %825 {offsets = [0, 64], sizes = [8, 64], strides = [1, 1]} : vector<8x192xf32> to vector<8x64xf32>
    %836 = arith.addf %834, %835 : vector<8x64xf32>
    %837 = arith.negf %836 : vector<8x64xf32>
    %838 = math.exp %837 : vector<8x64xf32>
    %cst_233 = arith.constant 1.000000e+00 : f32
    %839 = vector.broadcast %cst_233 : f32 to vector<8x64xf32>
    %840 = arith.addf %839, %838 : vector<8x64xf32>
    %841 = arith.divf %839, %840 : vector<8x64xf32>
    %842 = vector.extract_strided_slice %822 {offsets = [0, 128], sizes = [8, 64], strides = [1, 1]} : vector<8x192xf32> to vector<8x64xf32>
    %843 = vector.extract_strided_slice %825 {offsets = [0, 128], sizes = [8, 64], strides = [1, 1]} : vector<8x192xf32> to vector<8x64xf32>
    %844 = arith.mulf %833, %843 : vector<8x64xf32>
    %845 = arith.addf %842, %844 : vector<8x64xf32>
    %846 = math.tanh %845 : vector<8x64xf32>
    %cst_234 = arith.constant 1.000000e+00 : f32
    %847 = vector.broadcast %cst_234 : f32 to vector<8x64xf32>
    %848 = arith.subf %847, %841 : vector<8x64xf32>
    %849 = arith.mulf %848, %846 : vector<8x64xf32>
    %850 = arith.mulf %841, %818 : vector<8x64xf32>
    %851 = arith.addf %849, %850 : vector<8x64xf32>
    %c7_i32_235 = arith.constant 7 : i32
    %c8_i32_236 = arith.constant 8 : i32
    %852 = arith.muli %c7_i32_235, %c8_i32_236 : i32
    %853 = tpu.assume_multiple %852, 8 : i32
    %854 = arith.index_cast %853 : i32 to index
    %c0_237 = arith.constant 0 : index
    %855 = vector.load %arg23[%854, %c0_237] : memref<64x192xf32, #tpu.memory_space<vmem>>, vector<8x192xf32>
    %cst_238 = arith.constant dense<0.000000e+00> : vector<8x192xf32>
    %856 = tpu.matmul %851, %18, %cst_238 {dimension_numbers = #tpu.dot_dimension_numbers<[1], [0], [0], [1], [0, 0, 1, 1], [], []>} : vector<8x64xf32>, vector<64x192xf32>, vector<8x192xf32> -> vector<8x192xf32>
    %857 = vector.broadcast %20 : vector<1x192xf32> to vector<8x192xf32>
    %858 = arith.addf %856, %857 : vector<8x192xf32>
    %859 = vector.extract_strided_slice %855 {offsets = [0, 0], sizes = [8, 64], strides = [1, 1]} : vector<8x192xf32> to vector<8x64xf32>
    %860 = vector.extract_strided_slice %858 {offsets = [0, 0], sizes = [8, 64], strides = [1, 1]} : vector<8x192xf32> to vector<8x64xf32>
    %861 = arith.addf %859, %860 : vector<8x64xf32>
    %862 = arith.negf %861 : vector<8x64xf32>
    %863 = math.exp %862 : vector<8x64xf32>
    %cst_239 = arith.constant 1.000000e+00 : f32
    %864 = vector.broadcast %cst_239 : f32 to vector<8x64xf32>
    %865 = arith.addf %864, %863 : vector<8x64xf32>
    %866 = arith.divf %864, %865 : vector<8x64xf32>
    %867 = vector.extract_strided_slice %855 {offsets = [0, 64], sizes = [8, 64], strides = [1, 1]} : vector<8x192xf32> to vector<8x64xf32>
    %868 = vector.extract_strided_slice %858 {offsets = [0, 64], sizes = [8, 64], strides = [1, 1]} : vector<8x192xf32> to vector<8x64xf32>
    %869 = arith.addf %867, %868 : vector<8x64xf32>
    %870 = arith.negf %869 : vector<8x64xf32>
    %871 = math.exp %870 : vector<8x64xf32>
    %cst_240 = arith.constant 1.000000e+00 : f32
    %872 = vector.broadcast %cst_240 : f32 to vector<8x64xf32>
    %873 = arith.addf %872, %871 : vector<8x64xf32>
    %874 = arith.divf %872, %873 : vector<8x64xf32>
    %875 = vector.extract_strided_slice %855 {offsets = [0, 128], sizes = [8, 64], strides = [1, 1]} : vector<8x192xf32> to vector<8x64xf32>
    %876 = vector.extract_strided_slice %858 {offsets = [0, 128], sizes = [8, 64], strides = [1, 1]} : vector<8x192xf32> to vector<8x64xf32>
    %877 = arith.mulf %866, %876 : vector<8x64xf32>
    %878 = arith.addf %875, %877 : vector<8x64xf32>
    %879 = math.tanh %878 : vector<8x64xf32>
    %cst_241 = arith.constant 1.000000e+00 : f32
    %880 = vector.broadcast %cst_241 : f32 to vector<8x64xf32>
    %881 = arith.subf %880, %874 : vector<8x64xf32>
    %882 = arith.mulf %881, %879 : vector<8x64xf32>
    %883 = arith.mulf %874, %851 : vector<8x64xf32>
    %884 = arith.addf %882, %883 : vector<8x64xf32>
    %c8_i32_242 = arith.constant 8 : i32
    %c0_243 = arith.constant 0 : index
    %c0_244 = arith.constant 0 : index
    %885 = vector.load %arg9[%c0_243, %c0_244] : memref<64x32xf32, #tpu.memory_space<vmem>>, vector<64x32xf32>
    %cst_245 = arith.constant dense<0.000000e+00> : vector<8x32xf32>
    %886 = tpu.matmul %884, %885, %cst_245 {dimension_numbers = #tpu.dot_dimension_numbers<[1], [0], [0], [1], [0, 0, 1, 1], [], []>} : vector<8x64xf32>, vector<64x32xf32>, vector<8x32xf32> -> vector<8x32xf32>
    %c0_246 = arith.constant 0 : index
    %c0_247 = arith.constant 0 : index
    %887 = vector.load %arg10[%c0_246, %c0_247] : memref<1x32xf32, #tpu.memory_space<vmem>>, vector<1x32xf32>
    %888 = vector.broadcast %887 : vector<1x32xf32> to vector<8x32xf32>
    %889 = arith.addf %886, %888 : vector<8x32xf32>
    %c0_248 = arith.constant 0 : index
    %c0_249 = arith.constant 0 : index
    %890 = vector.load %arg18[%c0_248, %c0_249] : memref<8x32xf32, #tpu.memory_space<vmem>>, vector<8x32xf32>
    tpu.vector_store %arg18[%c0_248, %c0_249], %889 {strides = array<i32>} : memref<8x32xf32, #tpu.memory_space<vmem>>, vector<8x32xf32>,
    return
  }
}

</mosaic_0001>

<llo_original>
// kernel: paraphrase_generator_forward.1
$region0: #{paraphrase_generator_forward.1}
  #allocation0 [shape = 'u32[]', space=smem, size = 0x4, offset = 0x4, fixed_abs, tag = 'smem constant byte address 0x4 - core index']
  #allocation1 [shape = 'u32[72,128]{1,0:T(1,128)}', space=vmem, size = 0x9000, scoped, tag = 'internal scratch']
  #allocation2 [shape = 'f32[128,192]{1,0:T(8,128)}', space=vmem, size = 0x20000, scoped, tag = 'scratch operand']
  #allocation3 [shape = 'f32[64,256]{1,0:T(8,128)}', space=vmem, size = 0x10000, scoped, tag = 'scratch operand']
  #allocation4 [shape = 'f32[64,64]{1,0:T(8,128)}', space=vmem, size = 0x8000, scoped, tag = 'scratch operand']
  #allocation5 [shape = 'f32[64,192]{1,0:T(8,128)}', space=vmem, size = 0x10000, scoped, tag = 'scratch operand']
  %s0 = inlined_call_operand.vmem [shape: f32[128,64], index: 0, kind: input, shape index: {}]
  %s1 = inlined_call_operand.vmem [shape: f32[56,32], index: 1, kind: input, shape index: {}]
  %s2 = inlined_call_operand.vmem [shape: f32[1,64], index: 2, kind: input, shape index: {}]
  %s3 = inlined_call_operand.vmem [shape: f32[64,32], index: 3, kind: input, shape index: {}]
  %s4 = inlined_call_operand.vmem [shape: f32[1,32], index: 4, kind: input, shape index: {}]
  %s5 = inlined_call_operand.vmem [shape: f32[32,192], index: 5, kind: input, shape index: {}]
  %s6 = inlined_call_operand.vmem [shape: f32[64,192], index: 6, kind: input, shape index: {}]
  %s7 = inlined_call_operand.vmem [shape: f32[1,192], index: 7, kind: input, shape index: {}]
  %s8 = inlined_call_operand.vmem [shape: f32[1,192], index: 8, kind: input, shape index: {}]
  %s9 = inlined_call_operand.vmem [shape: f32[64,32], index: 9, kind: input, shape index: {}]
  %s10 = inlined_call_operand.vmem [shape: f32[1,32], index: 10, kind: input, shape index: {}]
  %s11 = inlined_call_operand.vmem [shape: f32[128,64], index: 11, kind: input, shape index: {}]
  %s12 = inlined_call_operand.vmem [shape: f32[32,256], index: 12, kind: input, shape index: {}]
  %s13 = inlined_call_operand.vmem [shape: f32[64,256], index: 13, kind: input, shape index: {}]
  %s14 = inlined_call_operand.vmem [shape: f32[1,256], index: 14, kind: input, shape index: {}]
  %s15 = inlined_call_operand.vmem [shape: f32[64,128], index: 15, kind: input, shape index: {}]
  %s16 = inlined_call_operand.vmem [shape: f32[1,128], index: 16, kind: input, shape index: {}]
  %s17 = inlined_call_operand.hbm [shape: f32[64,128], index: 17, kind: output, shape index: {0}]
  %s18 = inlined_call_operand.hbm [shape: f32[8,32], index: 18, kind: output, shape index: {1}]
  %s19 = inlined_call_operand.hbm [shape: f32[8,32], index: 19, kind: output, shape index: {2}]
  %20 = xla_tuple %s17, %s18, %s19
  %s21 = sld [smem:[#allocation0]]
  $region94: #{paraphrase_generator_forward.1} parent=0
    _
  %s23 = ssub.s32 1, %s21
  %s24 = scalar_select 0, %s23, %s21
  $region1: #{paraphrase_generator_forward.1} parent=0
    #allocation6 [shape = 'u8[32768]{0}', space=vmem, size = 0x8000, scoped, tag = 'output window, operand 0, single buffered']
    #allocation7 [shape = 's32[1]{0}', space=sflag, size = 0x4, scoped, tag = 'scoped memory for paraphrase_generator_forward.1']
    #allocation8 [shape = 'u8[4096]{0}', space=vmem, size = 0x1000, scoped, tag = 'output window, operand 1, single buffered']
    #allocation9 [shape = 's32[1]{0}', space=sflag, size = 0x4, scoped, tag = 'scoped memory for paraphrase_generator_forward.1']
    #allocation10 [shape = 'u8[4096]{0}', space=vmem, size = 0x1000, scoped, tag = 'output window, operand 2, single buffered']
    %25 = vsyncpa [#allocation7], 0
    %26 = vsyncpa [#allocation9], 0
    // Predicated region
    $region2: #{paraphrase_generator_forward.1} parent=1 // pred_check
      _
    $region3: #{paraphrase_generator_forward.1} parent=1 // pred_check_branch
      %28 = sbr.rel (0) target = $region5
    $region4: #{paraphrase_generator_forward.1} parent=1 // pred_region
      _
    $region5: #{paraphrase_generator_forward.1} parent=1 // pred_fallthru
      _
    // Predicated region
    $region6: #{paraphrase_generator_forward.1} parent=1 // pred_check
      _
    $region7: #{paraphrase_generator_forward.1} parent=1 // pred_check_branch
      %30 = sbr.rel (0) target = $region9
    $region8: #{paraphrase_generator_forward.1} parent=1 // pred_region
      _
    $region9: #{paraphrase_generator_forward.1} parent=1 // pred_fallthru
      _
    // Predicated region
    $region10: #{paraphrase_generator_forward.1} parent=1 // pred_check
      _
    $region11: #{paraphrase_generator_forward.1} parent=1 // pred_check_branch
      %32 = sbr.rel (0) target = $region13
    $region12: #{paraphrase_generator_forward.1} parent=1 // pred_region
      _
    $region13: #{paraphrase_generator_forward.1} parent=1 // pred_fallthru
      _
    // Predicated region
    $region14: #{paraphrase_generator_forward.1} parent=1 // pred_check
      _
    $region15: #{paraphrase_generator_forward.1} parent=1 // pred_check_branch
      %34 = sbr.rel (0) target = $region17
    $region16: #{paraphrase_generator_forward.1} parent=1 // pred_region
      _
    $region17: #{paraphrase_generator_forward.1} parent=1 // pred_fallthru
      _
    // Predicated region
    $region18: #{paraphrase_generator_forward.1} parent=1 // pred_check
      _
    $region19: #{paraphrase_generator_forward.1} parent=1 // pred_check_branch
      %36 = sbr.rel (0) target = $region21
    $region20: #{paraphrase_generator_forward.1} parent=1 // pred_region
      _
    $region21: #{paraphrase_generator_forward.1} parent=1 // pred_fallthru
      _
    // Predicated region
    $region22: #{paraphrase_generator_forward.1} parent=1 // pred_check
      _
    $region23: #{paraphrase_generator_forward.1} parent=1 // pred_check_branch
      %38 = sbr.rel (0) target = $region25
    $region24: #{paraphrase_generator_forward.1} parent=1 // pred_region
      _
    $region25: #{paraphrase_generator_forward.1} parent=1 // pred_fallthru
      _
    // Predicated region
    $region26: #{paraphrase_generator_forward.1} parent=1 // pred_check
      _
    $region27: #{paraphrase_generator_forward.1} parent=1 // pred_check_branch
      %40 = sbr.rel (0) target = $region29
    $region28: #{paraphrase_generator_forward.1} parent=1 // pred_region
      _
    $region29: #{paraphrase_generator_forward.1} parent=1 // pred_fallthru
      _
    // Predicated region
    $region30: #{paraphrase_generator_forward.1} parent=1 // pred_check
      _
    $region31: #{paraphrase_generator_forward.1} parent=1 // pred_check_branch
      %42 = sbr.rel (0) target = $region33
    $region32: #{paraphrase_generator_forward.1} parent=1 // pred_region
      _
    $region33: #{paraphrase_generator_forward.1} parent=1 // pred_fallthru
      _
    // Predicated region
    $region34: #{paraphrase_generator_forward.1} parent=1 // pred_check
      _
    $region35: #{paraphrase_generator_forward.1} parent=1 // pred_check_branch
      %44 = sbr.rel (0) target = $region37
    $region36: #{paraphrase_generator_forward.1} parent=1 // pred_region
      _
    $region37: #{paraphrase_generator_forward.1} parent=1 // pred_fallthru
      _
    // Predicated region
    $region38: #{paraphrase_generator_forward.1} parent=1 // pred_check
      _
    $region39: #{paraphrase_generator_forward.1} parent=1 // pred_check_branch
      %46 = sbr.rel (0) target = $region41
    $region40: #{paraphrase_generator_forward.1} parent=1 // pred_region
      _
    $region41: #{paraphrase_generator_forward.1} parent=1 // pred_fallthru
      _
    // Predicated region
    $region42: #{paraphrase_generator_forward.1} parent=1 // pred_check
      _
    $region43: #{paraphrase_generator_forward.1} parent=1 // pred_check_branch
      %48 = sbr.rel (0) target = $region45
    $region44: #{paraphrase_generator_forward.1} parent=1 // pred_region
      _
    $region45: #{paraphrase_generator_forward.1} parent=1 // pred_fallthru
      _
    // Predicated region
    $region46: #{paraphrase_generator_forward.1} parent=1 // pred_check
      _
    $region47: #{paraphrase_generator_forward.1} parent=1 // pred_check_branch
      %50 = sbr.rel (0) target = $region49
    $region48: #{paraphrase_generator_forward.1} parent=1 // pred_region
      _
    $region49: #{paraphrase_generator_forward.1} parent=1 // pred_fallthru
      _
    // Predicated region
    $region50: #{paraphrase_generator_forward.1} parent=1 // pred_check
      _
    $region51: #{paraphrase_generator_forward.1} parent=1 // pred_check_branch
      %52 = sbr.rel (0) target = $region53
    $region52: #{paraphrase_generator_forward.1} parent=1 // pred_region
      _
    $region53: #{paraphrase_generator_forward.1} parent=1 // pred_fallthru
      _
    // Predicated region
    $region54: #{paraphrase_generator_forward.1} parent=1 // pred_check
      _
    $region55: #{paraphrase_generator_forward.1} parent=1 // pred_check_branch
      %54 = sbr.rel (0) target = $region57
    $region56: #{paraphrase_generator_forward.1} parent=1 // pred_region
      _
    $region57: #{paraphrase_generator_forward.1} parent=1 // pred_fallthru
      _
    // Predicated region
    $region58: #{paraphrase_generator_forward.1} parent=1 // pred_check
      _
    $region59: #{paraphrase_generator_forward.1} parent=1 // pred_check_branch
      %56 = sbr.rel (0) target = $region61
    $region60: #{paraphrase_generator_forward.1} parent=1 // pred_region
      _
    $region61: #{paraphrase_generator_forward.1} parent=1 // pred_fallthru
      _
    // Predicated region
    $region62: #{paraphrase_generator_forward.1} parent=1 // pred_check
      _
    $region63: #{paraphrase_generator_forward.1} parent=1 // pred_check_branch
      %58 = sbr.rel (0) target = $region65
    $region64: #{paraphrase_generator_forward.1} parent=1 // pred_region
      _
    $region65: #{paraphrase_generator_forward.1} parent=1 // pred_fallthru
      _
    // Predicated region
    $region66: #{paraphrase_generator_forward.1} parent=1 // pred_check
      _
    $region67: #{paraphrase_generator_forward.1} parent=1 // pred_check_branch
      %60 = sbr.rel (0) target = $region69
    $region68: #{paraphrase_generator_forward.1} parent=1 // pred_region
      _
    $region69: #{paraphrase_generator_forward.1} parent=1 // pred_fallthru
      _
    %v61 = vld [vmem:[%s0] sm:$0xff]
    %v62 = vld [vmem:[%s0 + $0x8] sm:$0xff]
    %v63 = vld [vmem:[%s0 + $0x10] sm:$0xff]
    %v64 = vld [vmem:[%s0 + $0x18] sm:$0xff]
    %v65 = vld [vmem:[%s0 + $0x20] sm:$0xff]
    %v66 = vld [vmem:[%s0 + $0x28] sm:$0xff]
    %v67 = vld [vmem:[%s0 + $0x30] sm:$0xff]
    %v68 = vld [vmem:[%s0 + $0x38] sm:$0xff]
    %v69 = vld [vmem:[%s0 + $0x40] sm:$0xff]
    %v70 = vld [vmem:[%s0 + $0x48] sm:$0xff]
    %v71 = vld [vmem:[%s0 + $0x50] sm:$0xff]
    %v72 = vld [vmem:[%s0 + $0x58] sm:$0xff]
    %v73 = vld [vmem:[%s0 + $0x60] sm:$0xff]
    %v74 = vld [vmem:[%s0 + $0x68] sm:$0xff]
    %v75 = vld [vmem:[%s0 + $0x70] sm:$0xff]
    %v76 = vld [vmem:[%s0 + $0x78] sm:$0xff]
    %v77 = vld [vmem:[%s2] sm:$0x1]
    %v79 = vperm.slane %v77, 0
    %v81 = vadd.f32 %v61, %v79
    %v82 = vadd.f32 %v62, %v79
    %v83 = vadd.f32 %v63, %v79
    %v84 = vadd.f32 %v64, %v79
    %v85 = vadd.f32 %v65, %v79
    %v86 = vadd.f32 %v66, %v79
    %v87 = vadd.f32 %v67, %v79
    %v88 = vadd.f32 %v68, %v79
    %v89 = vadd.f32 %v69, %v79
    %v90 = vadd.f32 %v70, %v79
    %v91 = vadd.f32 %v71, %v79
    %v92 = vadd.f32 %v72, %v79
    %v93 = vadd.f32 %v73, %v79
    %v94 = vadd.f32 %v74, %v79
    %v95 = vadd.f32 %v75, %v79
    %v96 = vadd.f32 %v76, %v79
    %vm97 = vcmp.gt.f32.partialorder %v81, 1e-06
    %vm98 = vcmp.gt.f32.partialorder %v82, 1e-06
    %vm99 = vcmp.gt.f32.partialorder %v83, 1e-06
    %vm100 = vcmp.gt.f32.partialorder %v84, 1e-06
    %vm101 = vcmp.gt.f32.partialorder %v85, 1e-06
    %vm102 = vcmp.gt.f32.partialorder %v86, 1e-06
    %vm103 = vcmp.gt.f32.partialorder %v87, 1e-06
    %vm104 = vcmp.gt.f32.partialorder %v88, 1e-06
    %vm105 = vcmp.gt.f32.partialorder %v89, 1e-06
    %vm106 = vcmp.gt.f32.partialorder %v90, 1e-06
    %vm107 = vcmp.gt.f32.partialorder %v91, 1e-06
    %vm108 = vcmp.gt.f32.partialorder %v92, 1e-06
    %vm109 = vcmp.gt.f32.partialorder %v93, 1e-06
    %vm110 = vcmp.gt.f32.partialorder %v94, 1e-06
    %vm111 = vcmp.gt.f32.partialorder %v95, 1e-06
    %vm112 = vcmp.gt.f32.partialorder %v96, 1e-06
    %v113 = vsel %vm97, %v81, 0.0
    %v114 = vsel %vm98, %v82, 0.0
    %v115 = vsel %vm99, %v83, 0.0
    %v116 = vsel %vm100, %v84, 0.0
    %v117 = vsel %vm101, %v85, 0.0
    %v118 = vsel %vm102, %v86, 0.0
    %v119 = vsel %vm103, %v87, 0.0
    %v120 = vsel %vm104, %v88, 0.0
    %v121 = vsel %vm105, %v89, 0.0
    %v122 = vsel %vm106, %v90, 0.0
    %v123 = vsel %vm107, %v91, 0.0
    %v124 = vsel %vm108, %v92, 0.0
    %v125 = vsel %vm109, %v93, 0.0
    %v126 = vsel %vm110, %v94, 0.0
    %v127 = vsel %vm111, %v95, 0.0
    %v128 = vsel %vm112, %v96, 0.0
    %v129 = vld [vmem:[%s3] sm:$0xff]
    %v130 = vld [vmem:[%s3 + $0x8] sm:$0xff]
    %v131 = vld [vmem:[%s3 + $0x10] sm:$0xff]
    %v132 = vld [vmem:[%s3 + $0x18] sm:$0xff]
    %v133 = vld [vmem:[%s3 + $0x20] sm:$0xff]
    %v134 = vld [vmem:[%s3 + $0x28] sm:$0xff]
    %v135 = vld [vmem:[%s3 + $0x30] sm:$0xff]
    %v136 = vld [vmem:[%s3 + $0x38] sm:$0xff]
    %v137 = vld [vmem:[%s4] sm:$0x1]
    %v139 = vperm.slane %v137, 0
    %vm141 = vcmask 523264
    %v143 = vsel %vm141, %v113, 0
    %v146 = vsel %vm141, %v114, 0
    %v149 = vsel %vm141, %v115, 0
    %v152 = vsel %vm141, %v116, 0
    %v155 = vsel %vm141, %v117, 0
    %v158 = vsel %vm141, %v118, 0
    %v161 = vsel %vm141, %v119, 0
    %v164 = vsel %vm141, %v120, 0
    %v167 = vsel %vm141, %v121, 0
    %v170 = vsel %vm141, %v122, 0
    %v173 = vsel %vm141, %v123, 0
    %v176 = vsel %vm141, %v124, 0
    %v179 = vsel %vm141, %v125, 0
    %v182 = vsel %vm141, %v126, 0
    %v185 = vsel %vm141, %v127, 0
    %v188 = vsel %vm141, %v128, 0
    %190 = vmatpush.msra.mxu0 0.0
    %191 = vmatpush.msra.mxu0 0.0
    %192 = vmatpush.msra.mxu0 0.0
    %193 = vmatpush.msra.mxu0 0.0
    %194 = vmatpush.msra.mxu0 0.0
    %195 = vmatpush.msra.mxu0 0.0
    %196 = vmatpush.msra.mxu0 0.0
    %197 = vmatpush.msra.mxu0 0.0
    %198 = vmatpush.msra.mxu0 %v136
    %199 = vmatpush.msra.mxu0 %v135
    %200 = vmatpush.msra.mxu0 %v134
    %201 = vmatpush.msra.mxu0 %v133
    %202 = vmatpush.msra.mxu0 %v132
    %203 = vmatpush.msra.mxu0 %v131
    %204 = vmatpush.msra.mxu0 %v130
    %205 = vmatpush.msra.mxu0 %v129
    %206 = vmatmul.f32.gmra.mxu0 %v143
    %v207 = vpop.f32.mrf.mxu0
    %v208 = vadd.f32 %v139, %v207
    %209 = vmatmul.f32.gmra.mxu0 %v146
    %v210 = vpop.f32.mrf.mxu0
    %v211 = vadd.f32 %v139, %v210
    %212 = vmatmul.f32.gmra.mxu0 %v149
    %v213 = vpop.f32.mrf.mxu0
    %v214 = vadd.f32 %v139, %v213
    %215 = vmatmul.f32.gmra.mxu0 %v152
    %v216 = vpop.f32.mrf.mxu0
    %v217 = vadd.f32 %v139, %v216
    %218 = vmatmul.f32.gmra.mxu0 %v155
    %v219 = vpop.f32.mrf.mxu0
    %v220 = vadd.f32 %v139, %v219
    %221 = vmatmul.f32.gmra.mxu0 %v158
    %v222 = vpop.f32.mrf.mxu0
    %v223 = vadd.f32 %v139, %v222
    %224 = vmatmul.f32.gmra.mxu0 %v161
    %v225 = vpop.f32.mrf.mxu0
    %v226 = vadd.f32 %v139, %v225
    %227 = vmatmul.f32.gmra.mxu0 %v164
    %v228 = vpop.f32.mrf.mxu0
    %v229 = vadd.f32 %v139, %v228
    %230 = vmatmul.f32.gmra.mxu0 %v167
    %v231 = vpop.f32.mrf.mxu0
    %v232 = vadd.f32 %v139, %v231
    %233 = vmatmul.f32.gmra.mxu0 %v170
    %v234 = vpop.f32.mrf.mxu0
    %v235 = vadd.f32 %v139, %v234
    %236 = vmatmul.f32.gmra.mxu0 %v173
    %v237 = vpop.f32.mrf.mxu0
    %v238 = vadd.f32 %v139, %v237
    %239 = vmatmul.f32.gmra.mxu0 %v176
    %v240 = vpop.f32.mrf.mxu0
    %v241 = vadd.f32 %v139, %v240
    %242 = vmatmul.f32.gmra.mxu0 %v179
    %v243 = vpop.f32.mrf.mxu0
    %v244 = vadd.f32 %v139, %v243
    %245 = vmatmul.f32.gmra.mxu0 %v182
    %v246 = vpop.f32.mrf.mxu0
    %v247 = vadd.f32 %v139, %v246
    %248 = vmatmul.f32.gmra.mxu0 %v185
    %v249 = vpop.f32.mrf.mxu0
    %v250 = vadd.f32 %v139, %v249
    %251 = vmatmul.f32.gmra.mxu0 %v188
    %v252 = vpop.f32.mrf.mxu0
    %v253 = vadd.f32 %v139, %v252
    %254 = vdwg.mxu0
    %vm255 = vcmp.gt.f32.partialorder %v208, 1e-06
    %vm256 = vcmp.gt.f32.partialorder %v211, 1e-06
    %vm257 = vcmp.gt.f32.partialorder %v214, 1e-06
    %vm258 = vcmp.gt.f32.partialorder %v217, 1e-06
    %vm259 = vcmp.gt.f32.partialorder %v220, 1e-06
    %vm260 = vcmp.gt.f32.partialorder %v223, 1e-06
    %vm261 = vcmp.gt.f32.partialorder %v226, 1e-06
    %vm262 = vcmp.gt.f32.partialorder %v229, 1e-06
    %vm263 = vcmp.gt.f32.partialorder %v232, 1e-06
    %vm264 = vcmp.gt.f32.partialorder %v235, 1e-06
    %vm265 = vcmp.gt.f32.partialorder %v238, 1e-06
    %vm266 = vcmp.gt.f32.partialorder %v241, 1e-06
    %vm267 = vcmp.gt.f32.partialorder %v244, 1e-06
    %vm268 = vcmp.gt.f32.partialorder %v247, 1e-06
    %vm269 = vcmp.gt.f32.partialorder %v250, 1e-06
    %vm270 = vcmp.gt.f32.partialorder %v253, 1e-06
    %v271 = vsel %vm255, %v208, 0.0
    %v272 = vsel %vm256, %v211, 0.0
    %v273 = vsel %vm257, %v214, 0.0
    %v274 = vsel %vm258, %v217, 0.0
    %v275 = vsel %vm259, %v220, 0.0
    %v276 = vsel %vm260, %v223, 0.0
    %v277 = vsel %vm261, %v226, 0.0
    %v278 = vsel %vm262, %v229, 0.0
    %v279 = vsel %vm263, %v232, 0.0
    %v280 = vsel %vm264, %v235, 0.0
    %v281 = vsel %vm265, %v238, 0.0
    %v282 = vsel %vm266, %v241, 0.0
    %v283 = vsel %vm267, %v244, 0.0
    %v284 = vsel %vm268, %v247, 0.0
    %v285 = vsel %vm269, %v250, 0.0
    %v286 = vsel %vm270, %v253, 0.0
    %v287 = vld [vmem:[%s5] sm:$0xff]
    %v288 = vld [vmem:[%s5 + $0x8] sm:$0xff]
    %v289 = vld [vmem:[%s5 + $0x10] sm:$0xff]
    %v290 = vld [vmem:[%s5 + $0x18] sm:$0xff]
    %v291 = vld [vmem:[%s5 + $0x20] sm:$0xff]
    %v292 = vld [vmem:[%s5 + $0x28] sm:$0xff]
    %v293 = vld [vmem:[%s5 + $0x30] sm:$0xff]
    %v294 = vld [vmem:[%s5 + $0x38] sm:$0xff]
    %v295 = vld [vmem:[%s6] sm:$0xff]
    %v296 = vld [vmem:[%s6 + $0x8] sm:$0xff]
    %v297 = vld [vmem:[%s6 + $0x10] sm:$0xff]
    %v298 = vld [vmem:[%s6 + $0x18] sm:$0xff]
    %v299 = vld [vmem:[%s6 + $0x20] sm:$0xff]
    %v300 = vld [vmem:[%s6 + $0x28] sm:$0xff]
    %v301 = vld [vmem:[%s6 + $0x30] sm:$0xff]
    %v302 = vld [vmem:[%s6 + $0x38] sm:$0xff]
    %v303 = vld [vmem:[%s6 + $0x40] sm:$0xff]
    %v304 = vld [vmem:[%s6 + $0x48] sm:$0xff]
    %v305 = vld [vmem:[%s6 + $0x50] sm:$0xff]
    %v306 = vld [vmem:[%s6 + $0x58] sm:$0xff]
    %v307 = vld [vmem:[%s6 + $0x60] sm:$0xff]
    %v308 = vld [vmem:[%s6 + $0x68] sm:$0xff]
    %v309 = vld [vmem:[%s6 + $0x70] sm:$0xff]
    %v310 = vld [vmem:[%s6 + $0x78] sm:$0xff]
    %v311 = vld [vmem:[%s7] sm:$0x3]
    %v312 = vld [vmem:[%s8] sm:$0x3]
    %v314 = vperm.slane %v311, 0
    %v315 = vperm.slane %v311, 1
    %vm318 = vcmask 261120
    %v320 = vsel %vm318, %v271, 0
    %v323 = vsel %vm318, %v272, 0
    %v326 = vsel %vm318, %v273, 0
    %v329 = vsel %vm318, %v274, 0
    %v332 = vsel %vm318, %v275, 0
    %v335 = vsel %vm318, %v276, 0
    %v338 = vsel %vm318, %v277, 0
    %v341 = vsel %vm318, %v278, 0
    %v344 = vsel %vm318, %v279, 0
    %v347 = vsel %vm318, %v280, 0
    %v350 = vsel %vm318, %v281, 0
    %v353 = vsel %vm318, %v282, 0
    %v356 = vsel %vm318, %v283, 0
    %v359 = vsel %vm318, %v284, 0
    %v362 = vsel %vm318, %v285, 0
    %v365 = vsel %vm318, %v286, 0
    %367 = vmatpush.msra.mxu0 0.0
    %368 = vmatpush.msra.mxu0 0.0
    %369 = vmatpush.msra.mxu0 0.0
    %370 = vmatpush.msra.mxu0 0.0
    %371 = vmatpush.msra.mxu0 0.0
    %372 = vmatpush.msra.mxu0 0.0
    %373 = vmatpush.msra.mxu0 0.0
    %374 = vmatpush.msra.mxu0 0.0
    %375 = vmatpush.msra.mxu0 0.0
    %376 = vmatpush.msra.mxu0 0.0
    %377 = vmatpush.msra.mxu0 0.0
    %378 = vmatpush.msra.mxu0 0.0
    %379 = vmatpush.msra.mxu0 %v293
    %380 = vmatpush.msra.mxu0 %v291
    %381 = vmatpush.msra.mxu0 %v289
    %382 = vmatpush.msra.mxu0 %v287
    %383 = vmatmul.f32.gmra.mxu0 %v320
    %v384 = vpop.f32.mrf.mxu0
    %v385 = vadd.f32 %v314, %v384
    %386 = vmatmul.f32.gmra.mxu0 %v323
    %v387 = vpop.f32.mrf.mxu0
    %v388 = vadd.f32 %v314, %v387
    %389 = vmatmul.f32.gmra.mxu0 %v326
    %v390 = vpop.f32.mrf.mxu0
    %v391 = vadd.f32 %v314, %v390
    %392 = vmatmul.f32.gmra.mxu0 %v329
    %v393 = vpop.f32.mrf.mxu0
    %v394 = vadd.f32 %v314, %v393
    %395 = vmatmul.f32.gmra.mxu0 %v332
    %v396 = vpop.f32.mrf.mxu0
    %v397 = vadd.f32 %v314, %v396
    %398 = vmatmul.f32.gmra.mxu0 %v335
    %v399 = vpop.f32.mrf.mxu0
    %v400 = vadd.f32 %v314, %v399
    %401 = vmatmul.f32.gmra.mxu0 %v338
    %v402 = vpop.f32.mrf.mxu0
    %v403 = vadd.f32 %v314, %v402
    %404 = vmatmul.f32.gmra.mxu0 %v341
    %v405 = vpop.f32.mrf.mxu0
    %v406 = vadd.f32 %v314, %v405
    %407 = vmatmul.f32.gmra.mxu0 %v344
    %v408 = vpop.f32.mrf.mxu0
    %v409 = vadd.f32 %v314, %v408
    %410 = vmatmul.f32.gmra.mxu0 %v347
    %v411 = vpop.f32.mrf.mxu0
    %v412 = vadd.f32 %v314, %v411
    %413 = vmatmul.f32.gmra.mxu0 %v350
    %v414 = vpop.f32.mrf.mxu0
    %v415 = vadd.f32 %v314, %v414
    %416 = vmatmul.f32.gmra.mxu0 %v353
    %v417 = vpop.f32.mrf.mxu0
    %v418 = vadd.f32 %v314, %v417
    %419 = vmatmul.f32.gmra.mxu0 %v356
    %v420 = vpop.f32.mrf.mxu0
    %v421 = vadd.f32 %v314, %v420
    %422 = vmatmul.f32.gmra.mxu0 %v359
    %v423 = vpop.f32.mrf.mxu0
    %v424 = vadd.f32 %v314, %v423
    %425 = vmatmul.f32.gmra.mxu0 %v362
    %v426 = vpop.f32.mrf.mxu0
    %v427 = vadd.f32 %v314, %v426
    %428 = vmatmul.f32.gmra.mxu0 %v365
    %v429 = vpop.f32.mrf.mxu0
    %v430 = vadd.f32 %v314, %v429
    %431 = vdwg.mxu0
    %432 = vmatpush.msra.mxu0 0.0
    %433 = vmatpush.msra.mxu0 0.0
    %434 = vmatpush.msra.mxu0 0.0
    %435 = vmatpush.msra.mxu0 0.0
    %436 = vmatpush.msra.mxu0 0.0
    %437 = vmatpush.msra.mxu0 0.0
    %438 = vmatpush.msra.mxu0 0.0
    %439 = vmatpush.msra.mxu0 0.0
    %440 = vmatpush.msra.mxu0 0.0
    %441 = vmatpush.msra.mxu0 0.0
    %442 = vmatpush.msra.mxu0 0.0
    %443 = vmatpush.msra.mxu0 0.0
    %444 = vmatpush.msra.mxu0 %v294
    %445 = vmatpush.msra.mxu0 %v292
    %446 = vmatpush.msra.mxu0 %v290
    %447 = vmatpush.msra.mxu0 %v288
    %448 = vmatmul.f32.gmra.mxu0 %v320
    %v449 = vpop.f32.mrf.mxu0
    %v450 = vadd.f32 %v315, %v449
    %451 = vmatmul.f32.gmra.mxu0 %v323
    %v452 = vpop.f32.mrf.mxu0
    %v453 = vadd.f32 %v315, %v452
    %454 = vmatmul.f32.gmra.mxu0 %v326
    %v455 = vpop.f32.mrf.mxu0
    %v456 = vadd.f32 %v315, %v455
    %457 = vmatmul.f32.gmra.mxu0 %v329
    %v458 = vpop.f32.mrf.mxu0
    %v459 = vadd.f32 %v315, %v458
    %460 = vmatmul.f32.gmra.mxu0 %v332
    %v461 = vpop.f32.mrf.mxu0
    %v462 = vadd.f32 %v315, %v461
    %463 = vmatmul.f32.gmra.mxu0 %v335
    %v464 = vpop.f32.mrf.mxu0
    %v465 = vadd.f32 %v315, %v464
    %466 = vmatmul.f32.gmra.mxu0 %v338
    %v467 = vpop.f32.mrf.mxu0
    %v468 = vadd.f32 %v315, %v467
    %469 = vmatmul.f32.gmra.mxu0 %v341
    %v470 = vpop.f32.mrf.mxu0
    %v471 = vadd.f32 %v315, %v470
    %472 = vmatmul.f32.gmra.mxu0 %v344
    %v473 = vpop.f32.mrf.mxu0
    %v474 = vadd.f32 %v315, %v473
    %475 = vmatmul.f32.gmra.mxu0 %v347
    %v476 = vpop.f32.mrf.mxu0
    %v477 = vadd.f32 %v315, %v476
    %478 = vmatmul.f32.gmra.mxu0 %v350
    %v479 = vpop.f32.mrf.mxu0
    %v480 = vadd.f32 %v315, %v479
    %481 = vmatmul.f32.gmra.mxu0 %v353
    %v482 = vpop.f32.mrf.mxu0
    %v483 = vadd.f32 %v315, %v482
    %484 = vmatmul.f32.gmra.mxu0 %v356
    %v485 = vpop.f32.mrf.mxu0
    %v486 = vadd.f32 %v315, %v485
    %487 = vmatmul.f32.gmra.mxu0 %v359
    %v488 = vpop.f32.mrf.mxu0
    %v489 = vadd.f32 %v315, %v488
    %490 = vmatmul.f32.gmra.mxu0 %v362
    %v491 = vpop.f32.mrf.mxu0
    %v492 = vadd.f32 %v315, %v491
    %493 = vmatmul.f32.gmra.mxu0 %v365
    %v494 = vpop.f32.mrf.mxu0
    %v495 = vadd.f32 %v315, %v494
    %496 = vdwg.mxu0
    %497 = vst [vmem:[#allocation2] sm:$0xff] %v385
    %498 = vst.msk [vmem:[#allocation2 + $0x8] sm:$0xff] %vm141, %v450
    %499 = vst [vmem:[#allocation2 + $0x10] sm:$0xff] %v388
    %500 = vst.msk [vmem:[#allocation2 + $0x18] sm:$0xff] %vm141, %v453
    %501 = vst [vmem:[#allocation2 + $0x20] sm:$0xff] %v391
    %502 = vst.msk [vmem:[#allocation2 + $0x28] sm:$0xff] %vm141, %v456
    %503 = vst [vmem:[#allocation2 + $0x30] sm:$0xff] %v394
    %504 = vst.msk [vmem:[#allocation2 + $0x38] sm:$0xff] %vm141, %v459
    %505 = vst [vmem:[#allocation2 + $0x40] sm:$0xff] %v397
    %506 = vst.msk [vmem:[#allocation2 + $0x48] sm:$0xff] %vm141, %v462
    %507 = vst [vmem:[#allocation2 + $0x50] sm:$0xff] %v400
    %508 = vst.msk [vmem:[#allocation2 + $0x58] sm:$0xff] %vm141, %v465
    %509 = vst [vmem:[#allocation2 + $0x60] sm:$0xff] %v403
    %510 = vst.msk [vmem:[#allocation2 + $0x68] sm:$0xff] %vm141, %v468
    %511 = vst [vmem:[#allocation2 + $0x70] sm:$0xff] %v406
    %512 = vst.msk [vmem:[#allocation2 + $0x78] sm:$0xff] %vm141, %v471
    %513 = vst [vmem:[#allocation2 + $0x80] sm:$0xff] %v409
    %514 = vst.msk [vmem:[#allocation2 + $0x88] sm:$0xff] %vm141, %v474
    %515 = vst [vmem:[#allocation2 + $0x90] sm:$0xff] %v412
    %516 = vst.msk [vmem:[#allocation2 + $0x98] sm:$0xff] %vm141, %v477
    %517 = vst [vmem:[#allocation2 + $0xa0] sm:$0xff] %v415
    %518 = vst.msk [vmem:[#allocation2 + $0xa8] sm:$0xff] %vm141, %v480
    %519 = vst [vmem:[#allocation2 + $0xb0] sm:$0xff] %v418
    %520 = vst.msk [vmem:[#allocation2 + $0xb8] sm:$0xff] %vm141, %v483
    %521 = vst [vmem:[#allocation2 + $0xc0] sm:$0xff] %v421
    %522 = vst.msk [vmem:[#allocation2 + $0xc8] sm:$0xff] %vm141, %v486
    %523 = vst [vmem:[#allocation2 + $0xd0] sm:$0xff] %v424
    %524 = vst.msk [vmem:[#allocation2 + $0xd8] sm:$0xff] %vm141, %v489
    %525 = vst [vmem:[#allocation2 + $0xe0] sm:$0xff] %v427
    %526 = vst.msk [vmem:[#allocation2 + $0xe8] sm:$0xff] %vm141, %v492
    %527 = vst [vmem:[#allocation2 + $0xf0] sm:$0xff] %v430
    %528 = vst.msk [vmem:[#allocation2 + $0xf8] sm:$0xff] %vm141, %v495
    %s529 = smul.u32 0, 2
    %s530 = smul.addr %s529, 8
    %s531 = scalar_lea.vmem [#allocation2], %s530
    %v532 = vld [vmem:[%s531] sm:$0xff]
    %v533 = vld [vmem:[%s531 + $0x8] sm:$0xff]
    %v534 = vld [vmem:[%s531 + $0x10] sm:$0xff]
    %v535 = vld [vmem:[%s531 + $0x18] sm:$0xff]
    %v537 = vperm.slane %v312, 0
    %v538 = vperm.slane %v312, 1
    %v542 = vsel %vm141, 0.0, 0
    %544 = vmatpush.msra.mxu0 0.0
    %545 = vmatpush.msra.mxu0 0.0
    %546 = vmatpush.msra.mxu0 0.0
    %547 = vmatpush.msra.mxu0 0.0
    %548 = vmatpush.msra.mxu0 0.0
    %549 = vmatpush.msra.mxu0 0.0
    %550 = vmatpush.msra.mxu0 0.0
    %551 = vmatpush.msra.mxu0 0.0
    %552 = vmatpush.msra.mxu0 %v309
    %553 = vmatpush.msra.mxu0 %v307
    %554 = vmatpush.msra.mxu0 %v305
    %555 = vmatpush.msra.mxu0 %v303
    %556 = vmatpush.msra.mxu0 %v301
    %557 = vmatpush.msra.mxu0 %v299
    %558 = vmatpush.msra.mxu0 %v297
    %559 = vmatpush.msra.mxu0 %v295
    %560 = vmatmul.f32.gmra.mxu0 %v542
    %v561 = vpop.f32.mrf.mxu0
    %v562 = vadd.f32 %v537, %v561
    %563 = vmatmul.f32.gmra.mxu0 %v542
    %v564 = vpop.f32.mrf.mxu0
    %v565 = vadd.f32 %v537, %v564
    %566 = vdwg.mxu0
    %567 = vmatpush.msra.mxu0 0.0
    %568 = vmatpush.msra.mxu0 0.0
    %569 = vmatpush.msra.mxu0 0.0
    %570 = vmatpush.msra.mxu0 0.0
    %571 = vmatpush.msra.mxu0 0.0
    %572 = vmatpush.msra.mxu0 0.0
    %573 = vmatpush.msra.mxu0 0.0
    %574 = vmatpush.msra.mxu0 0.0
    %575 = vmatpush.msra.mxu0 %v310
    %576 = vmatpush.msra.mxu0 %v308
    %577 = vmatpush.msra.mxu0 %v306
    %578 = vmatpush.msra.mxu0 %v304
    %579 = vmatpush.msra.mxu0 %v302
    %580 = vmatpush.msra.mxu0 %v300
    %581 = vmatpush.msra.mxu0 %v298
    %582 = vmatpush.msra.mxu0 %v296
    %583 = vmatmul.f32.gmra.mxu0 %v542
    %v584 = vpop.f32.mrf.mxu0
    %v585 = vadd.f32 %v538, %v584
    %586 = vmatmul.f32.gmra.mxu0 %v542
    %v587 = vpop.f32.mrf.mxu0
    %v588 = vadd.f32 %v538, %v587
    %589 = vdwg.mxu0
    %v590 = vadd.f32 %v532, %v562
    %v591 = vadd.f32 %v534, %v565
    %v592 = vxor.u32 %v590, 2147483648
    %v593 = vxor.u32 %v591, 2147483648
    %v594 = vmul.f32 %v592, 1.442695
    %v595 = vpow.pop %v594
    %v596 = vmul.f32 %v593, 1.442695
    %v597 = vpow.pop %v596
    %v598 = vadd.f32 %v595, 1.0
    %v599 = vadd.f32 %v597, 1.0
    %v600 = vrcp.pop %v598
    %v601 = vmul.f32 %v598, %v600
    %v602 = vsub.f32 1.0, %v601
    %v603 = vmul.f32 %v600, %v602
    %v604 = vadd.f32 %v600, %v603
    %vm605 = vweird.f32 %v598
    %vm606 = vweird.f32 %v600
    %vm607 = vmor %vm605, %vm606
    %v608 = vsel %vm607, %v600, %v604
    %v609 = vand.u32 2147483647, %v598
    %vm610 = vcmp.eq.f32.partialorder %v609, 8.507059e+37
    %v611 = vand.u32 %v598, 2147483648
    %v612 = vor.u32 1.1754944e-38, %v611
    %v613 = vsel %vm610, %v612, %v608
    %v614 = vmul.f32 1.0, %v613
    %v615 = vrcp.pop %v599
    %v616 = vmul.f32 %v599, %v615
    %v617 = vsub.f32 1.0, %v616
    %v618 = vmul.f32 %v615, %v617
    %v619 = vadd.f32 %v615, %v618
    %vm620 = vweird.f32 %v599
    %vm621 = vweird.f32 %v615
    %vm622 = vmor %vm620, %vm621
    %v623 = vsel %vm622, %v615, %v619
    %v624 = vand.u32 2147483647, %v599
    %vm625 = vcmp.eq.f32.partialorder %v624, 8.507059e+37
    %v626 = vand.u32 %v599, 2147483648
    %v627 = vor.u32 1.1754944e-38, %v626
    %v628 = vsel %vm625, %v627, %v623
    %v629 = vmul.f32 1.0, %v628
    %v630 = vmul.f32 %v614, %v585
    %v631 = vmul.f32 %v629, %v588
    %v632 = vadd.f32 %v533, %v630
    %v633 = vadd.f32 %v535, %v631
    %v634 = vtanh.pop %v632
    %v635 = vtanh.pop %v633
    %v636 = vsub.f32 1.0, %v614
    %v637 = vsub.f32 1.0, %v629
    %640 = vrot.lane.b32.xlu0 %v634, 64
    %v641 = vpop.permute.xlu0 %640
    %642 = vrot.lane.b32.xlu0 %v635, 64
    %v643 = vpop.permute.xlu0 %642
    %v646 = vmul.f32 %v636, %v641
    %v647 = vmul.f32 %v637, %v643
    %v648 = vmul.f32 %v614, 0.0
    %v649 = vmul.f32 %v629, 0.0
    %v650 = vadd.f32 %v646, %v648
    %v651 = vadd.f32 %v647, %v649
    %s652 = smul.u32 2, 2
    %s653 = smul.addr %s652, 8
    %s654 = scalar_lea.vmem [#allocation2], %s653
    %v655 = vld [vmem:[%s654] sm:$0xff]
    %v656 = vld [vmem:[%s654 + $0x8] sm:$0xff]
    %v657 = vld [vmem:[%s654 + $0x10] sm:$0xff]
    %v658 = vld [vmem:[%s654 + $0x18] sm:$0xff]
    %661 = vrot.lane.b32.xlu0 %v650, 64
    %v662 = vpop.permute.xlu0 %661
    %663 = vrot.lane.b32.xlu0 %v651, 64
    %v664 = vpop.permute.xlu0 %663
    %v665 = vsel %vm141, %v662, 0
    %v667 = vsel %vm141, %v664, 0
    %669 = vmatpush.msra.mxu0 0.0
    %670 = vmatpush.msra.mxu0 0.0
    %671 = vmatpush.msra.mxu0 0.0
    %672 = vmatpush.msra.mxu0 0.0
    %673 = vmatpush.msra.mxu0 0.0
    %674 = vmatpush.msra.mxu0 0.0
    %675 = vmatpush.msra.mxu0 0.0
    %676 = vmatpush.msra.mxu0 0.0
    %677 = vmatpush.msra.mxu0 %v309
    %678 = vmatpush.msra.mxu0 %v307
    %679 = vmatpush.msra.mxu0 %v305
    %680 = vmatpush.msra.mxu0 %v303
    %681 = vmatpush.msra.mxu0 %v301
    %682 = vmatpush.msra.mxu0 %v299
    %683 = vmatpush.msra.mxu0 %v297
    %684 = vmatpush.msra.mxu0 %v295
    %685 = vmatmul.f32.gmra.mxu0 %v665
    %v686 = vpop.f32.mrf.mxu0
    %v687 = vadd.f32 %v537, %v686
    %688 = vmatmul.f32.gmra.mxu0 %v667
    %v689 = vpop.f32.mrf.mxu0
    %v690 = vadd.f32 %v537, %v689
    %691 = vdwg.mxu0
    %692 = vmatpush.msra.mxu0 0.0
    %693 = vmatpush.msra.mxu0 0.0
    %694 = vmatpush.msra.mxu0 0.0
    %695 = vmatpush.msra.mxu0 0.0
    %696 = vmatpush.msra.mxu0 0.0
    %697 = vmatpush.msra.mxu0 0.0
    %698 = vmatpush.msra.mxu0 0.0
    %699 = vmatpush.msra.mxu0 0.0
    %700 = vmatpush.msra.mxu0 %v310
    %701 = vmatpush.msra.mxu0 %v308
    %702 = vmatpush.msra.mxu0 %v306
    %703 = vmatpush.msra.mxu0 %v304
    %704 = vmatpush.msra.mxu0 %v302
    %705 = vmatpush.msra.mxu0 %v300
    %706 = vmatpush.msra.mxu0 %v298
    %707 = vmatpush.msra.mxu0 %v296
    %708 = vmatmul.f32.gmra.mxu0 %v665
    %v709 = vpop.f32.mrf.mxu0
    %v710 = vadd.f32 %v538, %v709
    %711 = vmatmul.f32.gmra.mxu0 %v667
    %v712 = vpop.f32.mrf.mxu0
    %v713 = vadd.f32 %v538, %v712
    %714 = vdwg.mxu0
    %v715 = vadd.f32 %v655, %v687
    %v716 = vadd.f32 %v657, %v690
    %v717 = vxor.u32 %v715, 2147483648
    %v718 = vxor.u32 %v716, 2147483648
    %v719 = vmul.f32 %v717, 1.442695
    %v720 = vpow.pop %v719
    %v721 = vmul.f32 %v718, 1.442695
    %v722 = vpow.pop %v721
    %v723 = vadd.f32 %v720, 1.0
    %v724 = vadd.f32 %v722, 1.0
    %v725 = vrcp.pop %v723
    %v726 = vmul.f32 %v723, %v725
    %v727 = vsub.f32 1.0, %v726
    %v728 = vmul.f32 %v725, %v727
    %v729 = vadd.f32 %v725, %v728
    %vm730 = vweird.f32 %v723
    %vm731 = vweird.f32 %v725
    %vm732 = vmor %vm730, %vm731
    %v733 = vsel %vm732, %v725, %v729
    %v734 = vand.u32 2147483647, %v723
    %vm735 = vcmp.eq.f32.partialorder %v734, 8.507059e+37
    %v736 = vand.u32 %v723, 2147483648
    %v737 = vor.u32 1.1754944e-38, %v736
    %v738 = vsel %vm735, %v737, %v733
    %v739 = vmul.f32 1.0, %v738
    %v740 = vrcp.pop %v724
    %v741 = vmul.f32 %v724, %v740
    %v742 = vsub.f32 1.0, %v741
    %v743 = vmul.f32 %v740, %v742
    %v744 = vadd.f32 %v740, %v743
    %vm745 = vweird.f32 %v724
    %vm746 = vweird.f32 %v740
    %vm747 = vmor %vm745, %vm746
    %v748 = vsel %vm747, %v740, %v744
    %v749 = vand.u32 2147483647, %v724
    %vm750 = vcmp.eq.f32.partialorder %v749, 8.507059e+37
    %v751 = vand.u32 %v724, 2147483648
    %v752 = vor.u32 1.1754944e-38, %v751
    %v753 = vsel %vm750, %v752, %v748
    %v754 = vmul.f32 1.0, %v753
    %v755 = vmul.f32 %v739, %v710
    %v756 = vmul.f32 %v754, %v713
    %v757 = vadd.f32 %v656, %v755
    %v758 = vadd.f32 %v658, %v756
    %v759 = vtanh.pop %v757
    %v760 = vtanh.pop %v758
    %v761 = vsub.f32 1.0, %v739
    %v762 = vsub.f32 1.0, %v754
    %765 = vrot.lane.b32.xlu0 %v759, 64
    %v766 = vpop.permute.xlu0 %765
    %767 = vrot.lane.b32.xlu0 %v760, 64
    %v768 = vpop.permute.xlu0 %767
    %v771 = vmul.f32 %v761, %v766
    %v772 = vmul.f32 %v762, %v768
    %v773 = vmul.f32 %v739, %v650
    %v774 = vmul.f32 %v754, %v651
    %v775 = vadd.f32 %v771, %v773
    %v776 = vadd.f32 %v772, %v774
    %s777 = smul.u32 4, 2
    %s778 = smul.addr %s777, 8
    %s779 = scalar_lea.vmem [#allocation2], %s778
    %v780 = vld [vmem:[%s779] sm:$0xff]
    %v781 = vld [vmem:[%s779 + $0x8] sm:$0xff]
    %v782 = vld [vmem:[%s779 + $0x10] sm:$0xff]
    %v783 = vld [vmem:[%s779 + $0x18] sm:$0xff]
    %786 = vrot.lane.b32.xlu0 %v775, 64
    %v787 = vpop.permute.xlu0 %786
    %788 = vrot.lane.b32.xlu0 %v776, 64
    %v789 = vpop.permute.xlu0 %788
    %v790 = vsel %vm141, %v787, 0
    %v792 = vsel %vm141, %v789, 0
    %794 = vmatpush.msra.mxu0 0.0
    %795 = vmatpush.msra.mxu0 0.0
    %796 = vmatpush.msra.mxu0 0.0
    %797 = vmatpush.msra.mxu0 0.0
    %798 = vmatpush.msra.mxu0 0.0
    %799 = vmatpush.msra.mxu0 0.0
    %800 = vmatpush.msra.mxu0 0.0
    %801 = vmatpush.msra.mxu0 0.0
    %802 = vmatpush.msra.mxu0 %v309
    %803 = vmatpush.msra.mxu0 %v307
    %804 = vmatpush.msra.mxu0 %v305
    %805 = vmatpush.msra.mxu0 %v303
    %806 = vmatpush.msra.mxu0 %v301
    %807 = vmatpush.msra.mxu0 %v299
    %808 = vmatpush.msra.mxu0 %v297
    %809 = vmatpush.msra.mxu0 %v295
    %810 = vmatmul.f32.gmra.mxu0 %v790
    %v811 = vpop.f32.mrf.mxu0
    %v812 = vadd.f32 %v537, %v811
    %813 = vmatmul.f32.gmra.mxu0 %v792
    %v814 = vpop.f32.mrf.mxu0
    %v815 = vadd.f32 %v537, %v814
    %816 = vdwg.mxu0
    %817 = vmatpush.msra.mxu0 0.0
    %818 = vmatpush.msra.mxu0 0.0
    %819 = vmatpush.msra.mxu0 0.0
    %820 = vmatpush.msra.mxu0 0.0
    %821 = vmatpush.msra.mxu0 0.0
    %822 = vmatpush.msra.mxu0 0.0
    %823 = vmatpush.msra.mxu0 0.0
    %824 = vmatpush.msra.mxu0 0.0
    %825 = vmatpush.msra.mxu0 %v310
    %826 = vmatpush.msra.mxu0 %v308
    %827 = vmatpush.msra.mxu0 %v306
    %828 = vmatpush.msra.mxu0 %v304
    %829 = vmatpush.msra.mxu0 %v302
    %830 = vmatpush.msra.mxu0 %v300
    %831 = vmatpush.msra.mxu0 %v298
    %832 = vmatpush.msra.mxu0 %v296
    %833 = vmatmul.f32.gmra.mxu0 %v790
    %v834 = vpop.f32.mrf.mxu0
    %v835 = vadd.f32 %v538, %v834
    %836 = vmatmul.f32.gmra.mxu0 %v792
    %v837 = vpop.f32.mrf.mxu0
    %v838 = vadd.f32 %v538, %v837
    %839 = vdwg.mxu0
    %v840 = vadd.f32 %v780, %v812
    %v841 = vadd.f32 %v782, %v815
    %v842 = vxor.u32 %v840, 2147483648
    %v843 = vxor.u32 %v841, 2147483648
    %v844 = vmul.f32 %v842, 1.442695
    %v845 = vpow.pop %v844
    %v846 = vmul.f32 %v843, 1.442695
    %v847 = vpow.pop %v846
    %v848 = vadd.f32 %v845, 1.0
    %v849 = vadd.f32 %v847, 1.0
    %v850 = vrcp.pop %v848
    %v851 = vmul.f32 %v848, %v850
    %v852 = vsub.f32 1.0, %v851
    %v853 = vmul.f32 %v850, %v852
    %v854 = vadd.f32 %v850, %v853
    %vm855 = vweird.f32 %v848
    %vm856 = vweird.f32 %v850
    %vm857 = vmor %vm855, %vm856
    %v858 = vsel %vm857, %v850, %v854
    %v859 = vand.u32 2147483647, %v848
    %vm860 = vcmp.eq.f32.partialorder %v859, 8.507059e+37
    %v861 = vand.u32 %v848, 2147483648
    %v862 = vor.u32 1.1754944e-38, %v861
    %v863 = vsel %vm860, %v862, %v858
    %v864 = vmul.f32 1.0, %v863
    %v865 = vrcp.pop %v849
    %v866 = vmul.f32 %v849, %v865
    %v867 = vsub.f32 1.0, %v866
    %v868 = vmul.f32 %v865, %v867
    %v869 = vadd.f32 %v865, %v868
    %vm870 = vweird.f32 %v849
    %vm871 = vweird.f32 %v865
    %vm872 = vmor %vm870, %vm871
    %v873 = vsel %vm872, %v865, %v869
    %v874 = vand.u32 2147483647, %v849
    %vm875 = vcmp.eq.f32.partialorder %v874, 8.507059e+37
    %v876 = vand.u32 %v849, 2147483648
    %v877 = vor.u32 1.1754944e-38, %v876
    %v878 = vsel %vm875, %v877, %v873
    %v879 = vmul.f32 1.0, %v878
    %v880 = vmul.f32 %v864, %v835
    %v881 = vmul.f32 %v879, %v838
    %v882 = vadd.f32 %v781, %v880
    %v883 = vadd.f32 %v783, %v881
    %v884 = vtanh.pop %v882
    %v885 = vtanh.pop %v883
    %v886 = vsub.f32 1.0, %v864
    %v887 = vsub.f32 1.0, %v879
    %890 = vrot.lane.b32.xlu0 %v884, 64
    %v891 = vpop.permute.xlu0 %890
    %892 = vrot.lane.b32.xlu0 %v885, 64
    %v893 = vpop.permute.xlu0 %892
    %v896 = vmul.f32 %v886, %v891
    %v897 = vmul.f32 %v887, %v893
    %v898 = vmul.f32 %v864, %v775
    %v899 = vmul.f32 %v879, %v776
    %v900 = vadd.f32 %v896, %v898
    %v901 = vadd.f32 %v897, %v899
    %s902 = smul.u32 6, 2
    %s903 = smul.addr %s902, 8
    %s904 = scalar_lea.vmem [#allocation2], %s903
    %v905 = vld [vmem:[%s904] sm:$0xff]
    %v906 = vld [vmem:[%s904 + $0x8] sm:$0xff]
    %v907 = vld [vmem:[%s904 + $0x10] sm:$0xff]
    %v908 = vld [vmem:[%s904 + $0x18] sm:$0xff]
    %911 = vrot.lane.b32.xlu0 %v900, 64
    %v912 = vpop.permute.xlu0 %911
    %913 = vrot.lane.b32.xlu0 %v901, 64
    %v914 = vpop.permute.xlu0 %913
    %v915 = vsel %vm141, %v912, 0
    %v917 = vsel %vm141, %v914, 0
    %919 = vmatpush.msra.mxu0 0.0
    %920 = vmatpush.msra.mxu0 0.0
    %921 = vmatpush.msra.mxu0 0.0
    %922 = vmatpush.msra.mxu0 0.0
    %923 = vmatpush.msra.mxu0 0.0
    %924 = vmatpush.msra.mxu0 0.0
    %925 = vmatpush.msra.mxu0 0.0
    %926 = vmatpush.msra.mxu0 0.0
    %927 = vmatpush.msra.mxu0 %v309
    %928 = vmatpush.msra.mxu0 %v307
    %929 = vmatpush.msra.mxu0 %v305
    %930 = vmatpush.msra.mxu0 %v303
    %931 = vmatpush.msra.mxu0 %v301
    %932 = vmatpush.msra.mxu0 %v299
    %933 = vmatpush.msra.mxu0 %v297
    %934 = vmatpush.msra.mxu0 %v295
    %935 = vmatmul.f32.gmra.mxu0 %v915
    %v936 = vpop.f32.mrf.mxu0
    %v937 = vadd.f32 %v537, %v936
    %938 = vmatmul.f32.gmra.mxu0 %v917
    %v939 = vpop.f32.mrf.mxu0
    %v940 = vadd.f32 %v537, %v939
    %941 = vdwg.mxu0
    %942 = vmatpush.msra.mxu0 0.0
    %943 = vmatpush.msra.mxu0 0.0
    %944 = vmatpush.msra.mxu0 0.0
    %945 = vmatpush.msra.mxu0 0.0
    %946 = vmatpush.msra.mxu0 0.0
    %947 = vmatpush.msra.mxu0 0.0
    %948 = vmatpush.msra.mxu0 0.0
    %949 = vmatpush.msra.mxu0 0.0
    %950 = vmatpush.msra.mxu0 %v310
    %951 = vmatpush.msra.mxu0 %v308
    %952 = vmatpush.msra.mxu0 %v306
    %953 = vmatpush.msra.mxu0 %v304
    %954 = vmatpush.msra.mxu0 %v302
    %955 = vmatpush.msra.mxu0 %v300
    %956 = vmatpush.msra.mxu0 %v298
    %957 = vmatpush.msra.mxu0 %v296
    %958 = vmatmul.f32.gmra.mxu0 %v915
    %v959 = vpop.f32.mrf.mxu0
    %v960 = vadd.f32 %v538, %v959
    %961 = vmatmul.f32.gmra.mxu0 %v917
    %v962 = vpop.f32.mrf.mxu0
    %v963 = vadd.f32 %v538, %v962
    %964 = vdwg.mxu0
    %v965 = vadd.f32 %v905, %v937
    %v966 = vadd.f32 %v907, %v940
    %v967 = vxor.u32 %v965, 2147483648
    %v968 = vxor.u32 %v966, 2147483648
    %v969 = vmul.f32 %v967, 1.442695
    %v970 = vpow.pop %v969
    %v971 = vmul.f32 %v968, 1.442695
    %v972 = vpow.pop %v971
    %v973 = vadd.f32 %v970, 1.0
    %v974 = vadd.f32 %v972, 1.0
    %v975 = vrcp.pop %v973
    %v976 = vmul.f32 %v973, %v975
    %v977 = vsub.f32 1.0, %v976
    %v978 = vmul.f32 %v975, %v977
    %v979 = vadd.f32 %v975, %v978
    %vm980 = vweird.f32 %v973
    %vm981 = vweird.f32 %v975
    %vm982 = vmor %vm980, %vm981
    %v983 = vsel %vm982, %v975, %v979
    %v984 = vand.u32 2147483647, %v973
    %vm985 = vcmp.eq.f32.partialorder %v984, 8.507059e+37
    %v986 = vand.u32 %v973, 2147483648
    %v987 = vor.u32 1.1754944e-38, %v986
    %v988 = vsel %vm985, %v987, %v983
    %v989 = vmul.f32 1.0, %v988
    %v990 = vrcp.pop %v974
    %v991 = vmul.f32 %v974, %v990
    %v992 = vsub.f32 1.0, %v991
    %v993 = vmul.f32 %v990, %v992
    %v994 = vadd.f32 %v990, %v993
    %vm995 = vweird.f32 %v974
    %vm996 = vweird.f32 %v990
    %vm997 = vmor %vm995, %vm996
    %v998 = vsel %vm997, %v990, %v994
    %v999 = vand.u32 2147483647, %v974
    %vm1000 = vcmp.eq.f32.partialorder %v999, 8.507059e+37
    %v1001 = vand.u32 %v974, 2147483648
    %v1002 = vor.u32 1.1754944e-38, %v1001
    %v1003 = vsel %vm1000, %v1002, %v998
    %v1004 = vmul.f32 1.0, %v1003
    %v1005 = vmul.f32 %v989, %v960
    %v1006 = vmul.f32 %v1004, %v963
    %v1007 = vadd.f32 %v906, %v1005
    %v1008 = vadd.f32 %v908, %v1006
    %v1009 = vtanh.pop %v1007
    %v1010 = vtanh.pop %v1008
    %v1011 = vsub.f32 1.0, %v989
    %v1012 = vsub.f32 1.0, %v1004
    %1015 = vrot.lane.b32.xlu0 %v1009, 64
    %v1016 = vpop.permute.xlu0 %1015
    %1017 = vrot.lane.b32.xlu0 %v1010, 64
    %v1018 = vpop.permute.xlu0 %1017
    %v1021 = vmul.f32 %v1011, %v1016
    %v1022 = vmul.f32 %v1012, %v1018
    %v1023 = vmul.f32 %v989, %v900
    %v1024 = vmul.f32 %v1004, %v901
    %v1025 = vadd.f32 %v1021, %v1023
    %v1026 = vadd.f32 %v1022, %v1024
    %s1027 = smul.u32 8, 2
    %s1028 = smul.addr %s1027, 8
    %s1029 = scalar_lea.vmem [#allocation2], %s1028
    %v1030 = vld [vmem:[%s1029] sm:$0xff]
    %v1031 = vld [vmem:[%s1029 + $0x8] sm:$0xff]
    %v1032 = vld [vmem:[%s1029 + $0x10] sm:$0xff]
    %v1033 = vld [vmem:[%s1029 + $0x18] sm:$0xff]
    %1036 = vrot.lane.b32.xlu0 %v1025, 64
    %v1037 = vpop.permute.xlu0 %1036
    %1038 = vrot.lane.b32.xlu0 %v1026, 64
    %v1039 = vpop.permute.xlu0 %1038
    %v1040 = vsel %vm141, %v1037, 0
    %v1042 = vsel %vm141, %v1039, 0
    %1044 = vmatpush.msra.mxu0 0.0
    %1045 = vmatpush.msra.mxu0 0.0
    %1046 = vmatpush.msra.mxu0 0.0
    %1047 = vmatpush.msra.mxu0 0.0
    %1048 = vmatpush.msra.mxu0 0.0
    %1049 = vmatpush.msra.mxu0 0.0
    %1050 = vmatpush.msra.mxu0 0.0
    %1051 = vmatpush.msra.mxu0 0.0
    %1052 = vmatpush.msra.mxu0 %v309
    %1053 = vmatpush.msra.mxu0 %v307
    %1054 = vmatpush.msra.mxu0 %v305
    %1055 = vmatpush.msra.mxu0 %v303
    %1056 = vmatpush.msra.mxu0 %v301
    %1057 = vmatpush.msra.mxu0 %v299
    %1058 = vmatpush.msra.mxu0 %v297
    %1059 = vmatpush.msra.mxu0 %v295
    %1060 = vmatmul.f32.gmra.mxu0 %v1040
    %v1061 = vpop.f32.mrf.mxu0
    %v1062 = vadd.f32 %v537, %v1061
    %1063 = vmatmul.f32.gmra.mxu0 %v1042
    %v1064 = vpop.f32.mrf.mxu0
    %v1065 = vadd.f32 %v537, %v1064
    %1066 = vdwg.mxu0
    %1067 = vmatpush.msra.mxu0 0.0
    %1068 = vmatpush.msra.mxu0 0.0
    %1069 = vmatpush.msra.mxu0 0.0
    %1070 = vmatpush.msra.mxu0 0.0
    %1071 = vmatpush.msra.mxu0 0.0
    %1072 = vmatpush.msra.mxu0 0.0
    %1073 = vmatpush.msra.mxu0 0.0
    %1074 = vmatpush.msra.mxu0 0.0
    %1075 = vmatpush.msra.mxu0 %v310
    %1076 = vmatpush.msra.mxu0 %v308
    %1077 = vmatpush.msra.mxu0 %v306
    %1078 = vmatpush.msra.mxu0 %v304
    %1079 = vmatpush.msra.mxu0 %v302
    %1080 = vmatpush.msra.mxu0 %v300
    %1081 = vmatpush.msra.mxu0 %v298
    %1082 = vmatpush.msra.mxu0 %v296
    %1083 = vmatmul.f32.gmra.mxu0 %v1040
    %v1084 = vpop.f32.mrf.mxu0
    %v1085 = vadd.f32 %v538, %v1084
    %1086 = vmatmul.f32.gmra.mxu0 %v1042
    %v1087 = vpop.f32.mrf.mxu0
    %v1088 = vadd.f32 %v538, %v1087
    %1089 = vdwg.mxu0
    %v1090 = vadd.f32 %v1030, %v1062
    %v1091 = vadd.f32 %v1032, %v1065
    %v1092 = vxor.u32 %v1090, 2147483648
    %v1093 = vxor.u32 %v1091, 2147483648
    %v1094 = vmul.f32 %v1092, 1.442695
    %v1095 = vpow.pop %v1094
    %v1096 = vmul.f32 %v1093, 1.442695
    %v1097 = vpow.pop %v1096
    %v1098 = vadd.f32 %v1095, 1.0
    %v1099 = vadd.f32 %v1097, 1.0
    %v1100 = vrcp.pop %v1098
    %v1101 = vmul.f32 %v1098, %v1100
    %v1102 = vsub.f32 1.0, %v1101
    %v1103 = vmul.f32 %v1100, %v1102
    %v1104 = vadd.f32 %v1100, %v1103
    %vm1105 = vweird.f32 %v1098
    %vm1106 = vweird.f32 %v1100
    %vm1107 = vmor %vm1105, %vm1106
    %v1108 = vsel %vm1107, %v1100, %v1104
    %v1109 = vand.u32 2147483647, %v1098
    %vm1110 = vcmp.eq.f32.partialorder %v1109, 8.507059e+37
    %v1111 = vand.u32 %v1098, 2147483648
    %v1112 = vor.u32 1.1754944e-38, %v1111
    %v1113 = vsel %vm1110, %v1112, %v1108
    %v1114 = vmul.f32 1.0, %v1113
    %v1115 = vrcp.pop %v1099
    %v1116 = vmul.f32 %v1099, %v1115
    %v1117 = vsub.f32 1.0, %v1116
    %v1118 = vmul.f32 %v1115, %v1117
    %v1119 = vadd.f32 %v1115, %v1118
    %vm1120 = vweird.f32 %v1099
    %vm1121 = vweird.f32 %v1115
    %vm1122 = vmor %vm1120, %vm1121
    %v1123 = vsel %vm1122, %v1115, %v1119
    %v1124 = vand.u32 2147483647, %v1099
    %vm1125 = vcmp.eq.f32.partialorder %v1124, 8.507059e+37
    %v1126 = vand.u32 %v1099, 2147483648
    %v1127 = vor.u32 1.1754944e-38, %v1126
    %v1128 = vsel %vm1125, %v1127, %v1123
    %v1129 = vmul.f32 1.0, %v1128
    %v1130 = vmul.f32 %v1114, %v1085
    %v1131 = vmul.f32 %v1129, %v1088
    %v1132 = vadd.f32 %v1031, %v1130
    %v1133 = vadd.f32 %v1033, %v1131
    %v1134 = vtanh.pop %v1132
    %v1135 = vtanh.pop %v1133
    %v1136 = vsub.f32 1.0, %v1114
    %v1137 = vsub.f32 1.0, %v1129
    %1140 = vrot.lane.b32.xlu0 %v1134, 64
    %v1141 = vpop.permute.xlu0 %1140
    %1142 = vrot.lane.b32.xlu0 %v1135, 64
    %v1143 = vpop.permute.xlu0 %1142
    %v1146 = vmul.f32 %v1136, %v1141
    %v1147 = vmul.f32 %v1137, %v1143
    %v1148 = vmul.f32 %v1114, %v1025
    %v1149 = vmul.f32 %v1129, %v1026
    %v1150 = vadd.f32 %v1146, %v1148
    %v1151 = vadd.f32 %v1147, %v1149
    %s1152 = smul.u32 10, 2
    %s1153 = smul.addr %s1152, 8
    %s1154 = scalar_lea.vmem [#allocation2], %s1153
    %v1155 = vld [vmem:[%s1154] sm:$0xff]
    %v1156 = vld [vmem:[%s1154 + $0x8] sm:$0xff]
    %v1157 = vld [vmem:[%s1154 + $0x10] sm:$0xff]
    %v1158 = vld [vmem:[%s1154 + $0x18] sm:$0xff]
    %1161 = vrot.lane.b32.xlu0 %v1150, 64
    %v1162 = vpop.permute.xlu0 %1161
    %1163 = vrot.lane.b32.xlu0 %v1151, 64
    %v1164 = vpop.permute.xlu0 %1163
    %v1165 = vsel %vm141, %v1162, 0
    %v1167 = vsel %vm141, %v1164, 0
    %1169 = vmatpush.msra.mxu0 0.0
    %1170 = vmatpush.msra.mxu0 0.0
    %1171 = vmatpush.msra.mxu0 0.0
    %1172 = vmatpush.msra.mxu0 0.0
    %1173 = vmatpush.msra.mxu0 0.0
    %1174 = vmatpush.msra.mxu0 0.0
    %1175 = vmatpush.msra.mxu0 0.0
    %1176 = vmatpush.msra.mxu0 0.0
    %1177 = vmatpush.msra.mxu0 %v309
    %1178 = vmatpush.msra.mxu0 %v307
    %1179 = vmatpush.msra.mxu0 %v305
    %1180 = vmatpush.msra.mxu0 %v303
    %1181 = vmatpush.msra.mxu0 %v301
    %1182 = vmatpush.msra.mxu0 %v299
    %1183 = vmatpush.msra.mxu0 %v297
    %1184 = vmatpush.msra.mxu0 %v295
    %1185 = vmatmul.f32.gmra.mxu0 %v1165
    %v1186 = vpop.f32.mrf.mxu0
    %v1187 = vadd.f32 %v537, %v1186
    %1188 = vmatmul.f32.gmra.mxu0 %v1167
    %v1189 = vpop.f32.mrf.mxu0
    %v1190 = vadd.f32 %v537, %v1189
    %1191 = vdwg.mxu0
    %1192 = vmatpush.msra.mxu0 0.0
    %1193 = vmatpush.msra.mxu0 0.0
    %1194 = vmatpush.msra.mxu0 0.0
    %1195 = vmatpush.msra.mxu0 0.0
    %1196 = vmatpush.msra.mxu0 0.0
    %1197 = vmatpush.msra.mxu0 0.0
    %1198 = vmatpush.msra.mxu0 0.0
    %1199 = vmatpush.msra.mxu0 0.0
    %1200 = vmatpush.msra.mxu0 %v310
    %1201 = vmatpush.msra.mxu0 %v308
    %1202 = vmatpush.msra.mxu0 %v306
    %1203 = vmatpush.msra.mxu0 %v304
    %1204 = vmatpush.msra.mxu0 %v302
    %1205 = vmatpush.msra.mxu0 %v300
    %1206 = vmatpush.msra.mxu0 %v298
    %1207 = vmatpush.msra.mxu0 %v296
    %1208 = vmatmul.f32.gmra.mxu0 %v1165
    %v1209 = vpop.f32.mrf.mxu0
    %v1210 = vadd.f32 %v538, %v1209
    %1211 = vmatmul.f32.gmra.mxu0 %v1167
    %v1212 = vpop.f32.mrf.mxu0
    %v1213 = vadd.f32 %v538, %v1212
    %1214 = vdwg.mxu0
    %v1215 = vadd.f32 %v1155, %v1187
    %v1216 = vadd.f32 %v1157, %v1190
    %v1217 = vxor.u32 %v1215, 2147483648
    %v1218 = vxor.u32 %v1216, 2147483648
    %v1219 = vmul.f32 %v1217, 1.442695
    %v1220 = vpow.pop %v1219
    %v1221 = vmul.f32 %v1218, 1.442695
    %v1222 = vpow.pop %v1221
    %v1223 = vadd.f32 %v1220, 1.0
    %v1224 = vadd.f32 %v1222, 1.0
    %v1225 = vrcp.pop %v1223
    %v1226 = vmul.f32 %v1223, %v1225
    %v1227 = vsub.f32 1.0, %v1226
    %v1228 = vmul.f32 %v1225, %v1227
    %v1229 = vadd.f32 %v1225, %v1228
    %vm1230 = vweird.f32 %v1223
    %vm1231 = vweird.f32 %v1225
    %vm1232 = vmor %vm1230, %vm1231
    %v1233 = vsel %vm1232, %v1225, %v1229
    %v1234 = vand.u32 2147483647, %v1223
    %vm1235 = vcmp.eq.f32.partialorder %v1234, 8.507059e+37
    %v1236 = vand.u32 %v1223, 2147483648
    %v1237 = vor.u32 1.1754944e-38, %v1236
    %v1238 = vsel %vm1235, %v1237, %v1233
    %v1239 = vmul.f32 1.0, %v1238
    %v1240 = vrcp.pop %v1224
    %v1241 = vmul.f32 %v1224, %v1240
    %v1242 = vsub.f32 1.0, %v1241
    %v1243 = vmul.f32 %v1240, %v1242
    %v1244 = vadd.f32 %v1240, %v1243
    %vm1245 = vweird.f32 %v1224
    %vm1246 = vweird.f32 %v1240
    %vm1247 = vmor %vm1245, %vm1246
    %v1248 = vsel %vm1247, %v1240, %v1244
    %v1249 = vand.u32 2147483647, %v1224
    %vm1250 = vcmp.eq.f32.partialorder %v1249, 8.507059e+37
    %v1251 = vand.u32 %v1224, 2147483648
    %v1252 = vor.u32 1.1754944e-38, %v1251
    %v1253 = vsel %vm1250, %v1252, %v1248
    %v1254 = vmul.f32 1.0, %v1253
    %v1255 = vmul.f32 %v1239, %v1210
    %v1256 = vmul.f32 %v1254, %v1213
    %v1257 = vadd.f32 %v1156, %v1255
    %v1258 = vadd.f32 %v1158, %v1256
    %v1259 = vtanh.pop %v1257
    %v1260 = vtanh.pop %v1258
    %v1261 = vsub.f32 1.0, %v1239
    %v1262 = vsub.f32 1.0, %v1254
    %1265 = vrot.lane.b32.xlu0 %v1259, 64
    %v1266 = vpop.permute.xlu0 %1265
    %1267 = vrot.lane.b32.xlu0 %v1260, 64
    %v1268 = vpop.permute.xlu0 %1267
    %v1271 = vmul.f32 %v1261, %v1266
    %v1272 = vmul.f32 %v1262, %v1268
    %v1273 = vmul.f32 %v1239, %v1150
    %v1274 = vmul.f32 %v1254, %v1151
    %v1275 = vadd.f32 %v1271, %v1273
    %v1276 = vadd.f32 %v1272, %v1274
    %s1277 = smul.u32 12, 2
    %s1278 = smul.addr %s1277, 8
    %s1279 = scalar_lea.vmem [#allocation2], %s1278
    %v1280 = vld [vmem:[%s1279] sm:$0xff]
    %v1281 = vld [vmem:[%s1279 + $0x8] sm:$0xff]
    %v1282 = vld [vmem:[%s1279 + $0x10] sm:$0xff]
    %v1283 = vld [vmem:[%s1279 + $0x18] sm:$0xff]
    %1286 = vrot.lane.b32.xlu0 %v1275, 64
    %v1287 = vpop.permute.xlu0 %1286
    %1288 = vrot.lane.b32.xlu0 %v1276, 64
    %v1289 = vpop.permute.xlu0 %1288
    %v1290 = vsel %vm141, %v1287, 0
    %v1292 = vsel %vm141, %v1289, 0
    %1294 = vmatpush.msra.mxu0 0.0
    %1295 = vmatpush.msra.mxu0 0.0
    %1296 = vmatpush.msra.mxu0 0.0
    %1297 = vmatpush.msra.mxu0 0.0
    %1298 = vmatpush.msra.mxu0 0.0
    %1299 = vmatpush.msra.mxu0 0.0
    %1300 = vmatpush.msra.mxu0 0.0
    %1301 = vmatpush.msra.mxu0 0.0
    %1302 = vmatpush.msra.mxu0 %v309
    %1303 = vmatpush.msra.mxu0 %v307
    %1304 = vmatpush.msra.mxu0 %v305
    %1305 = vmatpush.msra.mxu0 %v303
    %1306 = vmatpush.msra.mxu0 %v301
    %1307 = vmatpush.msra.mxu0 %v299
    %1308 = vmatpush.msra.mxu0 %v297
    %1309 = vmatpush.msra.mxu0 %v295
    %1310 = vmatmul.f32.gmra.mxu0 %v1290
    %v1311 = vpop.f32.mrf.mxu0
    %v1312 = vadd.f32 %v537, %v1311
    %1313 = vmatmul.f32.gmra.mxu0 %v1292
    %v1314 = vpop.f32.mrf.mxu0
    %v1315 = vadd.f32 %v537, %v1314
    %1316 = vdwg.mxu0
    %1317 = vmatpush.msra.mxu0 0.0
    %1318 = vmatpush.msra.mxu0 0.0
    %1319 = vmatpush.msra.mxu0 0.0
    %1320 = vmatpush.msra.mxu0 0.0
    %1321 = vmatpush.msra.mxu0 0.0
    %1322 = vmatpush.msra.mxu0 0.0
    %1323 = vmatpush.msra.mxu0 0.0
    %1324 = vmatpush.msra.mxu0 0.0
    %1325 = vmatpush.msra.mxu0 %v310
    %1326 = vmatpush.msra.mxu0 %v308
    %1327 = vmatpush.msra.mxu0 %v306
    %1328 = vmatpush.msra.mxu0 %v304
    %1329 = vmatpush.msra.mxu0 %v302
    %1330 = vmatpush.msra.mxu0 %v300
    %1331 = vmatpush.msra.mxu0 %v298
    %1332 = vmatpush.msra.mxu0 %v296
    %1333 = vmatmul.f32.gmra.mxu0 %v1290
    %v1334 = vpop.f32.mrf.mxu0
    %v1335 = vadd.f32 %v538, %v1334
    %1336 = vmatmul.f32.gmra.mxu0 %v1292
    %v1337 = vpop.f32.mrf.mxu0
    %v1338 = vadd.f32 %v538, %v1337
    %1339 = vdwg.mxu0
    %v1340 = vadd.f32 %v1280, %v1312
    %v1341 = vadd.f32 %v1282, %v1315
    %v1342 = vxor.u32 %v1340, 2147483648
    %v1343 = vxor.u32 %v1341, 2147483648
    %v1344 = vmul.f32 %v1342, 1.442695
    %v1345 = vpow.pop %v1344
    %v1346 = vmul.f32 %v1343, 1.442695
    %v1347 = vpow.pop %v1346
    %v1348 = vadd.f32 %v1345, 1.0
    %v1349 = vadd.f32 %v1347, 1.0
    %v1350 = vrcp.pop %v1348
    %v1351 = vmul.f32 %v1348, %v1350
    %v1352 = vsub.f32 1.0, %v1351
    %v1353 = vmul.f32 %v1350, %v1352
    %v1354 = vadd.f32 %v1350, %v1353
    %vm1355 = vweird.f32 %v1348
    %vm1356 = vweird.f32 %v1350
    %vm1357 = vmor %vm1355, %vm1356
    %v1358 = vsel %vm1357, %v1350, %v1354
    %v1359 = vand.u32 2147483647, %v1348
    %vm1360 = vcmp.eq.f32.partialorder %v1359, 8.507059e+37
    %v1361 = vand.u32 %v1348, 2147483648
    %v1362 = vor.u32 1.1754944e-38, %v1361
    %v1363 = vsel %vm1360, %v1362, %v1358
    %v1364 = vmul.f32 1.0, %v1363
    %v1365 = vrcp.pop %v1349
    %v1366 = vmul.f32 %v1349, %v1365
    %v1367 = vsub.f32 1.0, %v1366
    %v1368 = vmul.f32 %v1365, %v1367
    %v1369 = vadd.f32 %v1365, %v1368
    %vm1370 = vweird.f32 %v1349
    %vm1371 = vweird.f32 %v1365
    %vm1372 = vmor %vm1370, %vm1371
    %v1373 = vsel %vm1372, %v1365, %v1369
    %v1374 = vand.u32 2147483647, %v1349
    %vm1375 = vcmp.eq.f32.partialorder %v1374, 8.507059e+37
    %v1376 = vand.u32 %v1349, 2147483648
    %v1377 = vor.u32 1.1754944e-38, %v1376
    %v1378 = vsel %vm1375, %v1377, %v1373
    %v1379 = vmul.f32 1.0, %v1378
    %v1380 = vmul.f32 %v1364, %v1335
    %v1381 = vmul.f32 %v1379, %v1338
    %v1382 = vadd.f32 %v1281, %v1380
    %v1383 = vadd.f32 %v1283, %v1381
    %v1384 = vtanh.pop %v1382
    %v1385 = vtanh.pop %v1383
    %v1386 = vsub.f32 1.0, %v1364
    %v1387 = vsub.f32 1.0, %v1379
    %1390 = vrot.lane.b32.xlu0 %v1384, 64
    %v1391 = vpop.permute.xlu0 %1390
    %1392 = vrot.lane.b32.xlu0 %v1385, 64
    %v1393 = vpop.permute.xlu0 %1392
    %v1396 = vmul.f32 %v1386, %v1391
    %v1397 = vmul.f32 %v1387, %v1393
    %v1398 = vmul.f32 %v1364, %v1275
    %v1399 = vmul.f32 %v1379, %v1276
    %v1400 = vadd.f32 %v1396, %v1398
    %v1401 = vadd.f32 %v1397, %v1399
    %s1402 = smul.u32 14, 2
    %s1403 = smul.addr %s1402, 8
    %s1404 = scalar_lea.vmem [#allocation2], %s1403
    %v1405 = vld [vmem:[%s1404] sm:$0xff]
    %v1406 = vld [vmem:[%s1404 + $0x8] sm:$0xff]
    %v1407 = vld [vmem:[%s1404 + $0x10] sm:$0xff]
    %v1408 = vld [vmem:[%s1404 + $0x18] sm:$0xff]
    %1411 = vrot.lane.b32.xlu0 %v1400, 64
    %v1412 = vpop.permute.xlu0 %1411
    %1413 = vrot.lane.b32.xlu0 %v1401, 64
    %v1414 = vpop.permute.xlu0 %1413
    %v1415 = vsel %vm141, %v1412, 0
    %v1417 = vsel %vm141, %v1414, 0
    %1419 = vmatpush.msra.mxu0 0.0
    %1420 = vmatpush.msra.mxu0 0.0
    %1421 = vmatpush.msra.mxu0 0.0
    %1422 = vmatpush.msra.mxu0 0.0
    %1423 = vmatpush.msra.mxu0 0.0
    %1424 = vmatpush.msra.mxu0 0.0
    %1425 = vmatpush.msra.mxu0 0.0
    %1426 = vmatpush.msra.mxu0 0.0
    %1427 = vmatpush.msra.mxu0 %v309
    %1428 = vmatpush.msra.mxu0 %v307
    %1429 = vmatpush.msra.mxu0 %v305
    %1430 = vmatpush.msra.mxu0 %v303
    %1431 = vmatpush.msra.mxu0 %v301
    %1432 = vmatpush.msra.mxu0 %v299
    %1433 = vmatpush.msra.mxu0 %v297
    %1434 = vmatpush.msra.mxu0 %v295
    %1435 = vmatmul.f32.gmra.mxu0 %v1415
    %v1436 = vpop.f32.mrf.mxu0
    %v1437 = vadd.f32 %v537, %v1436
    %1438 = vmatmul.f32.gmra.mxu0 %v1417
    %v1439 = vpop.f32.mrf.mxu0
    %v1440 = vadd.f32 %v537, %v1439
    %1441 = vdwg.mxu0
    %1442 = vmatpush.msra.mxu0 0.0
    %1443 = vmatpush.msra.mxu0 0.0
    %1444 = vmatpush.msra.mxu0 0.0
    %1445 = vmatpush.msra.mxu0 0.0
    %1446 = vmatpush.msra.mxu0 0.0
    %1447 = vmatpush.msra.mxu0 0.0
    %1448 = vmatpush.msra.mxu0 0.0
    %1449 = vmatpush.msra.mxu0 0.0
    %1450 = vmatpush.msra.mxu0 %v310
    %1451 = vmatpush.msra.mxu0 %v308
    %1452 = vmatpush.msra.mxu0 %v306
    %1453 = vmatpush.msra.mxu0 %v304
    %1454 = vmatpush.msra.mxu0 %v302
    %1455 = vmatpush.msra.mxu0 %v300
    %1456 = vmatpush.msra.mxu0 %v298
    %1457 = vmatpush.msra.mxu0 %v296
    %1458 = vmatmul.f32.gmra.mxu0 %v1415
    %v1459 = vpop.f32.mrf.mxu0
    %v1460 = vadd.f32 %v538, %v1459
    %1461 = vmatmul.f32.gmra.mxu0 %v1417
    %v1462 = vpop.f32.mrf.mxu0
    %v1463 = vadd.f32 %v538, %v1462
    %1464 = vdwg.mxu0
    %v1465 = vadd.f32 %v1405, %v1437
    %v1466 = vadd.f32 %v1407, %v1440
    %v1467 = vxor.u32 %v1465, 2147483648
    %v1468 = vxor.u32 %v1466, 2147483648
    %v1469 = vmul.f32 %v1467, 1.442695
    %v1470 = vpow.pop %v1469
    %v1471 = vmul.f32 %v1468, 1.442695
    %v1472 = vpow.pop %v1471
    %v1473 = vadd.f32 %v1470, 1.0
    %v1474 = vadd.f32 %v1472, 1.0
    %v1475 = vrcp.pop %v1473
    %v1476 = vmul.f32 %v1473, %v1475
    %v1477 = vsub.f32 1.0, %v1476
    %v1478 = vmul.f32 %v1475, %v1477
    %v1479 = vadd.f32 %v1475, %v1478
    %vm1480 = vweird.f32 %v1473
    %vm1481 = vweird.f32 %v1475
    %vm1482 = vmor %vm1480, %vm1481
    %v1483 = vsel %vm1482, %v1475, %v1479
    %v1484 = vand.u32 2147483647, %v1473
    %vm1485 = vcmp.eq.f32.partialorder %v1484, 8.507059e+37
    %v1486 = vand.u32 %v1473, 2147483648
    %v1487 = vor.u32 1.1754944e-38, %v1486
    %v1488 = vsel %vm1485, %v1487, %v1483
    %v1489 = vmul.f32 1.0, %v1488
    %v1490 = vrcp.pop %v1474
    %v1491 = vmul.f32 %v1474, %v1490
    %v1492 = vsub.f32 1.0, %v1491
    %v1493 = vmul.f32 %v1490, %v1492
    %v1494 = vadd.f32 %v1490, %v1493
    %vm1495 = vweird.f32 %v1474
    %vm1496 = vweird.f32 %v1490
    %vm1497 = vmor %vm1495, %vm1496
    %v1498 = vsel %vm1497, %v1490, %v1494
    %v1499 = vand.u32 2147483647, %v1474
    %vm1500 = vcmp.eq.f32.partialorder %v1499, 8.507059e+37
    %v1501 = vand.u32 %v1474, 2147483648
    %v1502 = vor.u32 1.1754944e-38, %v1501
    %v1503 = vsel %vm1500, %v1502, %v1498
    %v1504 = vmul.f32 1.0, %v1503
    %v1505 = vmul.f32 %v1489, %v1460
    %v1506 = vmul.f32 %v1504, %v1463
    %v1507 = vadd.f32 %v1406, %v1505
    %v1508 = vadd.f32 %v1408, %v1506
    %v1509 = vtanh.pop %v1507
    %v1510 = vtanh.pop %v1508
    %v1511 = vsub.f32 1.0, %v1489
    %v1512 = vsub.f32 1.0, %v1504
    %1515 = vrot.lane.b32.xlu0 %v1509, 64
    %v1516 = vpop.permute.xlu0 %1515
    %1517 = vrot.lane.b32.xlu0 %v1510, 64
    %v1518 = vpop.permute.xlu0 %1517
    %v1521 = vmul.f32 %v1511, %v1516
    %v1522 = vmul.f32 %v1512, %v1518
    %v1523 = vmul.f32 %v1489, %v1400
    %v1524 = vmul.f32 %v1504, %v1401
    %v1525 = vadd.f32 %v1521, %v1523
    %v1526 = vadd.f32 %v1522, %v1524
    %v1527 = vld [vmem:[%s9] sm:$0xff]
    %v1528 = vld [vmem:[%s9 + $0x8] sm:$0xff]
    %v1529 = vld [vmem:[%s9 + $0x10] sm:$0xff]
    %v1530 = vld [vmem:[%s9 + $0x18] sm:$0xff]
    %v1531 = vld [vmem:[%s9 + $0x20] sm:$0xff]
    %v1532 = vld [vmem:[%s9 + $0x28] sm:$0xff]
    %v1533 = vld [vmem:[%s9 + $0x30] sm:$0xff]
    %v1534 = vld [vmem:[%s9 + $0x38] sm:$0xff]
    %v1535 = vld [vmem:[%s10] sm:$0x1]
    %v1537 = vperm.slane %v1535, 0
    %1541 = vrot.lane.b32.xlu0 %v1525, 64
    %v1542 = vpop.permute.xlu0 %1541
    %1543 = vrot.lane.b32.xlu0 %v1526, 64
    %v1544 = vpop.permute.xlu0 %1543
    %v1545 = vsel %vm141, %v1542, 0
    %v1547 = vsel %vm141, %v1544, 0
    %1549 = vmatpush.msra.mxu0 0.0
    %1550 = vmatpush.msra.mxu0 0.0
    %1551 = vmatpush.msra.mxu0 0.0
    %1552 = vmatpush.msra.mxu0 0.0
    %1553 = vmatpush.msra.mxu0 0.0
    %1554 = vmatpush.msra.mxu0 0.0
    %1555 = vmatpush.msra.mxu0 0.0
    %1556 = vmatpush.msra.mxu0 0.0
    %1557 = vmatpush.msra.mxu0 %v1534
    %1558 = vmatpush.msra.mxu0 %v1533
    %1559 = vmatpush.msra.mxu0 %v1532
    %1560 = vmatpush.msra.mxu0 %v1531
    %1561 = vmatpush.msra.mxu0 %v1530
    %1562 = vmatpush.msra.mxu0 %v1529
    %1563 = vmatpush.msra.mxu0 %v1528
    %1564 = vmatpush.msra.mxu0 %v1527
    %1565 = vmatmul.f32.gmra.mxu0 %v1545
    %v1566 = vpop.f32.mrf.mxu0
    %v1567 = vadd.f32 %v1537, %v1566
    %1568 = vmatmul.f32.gmra.mxu0 %v1547
    %v1569 = vpop.f32.mrf.mxu0
    %v1570 = vadd.f32 %v1537, %v1569
    %1571 = vdwg.mxu0
    %1572 = vst.msk [vmem:[#allocation10] sm:$0xff] %vm318, %v1570
    %v1573 = vld [vmem:[%s12] sm:$0xff]
    %v1574 = vld [vmem:[%s12 + $0x8] sm:$0xff]
    %v1575 = vld [vmem:[%s12 + $0x10] sm:$0xff]
    %v1576 = vld [vmem:[%s12 + $0x18] sm:$0xff]
    %v1577 = vld [vmem:[%s12 + $0x20] sm:$0xff]
    %v1578 = vld [vmem:[%s12 + $0x28] sm:$0xff]
    %v1579 = vld [vmem:[%s12 + $0x30] sm:$0xff]
    %v1580 = vld [vmem:[%s12 + $0x38] sm:$0xff]
    %v1581 = vld [vmem:[%s13] sm:$0xff]
    %v1582 = vld [vmem:[%s13 + $0x8] sm:$0xff]
    %v1583 = vld [vmem:[%s13 + $0x10] sm:$0xff]
    %v1584 = vld [vmem:[%s13 + $0x18] sm:$0xff]
    %v1585 = vld [vmem:[%s13 + $0x20] sm:$0xff]
    %v1586 = vld [vmem:[%s13 + $0x28] sm:$0xff]
    %v1587 = vld [vmem:[%s13 + $0x30] sm:$0xff]
    %v1588 = vld [vmem:[%s13 + $0x38] sm:$0xff]
    %v1589 = vld [vmem:[%s13 + $0x40] sm:$0xff]
    %v1590 = vld [vmem:[%s13 + $0x48] sm:$0xff]
    %v1591 = vld [vmem:[%s13 + $0x50] sm:$0xff]
    %v1592 = vld [vmem:[%s13 + $0x58] sm:$0xff]
    %v1593 = vld [vmem:[%s13 + $0x60] sm:$0xff]
    %v1594 = vld [vmem:[%s13 + $0x68] sm:$0xff]
    %v1595 = vld [vmem:[%s13 + $0x70] sm:$0xff]
    %v1596 = vld [vmem:[%s13 + $0x78] sm:$0xff]
    %v1597 = vld [vmem:[%s14] sm:$0x3]
    %v1599 = vperm.slane %v1597, 0
    %v1600 = vperm.slane %v1597, 1
    %v1604 = vsel %vm318, %v1567, 0
    %1606 = vmatpush.msra.mxu0 0.0
    %1607 = vmatpush.msra.mxu0 0.0
    %1608 = vmatpush.msra.mxu0 0.0
    %1609 = vmatpush.msra.mxu0 0.0
    %1610 = vmatpush.msra.mxu0 0.0
    %1611 = vmatpush.msra.mxu0 0.0
    %1612 = vmatpush.msra.mxu0 0.0
    %1613 = vmatpush.msra.mxu0 0.0
    %1614 = vmatpush.msra.mxu0 0.0
    %1615 = vmatpush.msra.mxu0 0.0
    %1616 = vmatpush.msra.mxu0 0.0
    %1617 = vmatpush.msra.mxu0 0.0
    %1618 = vmatpush.msra.mxu0 %v1579
    %1619 = vmatpush.msra.mxu0 %v1577
    %1620 = vmatpush.msra.mxu0 %v1575
    %1621 = vmatpush.msra.mxu0 %v1573
    %1622 = vmatmul.f32.gmra.mxu0 %v1604
    %v1623 = vpop.f32.mrf.mxu0
    %v1624 = vadd.f32 %v1599, %v1623
    %1625 = vdwg.mxu0
    %1626 = vmatpush.msra.mxu0 0.0
    %1627 = vmatpush.msra.mxu0 0.0
    %1628 = vmatpush.msra.mxu0 0.0
    %1629 = vmatpush.msra.mxu0 0.0
    %1630 = vmatpush.msra.mxu0 0.0
    %1631 = vmatpush.msra.mxu0 0.0
    %1632 = vmatpush.msra.mxu0 0.0
    %1633 = vmatpush.msra.mxu0 0.0
    %1634 = vmatpush.msra.mxu0 0.0
    %1635 = vmatpush.msra.mxu0 0.0
    %1636 = vmatpush.msra.mxu0 0.0
    %1637 = vmatpush.msra.mxu0 0.0
    %1638 = vmatpush.msra.mxu0 %v1580
    %1639 = vmatpush.msra.mxu0 %v1578
    %1640 = vmatpush.msra.mxu0 %v1576
    %1641 = vmatpush.msra.mxu0 %v1574
    %1642 = vmatmul.f32.gmra.mxu0 %v1604
    %v1643 = vpop.f32.mrf.mxu0
    %v1644 = vadd.f32 %v1600, %v1643
    %1645 = vdwg.mxu0
    %1646 = vst [vmem:[#allocation3] sm:$0xff] %v1624
    %1647 = vst [vmem:[#allocation3 + $0x8] sm:$0xff] %v1644
    %v1648 = vld [vmem:[%s1] sm:$0xff]
    %v1649 = vld [vmem:[%s1 + $0x8] sm:$0xff]
    %v1650 = vld [vmem:[%s1 + $0x10] sm:$0xff]
    %v1651 = vld [vmem:[%s1 + $0x18] sm:$0xff]
    %v1652 = vld [vmem:[%s1 + $0x20] sm:$0xff]
    %v1653 = vld [vmem:[%s1 + $0x28] sm:$0xff]
    %v1654 = vld [vmem:[%s1 + $0x30] sm:$0xff]
    %v1656 = vsel %vm318, %v1648, 0
    %v1659 = vsel %vm318, %v1649, 0
    %v1662 = vsel %vm318, %v1650, 0
    %v1665 = vsel %vm318, %v1651, 0
    %v1668 = vsel %vm318, %v1652, 0
    %v1671 = vsel %vm318, %v1653, 0
    %v1674 = vsel %vm318, %v1654, 0
    %1676 = vmatpush.msra.mxu0 0.0
    %1677 = vmatpush.msra.mxu0 0.0
    %1678 = vmatpush.msra.mxu0 0.0
    %1679 = vmatpush.msra.mxu0 0.0
    %1680 = vmatpush.msra.mxu0 0.0
    %1681 = vmatpush.msra.mxu0 0.0
    %1682 = vmatpush.msra.mxu0 0.0
    %1683 = vmatpush.msra.mxu0 0.0
    %1684 = vmatpush.msra.mxu0 0.0
    %1685 = vmatpush.msra.mxu0 0.0
    %1686 = vmatpush.msra.mxu0 0.0
    %1687 = vmatpush.msra.mxu0 0.0
    %1688 = vmatpush.msra.mxu0 %v1579
    %1689 = vmatpush.msra.mxu0 %v1577
    %1690 = vmatpush.msra.mxu0 %v1575
    %1691 = vmatpush.msra.mxu0 %v1573
    %1692 = vmatmul.f32.gmra.mxu0 %v1656
    %v1693 = vpop.f32.mrf.mxu0
    %v1694 = vadd.f32 %v1599, %v1693
    %1695 = vmatmul.f32.gmra.mxu0 %v1659
    %v1696 = vpop.f32.mrf.mxu0
    %v1697 = vadd.f32 %v1599, %v1696
    %1698 = vmatmul.f32.gmra.mxu0 %v1662
    %v1699 = vpop.f32.mrf.mxu0
    %v1700 = vadd.f32 %v1599, %v1699
    %1701 = vmatmul.f32.gmra.mxu0 %v1665
    %v1702 = vpop.f32.mrf.mxu0
    %v1703 = vadd.f32 %v1599, %v1702
    %1704 = vmatmul.f32.gmra.mxu0 %v1668
    %v1705 = vpop.f32.mrf.mxu0
    %v1706 = vadd.f32 %v1599, %v1705
    %1707 = vmatmul.f32.gmra.mxu0 %v1671
    %v1708 = vpop.f32.mrf.mxu0
    %v1709 = vadd.f32 %v1599, %v1708
    %1710 = vmatmul.f32.gmra.mxu0 %v1674
    %v1711 = vpop.f32.mrf.mxu0
    %v1712 = vadd.f32 %v1599, %v1711
    %1713 = vdwg.mxu0
    %1714 = vmatpush.msra.mxu0 0.0
    %1715 = vmatpush.msra.mxu0 0.0
    %1716 = vmatpush.msra.mxu0 0.0
    %1717 = vmatpush.msra.mxu0 0.0
    %1718 = vmatpush.msra.mxu0 0.0
    %1719 = vmatpush.msra.mxu0 0.0
    %1720 = vmatpush.msra.mxu0 0.0
    %1721 = vmatpush.msra.mxu0 0.0
    %1722 = vmatpush.msra.mxu0 0.0
    %1723 = vmatpush.msra.mxu0 0.0
    %1724 = vmatpush.msra.mxu0 0.0
    %1725 = vmatpush.msra.mxu0 0.0
    %1726 = vmatpush.msra.mxu0 %v1580
    %1727 = vmatpush.msra.mxu0 %v1578
    %1728 = vmatpush.msra.mxu0 %v1576
    %1729 = vmatpush.msra.mxu0 %v1574
    %1730 = vmatmul.f32.gmra.mxu0 %v1656
    %v1731 = vpop.f32.mrf.mxu0
    %v1732 = vadd.f32 %v1600, %v1731
    %1733 = vmatmul.f32.gmra.mxu0 %v1659
    %v1734 = vpop.f32.mrf.mxu0
    %v1735 = vadd.f32 %v1600, %v1734
    %1736 = vmatmul.f32.gmra.mxu0 %v1662
    %v1737 = vpop.f32.mrf.mxu0
    %v1738 = vadd.f32 %v1600, %v1737
    %1739 = vmatmul.f32.gmra.mxu0 %v1665
    %v1740 = vpop.f32.mrf.mxu0
    %v1741 = vadd.f32 %v1600, %v1740
    %1742 = vmatmul.f32.gmra.mxu0 %v1668
    %v1743 = vpop.f32.mrf.mxu0
    %v1744 = vadd.f32 %v1600, %v1743
    %1745 = vmatmul.f32.gmra.mxu0 %v1671
    %v1746 = vpop.f32.mrf.mxu0
    %v1747 = vadd.f32 %v1600, %v1746
    %1748 = vmatmul.f32.gmra.mxu0 %v1674
    %v1749 = vpop.f32.mrf.mxu0
    %v1750 = vadd.f32 %v1600, %v1749
    %1751 = vdwg.mxu0
    %1752 = vst [vmem:[#allocation3 + $0x10] sm:$0xff] %v1694
    %1753 = vst [vmem:[#allocation3 + $0x18] sm:$0xff] %v1732
    %1754 = vst [vmem:[#allocation3 + $0x20] sm:$0xff] %v1697
    %1755 = vst [vmem:[#allocation3 + $0x28] sm:$0xff] %v1735
    %1756 = vst [vmem:[#allocation3 + $0x30] sm:$0xff] %v1700
    %1757 = vst [vmem:[#allocation3 + $0x38] sm:$0xff] %v1738
    %1758 = vst [vmem:[#allocation3 + $0x40] sm:$0xff] %v1703
    %1759 = vst [vmem:[#allocation3 + $0x48] sm:$0xff] %v1741
    %1760 = vst [vmem:[#allocation3 + $0x50] sm:$0xff] %v1706
    %1761 = vst [vmem:[#allocation3 + $0x58] sm:$0xff] %v1744
    %1762 = vst [vmem:[#allocation3 + $0x60] sm:$0xff] %v1709
    %1763 = vst [vmem:[#allocation3 + $0x68] sm:$0xff] %v1747
    %1764 = vst [vmem:[#allocation3 + $0x70] sm:$0xff] %v1712
    %1765 = vst [vmem:[#allocation3 + $0x78] sm:$0xff] %v1750
    %s1766 = smul.u32 0, 2
    %s1767 = smul.addr %s1766, 8
    %s1768 = scalar_lea.vmem [#allocation3], %s1767
    %v1769 = vld [vmem:[%s1768] sm:$0xff]
    %v1770 = vld [vmem:[%s1768 + $0x8] sm:$0xff]
    %1771 = vmatpush.msra.mxu0 0.0
    %1772 = vmatpush.msra.mxu0 0.0
    %1773 = vmatpush.msra.mxu0 0.0
    %1774 = vmatpush.msra.mxu0 0.0
    %1775 = vmatpush.msra.mxu0 0.0
    %1776 = vmatpush.msra.mxu0 0.0
    %1777 = vmatpush.msra.mxu0 0.0
    %1778 = vmatpush.msra.mxu0 0.0
    %1779 = vmatpush.msra.mxu0 %v1595
    %1780 = vmatpush.msra.mxu0 %v1593
    %1781 = vmatpush.msra.mxu0 %v1591
    %1782 = vmatpush.msra.mxu0 %v1589
    %1783 = vmatpush.msra.mxu0 %v1587
    %1784 = vmatpush.msra.mxu0 %v1585
    %1785 = vmatpush.msra.mxu0 %v1583
    %1786 = vmatpush.msra.mxu0 %v1581
    %1787 = vmatmul.f32.gmra.mxu0 %v542
    %v1788 = vpop.f32.mrf.mxu0
    %v1789 = vadd.f32 0.0, %v1788
    %1790 = vdwg.mxu0
    %1791 = vmatpush.msra.mxu0 0.0
    %1792 = vmatpush.msra.mxu0 0.0
    %1793 = vmatpush.msra.mxu0 0.0
    %1794 = vmatpush.msra.mxu0 0.0
    %1795 = vmatpush.msra.mxu0 0.0
    %1796 = vmatpush.msra.mxu0 0.0
    %1797 = vmatpush.msra.mxu0 0.0
    %1798 = vmatpush.msra.mxu0 0.0
    %1799 = vmatpush.msra.mxu0 %v1596
    %1800 = vmatpush.msra.mxu0 %v1594
    %1801 = vmatpush.msra.mxu0 %v1592
    %1802 = vmatpush.msra.mxu0 %v1590
    %1803 = vmatpush.msra.mxu0 %v1588
    %1804 = vmatpush.msra.mxu0 %v1586
    %1805 = vmatpush.msra.mxu0 %v1584
    %1806 = vmatpush.msra.mxu0 %v1582
    %1807 = vmatmul.f32.gmra.mxu0 %v542
    %v1808 = vpop.f32.mrf.mxu0
    %v1809 = vadd.f32 0.0, %v1808
    %1810 = vdwg.mxu0
    %v1811 = vadd.f32 %v1769, %v1789
    %v1812 = vadd.f32 %v1770, %v1809
    %v1813 = vxor.u32 %v1811, 2147483648
    %v1814 = vmul.f32 %v1813, 1.442695
    %v1815 = vpow.pop %v1814
    %v1816 = vadd.f32 %v1815, 1.0
    %v1817 = vrcp.pop %v1816
    %v1818 = vmul.f32 %v1816, %v1817
    %v1819 = vsub.f32 1.0, %v1818
    %v1820 = vmul.f32 %v1817, %v1819
    %v1821 = vadd.f32 %v1817, %v1820
    %vm1822 = vweird.f32 %v1816
    %vm1823 = vweird.f32 %v1817
    %vm1824 = vmor %vm1822, %vm1823
    %v1825 = vsel %vm1824, %v1817, %v1821
    %v1826 = vand.u32 2147483647, %v1816
    %vm1827 = vcmp.eq.f32.partialorder %v1826, 8.507059e+37
    %v1828 = vand.u32 %v1816, 2147483648
    %v1829 = vor.u32 1.1754944e-38, %v1828
    %v1830 = vsel %vm1827, %v1829, %v1825
    %v1831 = vmul.f32 1.0, %v1830
    %v1832 = vtanh.pop %v1812
    %v1833 = vxor.u32 %v1812, 2147483648
    %v1834 = vmul.f32 %v1833, 1.442695
    %v1835 = vpow.pop %v1834
    %v1836 = vadd.f32 %v1835, 1.0
    %v1837 = vrcp.pop %v1836
    %v1838 = vmul.f32 %v1836, %v1837
    %v1839 = vsub.f32 1.0, %v1838
    %v1840 = vmul.f32 %v1837, %v1839
    %v1841 = vadd.f32 %v1837, %v1840
    %vm1842 = vweird.f32 %v1836
    %vm1843 = vweird.f32 %v1837
    %vm1844 = vmor %vm1842, %vm1843
    %v1845 = vsel %vm1844, %v1837, %v1841
    %v1846 = vand.u32 2147483647, %v1836
    %vm1847 = vcmp.eq.f32.partialorder %v1846, 8.507059e+37
    %v1848 = vand.u32 %v1836, 2147483648
    %v1849 = vor.u32 1.1754944e-38, %v1848
    %v1850 = vsel %vm1847, %v1849, %v1845
    %v1851 = vmul.f32 1.0, %v1850
    %v1852 = vmul.f32 %v1831, 0.0
    %v1853 = vmul.f32 %v1831, %v1832
    %1855 = vrot.lane.b32.xlu0 %v1853, 64
    %v1856 = vpop.permute.xlu0 %1855
    %v1858 = vadd.f32 %v1852, %v1856
    %v1859 = vtanh.pop %v1858
    %v1860 = vmul.f32 %v1851, %v1859
    %1862 = vrot.lane.b32.xlu0 %v1860, 64
    %v1863 = vpop.permute.xlu0 %1862
    %1865 = vst.msk [vmem:[#allocation4] sm:$0xff] %vm141, %v1863
    %s1866 = smul.u32 1, 2
    %s1867 = smul.addr %s1866, 8
    %s1868 = scalar_lea.vmem [#allocation3], %s1867
    %v1869 = vld [vmem:[%s1868] sm:$0xff]
    %v1870 = vld [vmem:[%s1868 + $0x8] sm:$0xff]
    %v1871 = vsel %vm141, %v1863, 0
    %1873 = vmatpush.msra.mxu0 0.0
    %1874 = vmatpush.msra.mxu0 0.0
    %1875 = vmatpush.msra.mxu0 0.0
    %1876 = vmatpush.msra.mxu0 0.0
    %1877 = vmatpush.msra.mxu0 0.0
    %1878 = vmatpush.msra.mxu0 0.0
    %1879 = vmatpush.msra.mxu0 0.0
    %1880 = vmatpush.msra.mxu0 0.0
    %1881 = vmatpush.msra.mxu0 %v1595
    %1882 = vmatpush.msra.mxu0 %v1593
    %1883 = vmatpush.msra.mxu0 %v1591
    %1884 = vmatpush.msra.mxu0 %v1589
    %1885 = vmatpush.msra.mxu0 %v1587
    %1886 = vmatpush.msra.mxu0 %v1585
    %1887 = vmatpush.msra.mxu0 %v1583
    %1888 = vmatpush.msra.mxu0 %v1581
    %1889 = vmatmul.f32.gmra.mxu0 %v1871
    %v1890 = vpop.f32.mrf.mxu0
    %v1891 = vadd.f32 0.0, %v1890
    %1892 = vdwg.mxu0
    %1893 = vmatpush.msra.mxu0 0.0
    %1894 = vmatpush.msra.mxu0 0.0
    %1895 = vmatpush.msra.mxu0 0.0
    %1896 = vmatpush.msra.mxu0 0.0
    %1897 = vmatpush.msra.mxu0 0.0
    %1898 = vmatpush.msra.mxu0 0.0
    %1899 = vmatpush.msra.mxu0 0.0
    %1900 = vmatpush.msra.mxu0 0.0
    %1901 = vmatpush.msra.mxu0 %v1596
    %1902 = vmatpush.msra.mxu0 %v1594
    %1903 = vmatpush.msra.mxu0 %v1592
    %1904 = vmatpush.msra.mxu0 %v1590
    %1905 = vmatpush.msra.mxu0 %v1588
    %1906 = vmatpush.msra.mxu0 %v1586
    %1907 = vmatpush.msra.mxu0 %v1584
    %1908 = vmatpush.msra.mxu0 %v1582
    %1909 = vmatmul.f32.gmra.mxu0 %v1871
    %v1910 = vpop.f32.mrf.mxu0
    %v1911 = vadd.f32 0.0, %v1910
    %1912 = vdwg.mxu0
    %v1913 = vadd.f32 %v1869, %v1891
    %v1914 = vadd.f32 %v1870, %v1911
    %v1915 = vxor.u32 %v1913, 2147483648
    %v1916 = vmul.f32 %v1915, 1.442695
    %v1917 = vpow.pop %v1916
    %v1918 = vadd.f32 %v1917, 1.0
    %v1919 = vrcp.pop %v1918
    %v1920 = vmul.f32 %v1918, %v1919
    %v1921 = vsub.f32 1.0, %v1920
    %v1922 = vmul.f32 %v1919, %v1921
    %v1923 = vadd.f32 %v1919, %v1922
    %vm1924 = vweird.f32 %v1918
    %vm1925 = vweird.f32 %v1919
    %vm1926 = vmor %vm1924, %vm1925
    %v1927 = vsel %vm1926, %v1919, %v1923
    %v1928 = vand.u32 2147483647, %v1918
    %vm1929 = vcmp.eq.f32.partialorder %v1928, 8.507059e+37
    %v1930 = vand.u32 %v1918, 2147483648
    %v1931 = vor.u32 1.1754944e-38, %v1930
    %v1932 = vsel %vm1929, %v1931, %v1927
    %v1933 = vmul.f32 1.0, %v1932
    %v1934 = vtanh.pop %v1914
    %v1935 = vxor.u32 %v1914, 2147483648
    %v1936 = vmul.f32 %v1935, 1.442695
    %v1937 = vpow.pop %v1936
    %v1938 = vadd.f32 %v1937, 1.0
    %v1939 = vrcp.pop %v1938
    %v1940 = vmul.f32 %v1938, %v1939
    %v1941 = vsub.f32 1.0, %v1940
    %v1942 = vmul.f32 %v1939, %v1941
    %v1943 = vadd.f32 %v1939, %v1942
    %vm1944 = vweird.f32 %v1938
    %vm1945 = vweird.f32 %v1939
    %vm1946 = vmor %vm1944, %vm1945
    %v1947 = vsel %vm1946, %v1939, %v1943
    %v1948 = vand.u32 2147483647, %v1938
    %vm1949 = vcmp.eq.f32.partialorder %v1948, 8.507059e+37
    %v1950 = vand.u32 %v1938, 2147483648
    %v1951 = vor.u32 1.1754944e-38, %v1950
    %v1952 = vsel %vm1949, %v1951, %v1947
    %v1953 = vmul.f32 1.0, %v1952
    %v1954 = vmul.f32 %v1933, %v1858
    %v1955 = vmul.f32 %v1933, %v1934
    %1957 = vrot.lane.b32.xlu0 %v1955, 64
    %v1958 = vpop.permute.xlu0 %1957
    %v1960 = vadd.f32 %v1954, %v1958
    %v1961 = vtanh.pop %v1960
    %v1962 = vmul.f32 %v1953, %v1961
    %1964 = vrot.lane.b32.xlu0 %v1962, 64
    %v1965 = vpop.permute.xlu0 %1964
    %s1967 = scalar_lea.vmem [#allocation4], 8
    %1968 = vst.msk [vmem:[%s1967] sm:$0xff] %vm141, %v1965
    %s1969 = smul.u32 2, 2
    %s1970 = smul.addr %s1969, 8
    %s1971 = scalar_lea.vmem [#allocation3], %s1970
    %v1972 = vld [vmem:[%s1971] sm:$0xff]
    %v1973 = vld [vmem:[%s1971 + $0x8] sm:$0xff]
    %v1974 = vsel %vm141, %v1965, 0
    %1976 = vmatpush.msra.mxu0 0.0
    %1977 = vmatpush.msra.mxu0 0.0
    %1978 = vmatpush.msra.mxu0 0.0
    %1979 = vmatpush.msra.mxu0 0.0
    %1980 = vmatpush.msra.mxu0 0.0
    %1981 = vmatpush.msra.mxu0 0.0
    %1982 = vmatpush.msra.mxu0 0.0
    %1983 = vmatpush.msra.mxu0 0.0
    %1984 = vmatpush.msra.mxu0 %v1595
    %1985 = vmatpush.msra.mxu0 %v1593
    %1986 = vmatpush.msra.mxu0 %v1591
    %1987 = vmatpush.msra.mxu0 %v1589
    %1988 = vmatpush.msra.mxu0 %v1587
    %1989 = vmatpush.msra.mxu0 %v1585
    %1990 = vmatpush.msra.mxu0 %v1583
    %1991 = vmatpush.msra.mxu0 %v1581
    %1992 = vmatmul.f32.gmra.mxu0 %v1974
    %v1993 = vpop.f32.mrf.mxu0
    %v1994 = vadd.f32 0.0, %v1993
    %1995 = vdwg.mxu0
    %1996 = vmatpush.msra.mxu0 0.0
    %1997 = vmatpush.msra.mxu0 0.0
    %1998 = vmatpush.msra.mxu0 0.0
    %1999 = vmatpush.msra.mxu0 0.0
    %2000 = vmatpush.msra.mxu0 0.0
    %2001 = vmatpush.msra.mxu0 0.0
    %2002 = vmatpush.msra.mxu0 0.0
    %2003 = vmatpush.msra.mxu0 0.0
    %2004 = vmatpush.msra.mxu0 %v1596
    %2005 = vmatpush.msra.mxu0 %v1594
    %2006 = vmatpush.msra.mxu0 %v1592
    %2007 = vmatpush.msra.mxu0 %v1590
    %2008 = vmatpush.msra.mxu0 %v1588
    %2009 = vmatpush.msra.mxu0 %v1586
    %2010 = vmatpush.msra.mxu0 %v1584
    %2011 = vmatpush.msra.mxu0 %v1582
    %2012 = vmatmul.f32.gmra.mxu0 %v1974
    %v2013 = vpop.f32.mrf.mxu0
    %v2014 = vadd.f32 0.0, %v2013
    %2015 = vdwg.mxu0
    %v2016 = vadd.f32 %v1972, %v1994
    %v2017 = vadd.f32 %v1973, %v2014
    %v2018 = vxor.u32 %v2016, 2147483648
    %v2019 = vmul.f32 %v2018, 1.442695
    %v2020 = vpow.pop %v2019
    %v2021 = vadd.f32 %v2020, 1.0
    %v2022 = vrcp.pop %v2021
    %v2023 = vmul.f32 %v2021, %v2022
    %v2024 = vsub.f32 1.0, %v2023
    %v2025 = vmul.f32 %v2022, %v2024
    %v2026 = vadd.f32 %v2022, %v2025
    %vm2027 = vweird.f32 %v2021
    %vm2028 = vweird.f32 %v2022
    %vm2029 = vmor %vm2027, %vm2028
    %v2030 = vsel %vm2029, %v2022, %v2026
    %v2031 = vand.u32 2147483647, %v2021
    %vm2032 = vcmp.eq.f32.partialorder %v2031, 8.507059e+37
    %v2033 = vand.u32 %v2021, 2147483648
    %v2034 = vor.u32 1.1754944e-38, %v2033
    %v2035 = vsel %vm2032, %v2034, %v2030
    %v2036 = vmul.f32 1.0, %v2035
    %v2037 = vtanh.pop %v2017
    %v2038 = vxor.u32 %v2017, 2147483648
    %v2039 = vmul.f32 %v2038, 1.442695
    %v2040 = vpow.pop %v2039
    %v2041 = vadd.f32 %v2040, 1.0
    %v2042 = vrcp.pop %v2041
    %v2043 = vmul.f32 %v2041, %v2042
    %v2044 = vsub.f32 1.0, %v2043
    %v2045 = vmul.f32 %v2042, %v2044
    %v2046 = vadd.f32 %v2042, %v2045
    %vm2047 = vweird.f32 %v2041
    %vm2048 = vweird.f32 %v2042
    %vm2049 = vmor %vm2047, %vm2048
    %v2050 = vsel %vm2049, %v2042, %v2046
    %v2051 = vand.u32 2147483647, %v2041
    %vm2052 = vcmp.eq.f32.partialorder %v2051, 8.507059e+37
    %v2053 = vand.u32 %v2041, 2147483648
    %v2054 = vor.u32 1.1754944e-38, %v2053
    %v2055 = vsel %vm2052, %v2054, %v2050
    %v2056 = vmul.f32 1.0, %v2055
    %v2057 = vmul.f32 %v2036, %v1960
    %v2058 = vmul.f32 %v2036, %v2037
    %2060 = vrot.lane.b32.xlu0 %v2058, 64
    %v2061 = vpop.permute.xlu0 %2060
    %v2063 = vadd.f32 %v2057, %v2061
    %v2064 = vtanh.pop %v2063
    %v2065 = vmul.f32 %v2056, %v2064
    %2067 = vrot.lane.b32.xlu0 %v2065, 64
    %v2068 = vpop.permute.xlu0 %2067
    %s2070 = scalar_lea.vmem [#allocation4], 16
    %2071 = vst.msk [vmem:[%s2070] sm:$0xff] %vm141, %v2068
    %s2072 = smul.u32 3, 2
    %s2073 = smul.addr %s2072, 8
    %s2074 = scalar_lea.vmem [#allocation3], %s2073
    %v2075 = vld [vmem:[%s2074] sm:$0xff]
    %v2076 = vld [vmem:[%s2074 + $0x8] sm:$0xff]
    %v2077 = vsel %vm141, %v2068, 0
    %2079 = vmatpush.msra.mxu0 0.0
    %2080 = vmatpush.msra.mxu0 0.0
    %2081 = vmatpush.msra.mxu0 0.0
    %2082 = vmatpush.msra.mxu0 0.0
    %2083 = vmatpush.msra.mxu0 0.0
    %2084 = vmatpush.msra.mxu0 0.0
    %2085 = vmatpush.msra.mxu0 0.0
    %2086 = vmatpush.msra.mxu0 0.0
    %2087 = vmatpush.msra.mxu0 %v1595
    %2088 = vmatpush.msra.mxu0 %v1593
    %2089 = vmatpush.msra.mxu0 %v1591
    %2090 = vmatpush.msra.mxu0 %v1589
    %2091 = vmatpush.msra.mxu0 %v1587
    %2092 = vmatpush.msra.mxu0 %v1585
    %2093 = vmatpush.msra.mxu0 %v1583
    %2094 = vmatpush.msra.mxu0 %v1581
    %2095 = vmatmul.f32.gmra.mxu0 %v2077
    %v2096 = vpop.f32.mrf.mxu0
    %v2097 = vadd.f32 0.0, %v2096
    %2098 = vdwg.mxu0
    %2099 = vmatpush.msra.mxu0 0.0
    %2100 = vmatpush.msra.mxu0 0.0
    %2101 = vmatpush.msra.mxu0 0.0
    %2102 = vmatpush.msra.mxu0 0.0
    %2103 = vmatpush.msra.mxu0 0.0
    %2104 = vmatpush.msra.mxu0 0.0
    %2105 = vmatpush.msra.mxu0 0.0
    %2106 = vmatpush.msra.mxu0 0.0
    %2107 = vmatpush.msra.mxu0 %v1596
    %2108 = vmatpush.msra.mxu0 %v1594
    %2109 = vmatpush.msra.mxu0 %v1592
    %2110 = vmatpush.msra.mxu0 %v1590
    %2111 = vmatpush.msra.mxu0 %v1588
    %2112 = vmatpush.msra.mxu0 %v1586
    %2113 = vmatpush.msra.mxu0 %v1584
    %2114 = vmatpush.msra.mxu0 %v1582
    %2115 = vmatmul.f32.gmra.mxu0 %v2077
    %v2116 = vpop.f32.mrf.mxu0
    %v2117 = vadd.f32 0.0, %v2116
    %2118 = vdwg.mxu0
    %v2119 = vadd.f32 %v2075, %v2097
    %v2120 = vadd.f32 %v2076, %v2117
    %v2121 = vxor.u32 %v2119, 2147483648
    %v2122 = vmul.f32 %v2121, 1.442695
    %v2123 = vpow.pop %v2122
    %v2124 = vadd.f32 %v2123, 1.0
    %v2125 = vrcp.pop %v2124
    %v2126 = vmul.f32 %v2124, %v2125
    %v2127 = vsub.f32 1.0, %v2126
    %v2128 = vmul.f32 %v2125, %v2127
    %v2129 = vadd.f32 %v2125, %v2128
    %vm2130 = vweird.f32 %v2124
    %vm2131 = vweird.f32 %v2125
    %vm2132 = vmor %vm2130, %vm2131
    %v2133 = vsel %vm2132, %v2125, %v2129
    %v2134 = vand.u32 2147483647, %v2124
    %vm2135 = vcmp.eq.f32.partialorder %v2134, 8.507059e+37
    %v2136 = vand.u32 %v2124, 2147483648
    %v2137 = vor.u32 1.1754944e-38, %v2136
    %v2138 = vsel %vm2135, %v2137, %v2133
    %v2139 = vmul.f32 1.0, %v2138
    %v2140 = vtanh.pop %v2120
    %v2141 = vxor.u32 %v2120, 2147483648
    %v2142 = vmul.f32 %v2141, 1.442695
    %v2143 = vpow.pop %v2142
    %v2144 = vadd.f32 %v2143, 1.0
    %v2145 = vrcp.pop %v2144
    %v2146 = vmul.f32 %v2144, %v2145
    %v2147 = vsub.f32 1.0, %v2146
    %v2148 = vmul.f32 %v2145, %v2147
    %v2149 = vadd.f32 %v2145, %v2148
    %vm2150 = vweird.f32 %v2144
    %vm2151 = vweird.f32 %v2145
    %vm2152 = vmor %vm2150, %vm2151
    %v2153 = vsel %vm2152, %v2145, %v2149
    %v2154 = vand.u32 2147483647, %v2144
    %vm2155 = vcmp.eq.f32.partialorder %v2154, 8.507059e+37
    %v2156 = vand.u32 %v2144, 2147483648
    %v2157 = vor.u32 1.1754944e-38, %v2156
    %v2158 = vsel %vm2155, %v2157, %v2153
    %v2159 = vmul.f32 1.0, %v2158
    %v2160 = vmul.f32 %v2139, %v2063
    %v2161 = vmul.f32 %v2139, %v2140
    %2163 = vrot.lane.b32.xlu0 %v2161, 64
    %v2164 = vpop.permute.xlu0 %2163
    %v2166 = vadd.f32 %v2160, %v2164
    %v2167 = vtanh.pop %v2166
    %v2168 = vmul.f32 %v2159, %v2167
    %2170 = vrot.lane.b32.xlu0 %v2168, 64
    %v2171 = vpop.permute.xlu0 %2170
    %s2173 = scalar_lea.vmem [#allocation4], 24
    %2174 = vst.msk [vmem:[%s2173] sm:$0xff] %vm141, %v2171
    %s2175 = smul.u32 4, 2
    %s2176 = smul.addr %s2175, 8
    %s2177 = scalar_lea.vmem [#allocation3], %s2176
    %v2178 = vld [vmem:[%s2177] sm:$0xff]
    %v2179 = vld [vmem:[%s2177 + $0x8] sm:$0xff]
    %v2180 = vsel %vm141, %v2171, 0
    %2182 = vmatpush.msra.mxu0 0.0
    %2183 = vmatpush.msra.mxu0 0.0
    %2184 = vmatpush.msra.mxu0 0.0
    %2185 = vmatpush.msra.mxu0 0.0
    %2186 = vmatpush.msra.mxu0 0.0
    %2187 = vmatpush.msra.mxu0 0.0
    %2188 = vmatpush.msra.mxu0 0.0
    %2189 = vmatpush.msra.mxu0 0.0
    %2190 = vmatpush.msra.mxu0 %v1595
    %2191 = vmatpush.msra.mxu0 %v1593
    %2192 = vmatpush.msra.mxu0 %v1591
    %2193 = vmatpush.msra.mxu0 %v1589
    %2194 = vmatpush.msra.mxu0 %v1587
    %2195 = vmatpush.msra.mxu0 %v1585
    %2196 = vmatpush.msra.mxu0 %v1583
    %2197 = vmatpush.msra.mxu0 %v1581
    %2198 = vmatmul.f32.gmra.mxu0 %v2180
    %v2199 = vpop.f32.mrf.mxu0
    %v2200 = vadd.f32 0.0, %v2199
    %2201 = vdwg.mxu0
    %2202 = vmatpush.msra.mxu0 0.0
    %2203 = vmatpush.msra.mxu0 0.0
    %2204 = vmatpush.msra.mxu0 0.0
    %2205 = vmatpush.msra.mxu0 0.0
    %2206 = vmatpush.msra.mxu0 0.0
    %2207 = vmatpush.msra.mxu0 0.0
    %2208 = vmatpush.msra.mxu0 0.0
    %2209 = vmatpush.msra.mxu0 0.0
    %2210 = vmatpush.msra.mxu0 %v1596
    %2211 = vmatpush.msra.mxu0 %v1594
    %2212 = vmatpush.msra.mxu0 %v1592
    %2213 = vmatpush.msra.mxu0 %v1590
    %2214 = vmatpush.msra.mxu0 %v1588
    %2215 = vmatpush.msra.mxu0 %v1586
    %2216 = vmatpush.msra.mxu0 %v1584
    %2217 = vmatpush.msra.mxu0 %v1582
    %2218 = vmatmul.f32.gmra.mxu0 %v2180
    %v2219 = vpop.f32.mrf.mxu0
    %v2220 = vadd.f32 0.0, %v2219
    %2221 = vdwg.mxu0
    %v2222 = vadd.f32 %v2178, %v2200
    %v2223 = vadd.f32 %v2179, %v2220
    %v2224 = vxor.u32 %v2222, 2147483648
    %v2225 = vmul.f32 %v2224, 1.442695
    %v2226 = vpow.pop %v2225
    %v2227 = vadd.f32 %v2226, 1.0
    %v2228 = vrcp.pop %v2227
    %v2229 = vmul.f32 %v2227, %v2228
    %v2230 = vsub.f32 1.0, %v2229
    %v2231 = vmul.f32 %v2228, %v2230
    %v2232 = vadd.f32 %v2228, %v2231
    %vm2233 = vweird.f32 %v2227
    %vm2234 = vweird.f32 %v2228
    %vm2235 = vmor %vm2233, %vm2234
    %v2236 = vsel %vm2235, %v2228, %v2232
    %v2237 = vand.u32 2147483647, %v2227
    %vm2238 = vcmp.eq.f32.partialorder %v2237, 8.507059e+37
    %v2239 = vand.u32 %v2227, 2147483648
    %v2240 = vor.u32 1.1754944e-38, %v2239
    %v2241 = vsel %vm2238, %v2240, %v2236
    %v2242 = vmul.f32 1.0, %v2241
    %v2243 = vtanh.pop %v2223
    %v2244 = vxor.u32 %v2223, 2147483648
    %v2245 = vmul.f32 %v2244, 1.442695
    %v2246 = vpow.pop %v2245
    %v2247 = vadd.f32 %v2246, 1.0
    %v2248 = vrcp.pop %v2247
    %v2249 = vmul.f32 %v2247, %v2248
    %v2250 = vsub.f32 1.0, %v2249
    %v2251 = vmul.f32 %v2248, %v2250
    %v2252 = vadd.f32 %v2248, %v2251
    %vm2253 = vweird.f32 %v2247
    %vm2254 = vweird.f32 %v2248
    %vm2255 = vmor %vm2253, %vm2254
    %v2256 = vsel %vm2255, %v2248, %v2252
    %v2257 = vand.u32 2147483647, %v2247
    %vm2258 = vcmp.eq.f32.partialorder %v2257, 8.507059e+37
    %v2259 = vand.u32 %v2247, 2147483648
    %v2260 = vor.u32 1.1754944e-38, %v2259
    %v2261 = vsel %vm2258, %v2260, %v2256
    %v2262 = vmul.f32 1.0, %v2261
    %v2263 = vmul.f32 %v2242, %v2166
    %v2264 = vmul.f32 %v2242, %v2243
    %2266 = vrot.lane.b32.xlu0 %v2264, 64
    %v2267 = vpop.permute.xlu0 %2266
    %v2269 = vadd.f32 %v2263, %v2267
    %v2270 = vtanh.pop %v2269
    %v2271 = vmul.f32 %v2262, %v2270
    %2273 = vrot.lane.b32.xlu0 %v2271, 64
    %v2274 = vpop.permute.xlu0 %2273
    %s2276 = scalar_lea.vmem [#allocation4], 32
    %2277 = vst.msk [vmem:[%s2276] sm:$0xff] %vm141, %v2274
    %s2278 = smul.u32 5, 2
    %s2279 = smul.addr %s2278, 8
    %s2280 = scalar_lea.vmem [#allocation3], %s2279
    %v2281 = vld [vmem:[%s2280] sm:$0xff]
    %v2282 = vld [vmem:[%s2280 + $0x8] sm:$0xff]
    %v2283 = vsel %vm141, %v2274, 0
    %2285 = vmatpush.msra.mxu0 0.0
    %2286 = vmatpush.msra.mxu0 0.0
    %2287 = vmatpush.msra.mxu0 0.0
    %2288 = vmatpush.msra.mxu0 0.0
    %2289 = vmatpush.msra.mxu0 0.0
    %2290 = vmatpush.msra.mxu0 0.0
    %2291 = vmatpush.msra.mxu0 0.0
    %2292 = vmatpush.msra.mxu0 0.0
    %2293 = vmatpush.msra.mxu0 %v1595
    %2294 = vmatpush.msra.mxu0 %v1593
    %2295 = vmatpush.msra.mxu0 %v1591
    %2296 = vmatpush.msra.mxu0 %v1589
    %2297 = vmatpush.msra.mxu0 %v1587
    %2298 = vmatpush.msra.mxu0 %v1585
    %2299 = vmatpush.msra.mxu0 %v1583
    %2300 = vmatpush.msra.mxu0 %v1581
    %2301 = vmatmul.f32.gmra.mxu0 %v2283
    %v2302 = vpop.f32.mrf.mxu0
    %v2303 = vadd.f32 0.0, %v2302
    %2304 = vdwg.mxu0
    %2305 = vmatpush.msra.mxu0 0.0
    %2306 = vmatpush.msra.mxu0 0.0
    %2307 = vmatpush.msra.mxu0 0.0
    %2308 = vmatpush.msra.mxu0 0.0
    %2309 = vmatpush.msra.mxu0 0.0
    %2310 = vmatpush.msra.mxu0 0.0
    %2311 = vmatpush.msra.mxu0 0.0
    %2312 = vmatpush.msra.mxu0 0.0
    %2313 = vmatpush.msra.mxu0 %v1596
    %2314 = vmatpush.msra.mxu0 %v1594
    %2315 = vmatpush.msra.mxu0 %v1592
    %2316 = vmatpush.msra.mxu0 %v1590
    %2317 = vmatpush.msra.mxu0 %v1588
    %2318 = vmatpush.msra.mxu0 %v1586
    %2319 = vmatpush.msra.mxu0 %v1584
    %2320 = vmatpush.msra.mxu0 %v1582
    %2321 = vmatmul.f32.gmra.mxu0 %v2283
    %v2322 = vpop.f32.mrf.mxu0
    %v2323 = vadd.f32 0.0, %v2322
    %2324 = vdwg.mxu0
    %v2325 = vadd.f32 %v2281, %v2303
    %v2326 = vadd.f32 %v2282, %v2323
    %v2327 = vxor.u32 %v2325, 2147483648
    %v2328 = vmul.f32 %v2327, 1.442695
    %v2329 = vpow.pop %v2328
    %v2330 = vadd.f32 %v2329, 1.0
    %v2331 = vrcp.pop %v2330
    %v2332 = vmul.f32 %v2330, %v2331
    %v2333 = vsub.f32 1.0, %v2332
    %v2334 = vmul.f32 %v2331, %v2333
    %v2335 = vadd.f32 %v2331, %v2334
    %vm2336 = vweird.f32 %v2330
    %vm2337 = vweird.f32 %v2331
    %vm2338 = vmor %vm2336, %vm2337
    %v2339 = vsel %vm2338, %v2331, %v2335
    %v2340 = vand.u32 2147483647, %v2330
    %vm2341 = vcmp.eq.f32.partialorder %v2340, 8.507059e+37
    %v2342 = vand.u32 %v2330, 2147483648
    %v2343 = vor.u32 1.1754944e-38, %v2342
    %v2344 = vsel %vm2341, %v2343, %v2339
    %v2345 = vmul.f32 1.0, %v2344
    %v2346 = vtanh.pop %v2326
    %v2347 = vxor.u32 %v2326, 2147483648
    %v2348 = vmul.f32 %v2347, 1.442695
    %v2349 = vpow.pop %v2348
    %v2350 = vadd.f32 %v2349, 1.0
    %v2351 = vrcp.pop %v2350
    %v2352 = vmul.f32 %v2350, %v2351
    %v2353 = vsub.f32 1.0, %v2352
    %v2354 = vmul.f32 %v2351, %v2353
    %v2355 = vadd.f32 %v2351, %v2354
    %vm2356 = vweird.f32 %v2350
    %vm2357 = vweird.f32 %v2351
    %vm2358 = vmor %vm2356, %vm2357
    %v2359 = vsel %vm2358, %v2351, %v2355
    %v2360 = vand.u32 2147483647, %v2350
    %vm2361 = vcmp.eq.f32.partialorder %v2360, 8.507059e+37
    %v2362 = vand.u32 %v2350, 2147483648
    %v2363 = vor.u32 1.1754944e-38, %v2362
    %v2364 = vsel %vm2361, %v2363, %v2359
    %v2365 = vmul.f32 1.0, %v2364
    %v2366 = vmul.f32 %v2345, %v2269
    %v2367 = vmul.f32 %v2345, %v2346
    %2369 = vrot.lane.b32.xlu0 %v2367, 64
    %v2370 = vpop.permute.xlu0 %2369
    %v2372 = vadd.f32 %v2366, %v2370
    %v2373 = vtanh.pop %v2372
    %v2374 = vmul.f32 %v2365, %v2373
    %2376 = vrot.lane.b32.xlu0 %v2374, 64
    %v2377 = vpop.permute.xlu0 %2376
    %s2379 = scalar_lea.vmem [#allocation4], 40
    %2380 = vst.msk [vmem:[%s2379] sm:$0xff] %vm141, %v2377
    %s2381 = smul.u32 6, 2
    %s2382 = smul.addr %s2381, 8
    %s2383 = scalar_lea.vmem [#allocation3], %s2382
    %v2384 = vld [vmem:[%s2383] sm:$0xff]
    %v2385 = vld [vmem:[%s2383 + $0x8] sm:$0xff]
    %v2386 = vsel %vm141, %v2377, 0
    %2388 = vmatpush.msra.mxu0 0.0
    %2389 = vmatpush.msra.mxu0 0.0
    %2390 = vmatpush.msra.mxu0 0.0
    %2391 = vmatpush.msra.mxu0 0.0
    %2392 = vmatpush.msra.mxu0 0.0
    %2393 = vmatpush.msra.mxu0 0.0
    %2394 = vmatpush.msra.mxu0 0.0
    %2395 = vmatpush.msra.mxu0 0.0
    %2396 = vmatpush.msra.mxu0 %v1595
    %2397 = vmatpush.msra.mxu0 %v1593
    %2398 = vmatpush.msra.mxu0 %v1591
    %2399 = vmatpush.msra.mxu0 %v1589
    %2400 = vmatpush.msra.mxu0 %v1587
    %2401 = vmatpush.msra.mxu0 %v1585
    %2402 = vmatpush.msra.mxu0 %v1583
    %2403 = vmatpush.msra.mxu0 %v1581
    %2404 = vmatmul.f32.gmra.mxu0 %v2386
    %v2405 = vpop.f32.mrf.mxu0
    %v2406 = vadd.f32 0.0, %v2405
    %2407 = vdwg.mxu0
    %2408 = vmatpush.msra.mxu0 0.0
    %2409 = vmatpush.msra.mxu0 0.0
    %2410 = vmatpush.msra.mxu0 0.0
    %2411 = vmatpush.msra.mxu0 0.0
    %2412 = vmatpush.msra.mxu0 0.0
    %2413 = vmatpush.msra.mxu0 0.0
    %2414 = vmatpush.msra.mxu0 0.0
    %2415 = vmatpush.msra.mxu0 0.0
    %2416 = vmatpush.msra.mxu0 %v1596
    %2417 = vmatpush.msra.mxu0 %v1594
    %2418 = vmatpush.msra.mxu0 %v1592
    %2419 = vmatpush.msra.mxu0 %v1590
    %2420 = vmatpush.msra.mxu0 %v1588
    %2421 = vmatpush.msra.mxu0 %v1586
    %2422 = vmatpush.msra.mxu0 %v1584
    %2423 = vmatpush.msra.mxu0 %v1582
    %2424 = vmatmul.f32.gmra.mxu0 %v2386
    %v2425 = vpop.f32.mrf.mxu0
    %v2426 = vadd.f32 0.0, %v2425
    %2427 = vdwg.mxu0
    %v2428 = vadd.f32 %v2384, %v2406
    %v2429 = vadd.f32 %v2385, %v2426
    %v2430 = vxor.u32 %v2428, 2147483648
    %v2431 = vmul.f32 %v2430, 1.442695
    %v2432 = vpow.pop %v2431
    %v2433 = vadd.f32 %v2432, 1.0
    %v2434 = vrcp.pop %v2433
    %v2435 = vmul.f32 %v2433, %v2434
    %v2436 = vsub.f32 1.0, %v2435
    %v2437 = vmul.f32 %v2434, %v2436
    %v2438 = vadd.f32 %v2434, %v2437
    %vm2439 = vweird.f32 %v2433
    %vm2440 = vweird.f32 %v2434
    %vm2441 = vmor %vm2439, %vm2440
    %v2442 = vsel %vm2441, %v2434, %v2438
    %v2443 = vand.u32 2147483647, %v2433
    %vm2444 = vcmp.eq.f32.partialorder %v2443, 8.507059e+37
    %v2445 = vand.u32 %v2433, 2147483648
    %v2446 = vor.u32 1.1754944e-38, %v2445
    %v2447 = vsel %vm2444, %v2446, %v2442
    %v2448 = vmul.f32 1.0, %v2447
    %v2449 = vtanh.pop %v2429
    %v2450 = vxor.u32 %v2429, 2147483648
    %v2451 = vmul.f32 %v2450, 1.442695
    %v2452 = vpow.pop %v2451
    %v2453 = vadd.f32 %v2452, 1.0
    %v2454 = vrcp.pop %v2453
    %v2455 = vmul.f32 %v2453, %v2454
    %v2456 = vsub.f32 1.0, %v2455
    %v2457 = vmul.f32 %v2454, %v2456
    %v2458 = vadd.f32 %v2454, %v2457
    %vm2459 = vweird.f32 %v2453
    %vm2460 = vweird.f32 %v2454
    %vm2461 = vmor %vm2459, %vm2460
    %v2462 = vsel %vm2461, %v2454, %v2458
    %v2463 = vand.u32 2147483647, %v2453
    %vm2464 = vcmp.eq.f32.partialorder %v2463, 8.507059e+37
    %v2465 = vand.u32 %v2453, 2147483648
    %v2466 = vor.u32 1.1754944e-38, %v2465
    %v2467 = vsel %vm2464, %v2466, %v2462
    %v2468 = vmul.f32 1.0, %v2467
    %v2469 = vmul.f32 %v2448, %v2372
    %v2470 = vmul.f32 %v2448, %v2449
    %2472 = vrot.lane.b32.xlu0 %v2470, 64
    %v2473 = vpop.permute.xlu0 %2472
    %v2475 = vadd.f32 %v2469, %v2473
    %v2476 = vtanh.pop %v2475
    %v2477 = vmul.f32 %v2468, %v2476
    %2479 = vrot.lane.b32.xlu0 %v2477, 64
    %v2480 = vpop.permute.xlu0 %2479
    %s2482 = scalar_lea.vmem [#allocation4], 48
    %2483 = vst.msk [vmem:[%s2482] sm:$0xff] %vm141, %v2480
    %s2484 = smul.u32 7, 2
    %s2485 = smul.addr %s2484, 8
    %s2486 = scalar_lea.vmem [#allocation3], %s2485
    %v2487 = vld [vmem:[%s2486] sm:$0xff]
    %v2488 = vld [vmem:[%s2486 + $0x8] sm:$0xff]
    %v2489 = vsel %vm141, %v2480, 0
    %2491 = vmatpush.msra.mxu0 0.0
    %2492 = vmatpush.msra.mxu0 0.0
    %2493 = vmatpush.msra.mxu0 0.0
    %2494 = vmatpush.msra.mxu0 0.0
    %2495 = vmatpush.msra.mxu0 0.0
    %2496 = vmatpush.msra.mxu0 0.0
    %2497 = vmatpush.msra.mxu0 0.0
    %2498 = vmatpush.msra.mxu0 0.0
    %2499 = vmatpush.msra.mxu0 %v1595
    %2500 = vmatpush.msra.mxu0 %v1593
    %2501 = vmatpush.msra.mxu0 %v1591
    %2502 = vmatpush.msra.mxu0 %v1589
    %2503 = vmatpush.msra.mxu0 %v1587
    %2504 = vmatpush.msra.mxu0 %v1585
    %2505 = vmatpush.msra.mxu0 %v1583
    %2506 = vmatpush.msra.mxu0 %v1581
    %2507 = vmatmul.f32.gmra.mxu0 %v2489
    %v2508 = vpop.f32.mrf.mxu0
    %v2509 = vadd.f32 0.0, %v2508
    %2510 = vdwg.mxu0
    %2511 = vmatpush.msra.mxu0 0.0
    %2512 = vmatpush.msra.mxu0 0.0
    %2513 = vmatpush.msra.mxu0 0.0
    %2514 = vmatpush.msra.mxu0 0.0
    %2515 = vmatpush.msra.mxu0 0.0
    %2516 = vmatpush.msra.mxu0 0.0
    %2517 = vmatpush.msra.mxu0 0.0
    %2518 = vmatpush.msra.mxu0 0.0
    %2519 = vmatpush.msra.mxu0 %v1596
    %2520 = vmatpush.msra.mxu0 %v1594
    %2521 = vmatpush.msra.mxu0 %v1592
    %2522 = vmatpush.msra.mxu0 %v1590
    %2523 = vmatpush.msra.mxu0 %v1588
    %2524 = vmatpush.msra.mxu0 %v1586
    %2525 = vmatpush.msra.mxu0 %v1584
    %2526 = vmatpush.msra.mxu0 %v1582
    %2527 = vmatmul.f32.gmra.mxu0 %v2489
    %v2528 = vpop.f32.mrf.mxu0
    %v2529 = vadd.f32 0.0, %v2528
    %2530 = vdwg.mxu0
    %v2531 = vadd.f32 %v2487, %v2509
    %v2532 = vadd.f32 %v2488, %v2529
    %v2533 = vxor.u32 %v2531, 2147483648
    %v2534 = vmul.f32 %v2533, 1.442695
    %v2535 = vpow.pop %v2534
    %v2536 = vadd.f32 %v2535, 1.0
    %v2537 = vrcp.pop %v2536
    %v2538 = vmul.f32 %v2536, %v2537
    %v2539 = vsub.f32 1.0, %v2538
    %v2540 = vmul.f32 %v2537, %v2539
    %v2541 = vadd.f32 %v2537, %v2540
    %vm2542 = vweird.f32 %v2536
    %vm2543 = vweird.f32 %v2537
    %vm2544 = vmor %vm2542, %vm2543
    %v2545 = vsel %vm2544, %v2537, %v2541
    %v2546 = vand.u32 2147483647, %v2536
    %vm2547 = vcmp.eq.f32.partialorder %v2546, 8.507059e+37
    %v2548 = vand.u32 %v2536, 2147483648
    %v2549 = vor.u32 1.1754944e-38, %v2548
    %v2550 = vsel %vm2547, %v2549, %v2545
    %v2551 = vmul.f32 1.0, %v2550
    %v2552 = vtanh.pop %v2532
    %v2553 = vxor.u32 %v2532, 2147483648
    %v2554 = vmul.f32 %v2553, 1.442695
    %v2555 = vpow.pop %v2554
    %v2556 = vadd.f32 %v2555, 1.0
    %v2557 = vrcp.pop %v2556
    %v2558 = vmul.f32 %v2556, %v2557
    %v2559 = vsub.f32 1.0, %v2558
    %v2560 = vmul.f32 %v2557, %v2559
    %v2561 = vadd.f32 %v2557, %v2560
    %vm2562 = vweird.f32 %v2556
    %vm2563 = vweird.f32 %v2557
    %vm2564 = vmor %vm2562, %vm2563
    %v2565 = vsel %vm2564, %v2557, %v2561
    %v2566 = vand.u32 2147483647, %v2556
    %vm2567 = vcmp.eq.f32.partialorder %v2566, 8.507059e+37
    %v2568 = vand.u32 %v2556, 2147483648
    %v2569 = vor.u32 1.1754944e-38, %v2568
    %v2570 = vsel %vm2567, %v2569, %v2565
    %v2571 = vmul.f32 1.0, %v2570
    %v2572 = vmul.f32 %v2551, %v2475
    %v2573 = vmul.f32 %v2551, %v2552
    %2575 = vrot.lane.b32.xlu0 %v2573, 64
    %v2576 = vpop.permute.xlu0 %2575
    %v2578 = vadd.f32 %v2572, %v2576
    %v2579 = vtanh.pop %v2578
    %v2580 = vmul.f32 %v2571, %v2579
    %2582 = vrot.lane.b32.xlu0 %v2580, 64
    %v2583 = vpop.permute.xlu0 %2582
    %s2585 = scalar_lea.vmem [#allocation4], 56
    %2586 = vst.msk [vmem:[%s2585] sm:$0xff] %vm141, %v2583
    %v2587 = vld [vmem:[#allocation4] sm:$0xff]
    %v2588 = vld [vmem:[#allocation4 + $0x8] sm:$0xff]
    %v2589 = vld [vmem:[#allocation4 + $0x10] sm:$0xff]
    %v2590 = vld [vmem:[#allocation4 + $0x18] sm:$0xff]
    %v2591 = vld [vmem:[#allocation4 + $0x20] sm:$0xff]
    %v2592 = vld [vmem:[#allocation4 + $0x28] sm:$0xff]
    %v2593 = vld [vmem:[#allocation4 + $0x30] sm:$0xff]
    %v2594 = vld [vmem:[#allocation4 + $0x38] sm:$0xff]
    %v2595 = vld [vmem:[%s15] sm:$0xff]
    %v2596 = vld [vmem:[%s15 + $0x8] sm:$0xff]
    %v2597 = vld [vmem:[%s15 + $0x10] sm:$0xff]
    %v2598 = vld [vmem:[%s15 + $0x18] sm:$0xff]
    %v2599 = vld [vmem:[%s15 + $0x20] sm:$0xff]
    %v2600 = vld [vmem:[%s15 + $0x28] sm:$0xff]
    %v2601 = vld [vmem:[%s15 + $0x30] sm:$0xff]
    %v2602 = vld [vmem:[%s15 + $0x38] sm:$0xff]
    %v2603 = vld [vmem:[%s16] sm:$0x1]
    %v2605 = vperm.slane %v2603, 0
    %v2608 = vsel %vm141, %v2587, 0
    %v2611 = vsel %vm141, %v2588, 0
    %v2614 = vsel %vm141, %v2589, 0
    %v2617 = vsel %vm141, %v2590, 0
    %v2620 = vsel %vm141, %v2591, 0
    %v2623 = vsel %vm141, %v2592, 0
    %v2626 = vsel %vm141, %v2593, 0
    %v2629 = vsel %vm141, %v2594, 0
    %2631 = vmatpush.msra.mxu0 0.0
    %2632 = vmatpush.msra.mxu0 0.0
    %2633 = vmatpush.msra.mxu0 0.0
    %2634 = vmatpush.msra.mxu0 0.0
    %2635 = vmatpush.msra.mxu0 0.0
    %2636 = vmatpush.msra.mxu0 0.0
    %2637 = vmatpush.msra.mxu0 0.0
    %2638 = vmatpush.msra.mxu0 0.0
    %2639 = vmatpush.msra.mxu0 %v2602
    %2640 = vmatpush.msra.mxu0 %v2601
    %2641 = vmatpush.msra.mxu0 %v2600
    %2642 = vmatpush.msra.mxu0 %v2599
    %2643 = vmatpush.msra.mxu0 %v2598
    %2644 = vmatpush.msra.mxu0 %v2597
    %2645 = vmatpush.msra.mxu0 %v2596
    %2646 = vmatpush.msra.mxu0 %v2595
    %2647 = vmatmul.f32.gmra.mxu0 %v2608
    %v2648 = vpop.f32.mrf.mxu0
    %v2649 = vadd.f32 %v2605, %v2648
    %2650 = vmatmul.f32.gmra.mxu0 %v2611
    %v2651 = vpop.f32.mrf.mxu0
    %v2652 = vadd.f32 %v2605, %v2651
    %2653 = vmatmul.f32.gmra.mxu0 %v2614
    %v2654 = vpop.f32.mrf.mxu0
    %v2655 = vadd.f32 %v2605, %v2654
    %2656 = vmatmul.f32.gmra.mxu0 %v2617
    %v2657 = vpop.f32.mrf.mxu0
    %v2658 = vadd.f32 %v2605, %v2657
    %2659 = vmatmul.f32.gmra.mxu0 %v2620
    %v2660 = vpop.f32.mrf.mxu0
    %v2661 = vadd.f32 %v2605, %v2660
    %2662 = vmatmul.f32.gmra.mxu0 %v2623
    %v2663 = vpop.f32.mrf.mxu0
    %v2664 = vadd.f32 %v2605, %v2663
    %2665 = vmatmul.f32.gmra.mxu0 %v2626
    %v2666 = vpop.f32.mrf.mxu0
    %v2667 = vadd.f32 %v2605, %v2666
    %2668 = vmatmul.f32.gmra.mxu0 %v2629
    %v2669 = vpop.f32.mrf.mxu0
    %v2670 = vadd.f32 %v2605, %v2669
    %2671 = vdwg.mxu0
    %2672 = vmax.xlane.f32.xlu0 %v2649
    %v2673 = vpop.xlane.xlu0 %2672
    %2674 = vmax.xlane.f32.xlu0 %v2652
    %v2675 = vpop.xlane.xlu0 %2674
    %2676 = vmax.xlane.f32.xlu0 %v2655
    %v2677 = vpop.xlane.xlu0 %2676
    %2678 = vmax.xlane.f32.xlu0 %v2658
    %v2679 = vpop.xlane.xlu0 %2678
    %2680 = vmax.xlane.f32.xlu0 %v2661
    %v2681 = vpop.xlane.xlu0 %2680
    %2682 = vmax.xlane.f32.xlu0 %v2664
    %v2683 = vpop.xlane.xlu0 %2682
    %2684 = vmax.xlane.f32.xlu0 %v2667
    %v2685 = vpop.xlane.xlu0 %2684
    %2686 = vmax.xlane.f32.xlu0 %v2670
    %v2687 = vpop.xlane.xlu0 %2686
    %v2688 = vsub.f32 %v2649, %v2673
    %v2689 = vsub.f32 %v2652, %v2675
    %v2690 = vsub.f32 %v2655, %v2677
    %v2691 = vsub.f32 %v2658, %v2679
    %v2692 = vsub.f32 %v2661, %v2681
    %v2693 = vsub.f32 %v2664, %v2683
    %v2694 = vsub.f32 %v2667, %v2685
    %v2695 = vsub.f32 %v2670, %v2687
    %v2696 = vmul.f32 %v2688, 1.442695
    %v2697 = vpow.pop %v2696
    %v2698 = vmul.f32 %v2689, 1.442695
    %v2699 = vpow.pop %v2698
    %v2700 = vmul.f32 %v2690, 1.442695
    %v2701 = vpow.pop %v2700
    %v2702 = vmul.f32 %v2691, 1.442695
    %v2703 = vpow.pop %v2702
    %v2704 = vmul.f32 %v2692, 1.442695
    %v2705 = vpow.pop %v2704
    %v2706 = vmul.f32 %v2693, 1.442695
    %v2707 = vpow.pop %v2706
    %v2708 = vmul.f32 %v2694, 1.442695
    %v2709 = vpow.pop %v2708
    %v2710 = vmul.f32 %v2695, 1.442695
    %v2711 = vpow.pop %v2710
    %2712 = vadd.xlane.f32.xlu0 %v2697
    %v2713 = vpop.xlane.xlu0 %2712
    %2714 = vadd.xlane.f32.xlu0 %v2699
    %v2715 = vpop.xlane.xlu0 %2714
    %2716 = vadd.xlane.f32.xlu0 %v2701
    %v2717 = vpop.xlane.xlu0 %2716
    %2718 = vadd.xlane.f32.xlu0 %v2703
    %v2719 = vpop.xlane.xlu0 %2718
    %2720 = vadd.xlane.f32.xlu0 %v2705
    %v2721 = vpop.xlane.xlu0 %2720
    %2722 = vadd.xlane.f32.xlu0 %v2707
    %v2723 = vpop.xlane.xlu0 %2722
    %2724 = vadd.xlane.f32.xlu0 %v2709
    %v2725 = vpop.xlane.xlu0 %2724
    %2726 = vadd.xlane.f32.xlu0 %v2711
    %v2727 = vpop.xlane.xlu0 %2726
    %v2728 = vlog2.pop %v2713
    %v2729 = vmul.f32 %v2728, 0.6931472
    %v2730 = vlog2.pop %v2715
    %v2731 = vmul.f32 %v2730, 0.6931472
    %v2732 = vlog2.pop %v2717
    %v2733 = vmul.f32 %v2732, 0.6931472
    %v2734 = vlog2.pop %v2719
    %v2735 = vmul.f32 %v2734, 0.6931472
    %v2736 = vlog2.pop %v2721
    %v2737 = vmul.f32 %v2736, 0.6931472
    %v2738 = vlog2.pop %v2723
    %v2739 = vmul.f32 %v2738, 0.6931472
    %v2740 = vlog2.pop %v2725
    %v2741 = vmul.f32 %v2740, 0.6931472
    %v2742 = vlog2.pop %v2727
    %v2743 = vmul.f32 %v2742, 0.6931472
    %v2744 = vsub.f32 %v2688, %v2729
    %v2745 = vsub.f32 %v2689, %v2731
    %v2746 = vsub.f32 %v2690, %v2733
    %v2747 = vsub.f32 %v2691, %v2735
    %v2748 = vsub.f32 %v2692, %v2737
    %v2749 = vsub.f32 %v2693, %v2739
    %v2750 = vsub.f32 %v2694, %v2741
    %v2751 = vsub.f32 %v2695, %v2743
    %2752 = vst [vmem:[#allocation6] sm:$0xff] %v2744
    %2753 = vst [vmem:[#allocation6 + $0x8] sm:$0xff] %v2745
    %2754 = vst [vmem:[#allocation6 + $0x10] sm:$0xff] %v2746
    %2755 = vst [vmem:[#allocation6 + $0x18] sm:$0xff] %v2747
    %2756 = vst [vmem:[#allocation6 + $0x20] sm:$0xff] %v2748
    %2757 = vst [vmem:[#allocation6 + $0x28] sm:$0xff] %v2749
    %2758 = vst [vmem:[#allocation6 + $0x30] sm:$0xff] %v2750
    %2759 = vst [vmem:[#allocation6 + $0x38] sm:$0xff] %v2751
    %v2760 = vrcp.pop %v2713
    %v2761 = vmul.f32 %v2713, %v2760
    %v2762 = vsub.f32 1.0, %v2761
    %v2763 = vmul.f32 %v2760, %v2762
    %v2764 = vadd.f32 %v2760, %v2763
    %vm2765 = vweird.f32 %v2713
    %vm2766 = vweird.f32 %v2760
    %vm2767 = vmor %vm2765, %vm2766
    %v2768 = vsel %vm2767, %v2760, %v2764
    %v2769 = vand.u32 2147483647, %v2713
    %vm2770 = vcmp.eq.f32.partialorder %v2769, 8.507059e+37
    %v2771 = vand.u32 %v2713, 2147483648
    %v2772 = vor.u32 1.1754944e-38, %v2771
    %v2773 = vsel %vm2770, %v2772, %v2768
    %v2774 = vmul.f32 1.0, %v2773
    %v2775 = vrcp.pop %v2715
    %v2776 = vmul.f32 %v2715, %v2775
    %v2777 = vsub.f32 1.0, %v2776
    %v2778 = vmul.f32 %v2775, %v2777
    %v2779 = vadd.f32 %v2775, %v2778
    %vm2780 = vweird.f32 %v2715
    %vm2781 = vweird.f32 %v2775
    %vm2782 = vmor %vm2780, %vm2781
    %v2783 = vsel %vm2782, %v2775, %v2779
    %v2784 = vand.u32 2147483647, %v2715
    %vm2785 = vcmp.eq.f32.partialorder %v2784, 8.507059e+37
    %v2786 = vand.u32 %v2715, 2147483648
    %v2787 = vor.u32 1.1754944e-38, %v2786
    %v2788 = vsel %vm2785, %v2787, %v2783
    %v2789 = vmul.f32 1.0, %v2788
    %v2790 = vrcp.pop %v2717
    %v2791 = vmul.f32 %v2717, %v2790
    %v2792 = vsub.f32 1.0, %v2791
    %v2793 = vmul.f32 %v2790, %v2792
    %v2794 = vadd.f32 %v2790, %v2793
    %vm2795 = vweird.f32 %v2717
    %vm2796 = vweird.f32 %v2790
    %vm2797 = vmor %vm2795, %vm2796
    %v2798 = vsel %vm2797, %v2790, %v2794
    %v2799 = vand.u32 2147483647, %v2717
    %vm2800 = vcmp.eq.f32.partialorder %v2799, 8.507059e+37
    %v2801 = vand.u32 %v2717, 2147483648
    %v2802 = vor.u32 1.1754944e-38, %v2801
    %v2803 = vsel %vm2800, %v2802, %v2798
    %v2804 = vmul.f32 1.0, %v2803
    %v2805 = vrcp.pop %v2719
    %v2806 = vmul.f32 %v2719, %v2805
    %v2807 = vsub.f32 1.0, %v2806
    %v2808 = vmul.f32 %v2805, %v2807
    %v2809 = vadd.f32 %v2805, %v2808
    %vm2810 = vweird.f32 %v2719
    %vm2811 = vweird.f32 %v2805
    %vm2812 = vmor %vm2810, %vm2811
    %v2813 = vsel %vm2812, %v2805, %v2809
    %v2814 = vand.u32 2147483647, %v2719
    %vm2815 = vcmp.eq.f32.partialorder %v2814, 8.507059e+37
    %v2816 = vand.u32 %v2719, 2147483648
    %v2817 = vor.u32 1.1754944e-38, %v2816
    %v2818 = vsel %vm2815, %v2817, %v2813
    %v2819 = vmul.f32 1.0, %v2818
    %v2820 = vrcp.pop %v2721
    %v2821 = vmul.f32 %v2721, %v2820
    %v2822 = vsub.f32 1.0, %v2821
    %v2823 = vmul.f32 %v2820, %v2822
    %v2824 = vadd.f32 %v2820, %v2823
    %vm2825 = vweird.f32 %v2721
    %vm2826 = vweird.f32 %v2820
    %vm2827 = vmor %vm2825, %vm2826
    %v2828 = vsel %vm2827, %v2820, %v2824
    %v2829 = vand.u32 2147483647, %v2721
    %vm2830 = vcmp.eq.f32.partialorder %v2829, 8.507059e+37
    %v2831 = vand.u32 %v2721, 2147483648
    %v2832 = vor.u32 1.1754944e-38, %v2831
    %v2833 = vsel %vm2830, %v2832, %v2828
    %v2834 = vmul.f32 1.0, %v2833
    %v2835 = vrcp.pop %v2723
    %v2836 = vmul.f32 %v2723, %v2835
    %v2837 = vsub.f32 1.0, %v2836
    %v2838 = vmul.f32 %v2835, %v2837
    %v2839 = vadd.f32 %v2835, %v2838
    %vm2840 = vweird.f32 %v2723
    %vm2841 = vweird.f32 %v2835
    %vm2842 = vmor %vm2840, %vm2841
    %v2843 = vsel %vm2842, %v2835, %v2839
    %v2844 = vand.u32 2147483647, %v2723
    %vm2845 = vcmp.eq.f32.partialorder %v2844, 8.507059e+37
    %v2846 = vand.u32 %v2723, 2147483648
    %v2847 = vor.u32 1.1754944e-38, %v2846
    %v2848 = vsel %vm2845, %v2847, %v2843
    %v2849 = vmul.f32 1.0, %v2848
    %v2850 = vrcp.pop %v2725
    %v2851 = vmul.f32 %v2725, %v2850
    %v2852 = vsub.f32 1.0, %v2851
    %v2853 = vmul.f32 %v2850, %v2852
    %v2854 = vadd.f32 %v2850, %v2853
    %vm2855 = vweird.f32 %v2725
    %vm2856 = vweird.f32 %v2850
    %vm2857 = vmor %vm2855, %vm2856
    %v2858 = vsel %vm2857, %v2850, %v2854
    %v2859 = vand.u32 2147483647, %v2725
    %vm2860 = vcmp.eq.f32.partialorder %v2859, 8.507059e+37
    %v2861 = vand.u32 %v2725, 2147483648
    %v2862 = vor.u32 1.1754944e-38, %v2861
    %v2863 = vsel %vm2860, %v2862, %v2858
    %v2864 = vmul.f32 1.0, %v2863
    %v2865 = vrcp.pop %v2727
    %v2866 = vmul.f32 %v2727, %v2865
    %v2867 = vsub.f32 1.0, %v2866
    %v2868 = vmul.f32 %v2865, %v2867
    %v2869 = vadd.f32 %v2865, %v2868
    %vm2870 = vweird.f32 %v2727
    %vm2871 = vweird.f32 %v2865
    %vm2872 = vmor %vm2870, %vm2871
    %v2873 = vsel %vm2872, %v2865, %v2869
    %v2874 = vand.u32 2147483647, %v2727
    %vm2875 = vcmp.eq.f32.partialorder %v2874, 8.507059e+37
    %v2876 = vand.u32 %v2727, 2147483648
    %v2877 = vor.u32 1.1754944e-38, %v2876
    %v2878 = vsel %vm2875, %v2877, %v2873
    %v2879 = vmul.f32 1.0, %v2878
    %v2880 = vmul.f32 %v2697, %v2774
    %v2881 = vmul.f32 %v2699, %v2789
    %v2882 = vmul.f32 %v2701, %v2804
    %v2883 = vmul.f32 %v2703, %v2819
    %v2884 = vmul.f32 %v2705, %v2834
    %v2885 = vmul.f32 %v2707, %v2849
    %v2886 = vmul.f32 %v2709, %v2864
    %v2887 = vmul.f32 %v2711, %v2879
    %v2888 = vld [vmem:[%s11] sm:$0xff]
    %v2889 = vld [vmem:[%s11 + $0x8] sm:$0xff]
    %v2890 = vld [vmem:[%s11 + $0x10] sm:$0xff]
    %v2891 = vld [vmem:[%s11 + $0x18] sm:$0xff]
    %v2892 = vld [vmem:[%s11 + $0x20] sm:$0xff]
    %v2893 = vld [vmem:[%s11 + $0x28] sm:$0xff]
    %v2894 = vld [vmem:[%s11 + $0x30] sm:$0xff]
    %v2895 = vld [vmem:[%s11 + $0x38] sm:$0xff]
    %v2896 = vld [vmem:[%s11 + $0x40] sm:$0xff]
    %v2897 = vld [vmem:[%s11 + $0x48] sm:$0xff]
    %v2898 = vld [vmem:[%s11 + $0x50] sm:$0xff]
    %v2899 = vld [vmem:[%s11 + $0x58] sm:$0xff]
    %v2900 = vld [vmem:[%s11 + $0x60] sm:$0xff]
    %v2901 = vld [vmem:[%s11 + $0x68] sm:$0xff]
    %v2902 = vld [vmem:[%s11 + $0x70] sm:$0xff]
    %v2903 = vld [vmem:[%s11 + $0x78] sm:$0xff]
    %v2904 = vld [vmem:[%s2] sm:$0x1]
    %v2906 = vperm.slane %v2904, 0
    %2908 = vmatpush.msra.mxu0 %v2903
    %2909 = vmatpush.msra.mxu0 %v2902
    %2910 = vmatpush.msra.mxu0 %v2901
    %2911 = vmatpush.msra.mxu0 %v2900
    %2912 = vmatpush.msra.mxu0 %v2899
    %2913 = vmatpush.msra.mxu0 %v2898
    %2914 = vmatpush.msra.mxu0 %v2897
    %2915 = vmatpush.msra.mxu0 %v2896
    %2916 = vmatpush.msra.mxu0 %v2895
    %2917 = vmatpush.msra.mxu0 %v2894
    %2918 = vmatpush.msra.mxu0 %v2893
    %2919 = vmatpush.msra.mxu0 %v2892
    %2920 = vmatpush.msra.mxu0 %v2891
    %2921 = vmatpush.msra.mxu0 %v2890
    %2922 = vmatpush.msra.mxu0 %v2889
    %2923 = vmatpush.msra.mxu0 %v2888
    %2924 = vmatmul.f32.gmra.mxu0 %v2880
    %v2925 = vpop.f32.mrf.mxu0
    %v2926 = vadd.f32 %v2906, %v2925
    %2927 = vmatmul.f32.gmra.mxu0 %v2881
    %v2928 = vpop.f32.mrf.mxu0
    %v2929 = vadd.f32 %v2906, %v2928
    %2930 = vmatmul.f32.gmra.mxu0 %v2882
    %v2931 = vpop.f32.mrf.mxu0
    %v2932 = vadd.f32 %v2906, %v2931
    %2933 = vmatmul.f32.gmra.mxu0 %v2883
    %v2934 = vpop.f32.mrf.mxu0
    %v2935 = vadd.f32 %v2906, %v2934
    %2936 = vmatmul.f32.gmra.mxu0 %v2884
    %v2937 = vpop.f32.mrf.mxu0
    %v2938 = vadd.f32 %v2906, %v2937
    %2939 = vmatmul.f32.gmra.mxu0 %v2885
    %v2940 = vpop.f32.mrf.mxu0
    %v2941 = vadd.f32 %v2906, %v2940
    %2942 = vmatmul.f32.gmra.mxu0 %v2886
    %v2943 = vpop.f32.mrf.mxu0
    %v2944 = vadd.f32 %v2906, %v2943
    %2945 = vmatmul.f32.gmra.mxu0 %v2887
    %v2946 = vpop.f32.mrf.mxu0
    %v2947 = vadd.f32 %v2906, %v2946
    %2948 = vdwg.mxu0
    %vm2949 = vcmp.gt.f32.partialorder %v2926, 1e-06
    %vm2950 = vcmp.gt.f32.partialorder %v2929, 1e-06
    %vm2951 = vcmp.gt.f32.partialorder %v2932, 1e-06
    %vm2952 = vcmp.gt.f32.partialorder %v2935, 1e-06
    %vm2953 = vcmp.gt.f32.partialorder %v2938, 1e-06
    %vm2954 = vcmp.gt.f32.partialorder %v2941, 1e-06
    %vm2955 = vcmp.gt.f32.partialorder %v2944, 1e-06
    %vm2956 = vcmp.gt.f32.partialorder %v2947, 1e-06
    %v2957 = vsel %vm2949, %v2926, 0.0
    %v2958 = vsel %vm2950, %v2929, 0.0
    %v2959 = vsel %vm2951, %v2932, 0.0
    %v2960 = vsel %vm2952, %v2935, 0.0
    %v2961 = vsel %vm2953, %v2938, 0.0
    %v2962 = vsel %vm2954, %v2941, 0.0
    %v2963 = vsel %vm2955, %v2944, 0.0
    %v2964 = vsel %vm2956, %v2947, 0.0
    %v2965 = vld [vmem:[%s3] sm:$0xff]
    %v2966 = vld [vmem:[%s3 + $0x8] sm:$0xff]
    %v2967 = vld [vmem:[%s3 + $0x10] sm:$0xff]
    %v2968 = vld [vmem:[%s3 + $0x18] sm:$0xff]
    %v2969 = vld [vmem:[%s3 + $0x20] sm:$0xff]
    %v2970 = vld [vmem:[%s3 + $0x28] sm:$0xff]
    %v2971 = vld [vmem:[%s3 + $0x30] sm:$0xff]
    %v2972 = vld [vmem:[%s3 + $0x38] sm:$0xff]
    %v2973 = vld [vmem:[%s4] sm:$0x1]
    %v2975 = vperm.slane %v2973, 0
    %v2978 = vsel %vm141, %v2957, 0
    %v2981 = vsel %vm141, %v2958, 0
    %v2984 = vsel %vm141, %v2959, 0
    %v2987 = vsel %vm141, %v2960, 0
    %v2990 = vsel %vm141, %v2961, 0
    %v2993 = vsel %vm141, %v2962, 0
    %v2996 = vsel %vm141, %v2963, 0
    %v2999 = vsel %vm141, %v2964, 0
    %3001 = vmatpush.msra.mxu0 0.0
    %3002 = vmatpush.msra.mxu0 0.0
    %3003 = vmatpush.msra.mxu0 0.0
    %3004 = vmatpush.msra.mxu0 0.0
    %3005 = vmatpush.msra.mxu0 0.0
    %3006 = vmatpush.msra.mxu0 0.0
    %3007 = vmatpush.msra.mxu0 0.0
    %3008 = vmatpush.msra.mxu0 0.0
    %3009 = vmatpush.msra.mxu0 %v2972
    %3010 = vmatpush.msra.mxu0 %v2971
    %3011 = vmatpush.msra.mxu0 %v2970
    %3012 = vmatpush.msra.mxu0 %v2969
    %3013 = vmatpush.msra.mxu0 %v2968
    %3014 = vmatpush.msra.mxu0 %v2967
    %3015 = vmatpush.msra.mxu0 %v2966
    %3016 = vmatpush.msra.mxu0 %v2965
    %3017 = vmatmul.f32.gmra.mxu0 %v2978
    %v3018 = vpop.f32.mrf.mxu0
    %v3019 = vadd.f32 %v2975, %v3018
    %3020 = vmatmul.f32.gmra.mxu0 %v2981
    %v3021 = vpop.f32.mrf.mxu0
    %v3022 = vadd.f32 %v2975, %v3021
    %3023 = vmatmul.f32.gmra.mxu0 %v2984
    %v3024 = vpop.f32.mrf.mxu0
    %v3025 = vadd.f32 %v2975, %v3024
    %3026 = vmatmul.f32.gmra.mxu0 %v2987
    %v3027 = vpop.f32.mrf.mxu0
    %v3028 = vadd.f32 %v2975, %v3027
    %3029 = vmatmul.f32.gmra.mxu0 %v2990
    %v3030 = vpop.f32.mrf.mxu0
    %v3031 = vadd.f32 %v2975, %v3030
    %3032 = vmatmul.f32.gmra.mxu0 %v2993
    %v3033 = vpop.f32.mrf.mxu0
    %v3034 = vadd.f32 %v2975, %v3033
    %3035 = vmatmul.f32.gmra.mxu0 %v2996
    %v3036 = vpop.f32.mrf.mxu0
    %v3037 = vadd.f32 %v2975, %v3036
    %3038 = vmatmul.f32.gmra.mxu0 %v2999
    %v3039 = vpop.f32.mrf.mxu0
    %v3040 = vadd.f32 %v2975, %v3039
    %3041 = vdwg.mxu0
    %vm3042 = vcmp.gt.f32.partialorder %v3019, 1e-06
    %vm3043 = vcmp.gt.f32.partialorder %v3022, 1e-06
    %vm3044 = vcmp.gt.f32.partialorder %v3025, 1e-06
    %vm3045 = vcmp.gt.f32.partialorder %v3028, 1e-06
    %vm3046 = vcmp.gt.f32.partialorder %v3031, 1e-06
    %vm3047 = vcmp.gt.f32.partialorder %v3034, 1e-06
    %vm3048 = vcmp.gt.f32.partialorder %v3037, 1e-06
    %vm3049 = vcmp.gt.f32.partialorder %v3040, 1e-06
    %v3050 = vsel %vm3042, %v3019, 0.0
    %v3051 = vsel %vm3043, %v3022, 0.0
    %v3052 = vsel %vm3044, %v3025, 0.0
    %v3053 = vsel %vm3045, %v3028, 0.0
    %v3054 = vsel %vm3046, %v3031, 0.0
    %v3055 = vsel %vm3047, %v3034, 0.0
    %v3056 = vsel %vm3048, %v3037, 0.0
    %v3057 = vsel %vm3049, %v3040, 0.0
    %v3059 = vsel %vm318, %v3050, 0
    %v3062 = vsel %vm318, %v3051, 0
    %v3065 = vsel %vm318, %v3052, 0
    %v3068 = vsel %vm318, %v3053, 0
    %v3071 = vsel %vm318, %v3054, 0
    %v3074 = vsel %vm318, %v3055, 0
    %v3077 = vsel %vm318, %v3056, 0
    %v3080 = vsel %vm318, %v3057, 0
    %3082 = vmatpush.msra.mxu0 0.0
    %3083 = vmatpush.msra.mxu0 0.0
    %3084 = vmatpush.msra.mxu0 0.0
    %3085 = vmatpush.msra.mxu0 0.0
    %3086 = vmatpush.msra.mxu0 0.0
    %3087 = vmatpush.msra.mxu0 0.0
    %3088 = vmatpush.msra.mxu0 0.0
    %3089 = vmatpush.msra.mxu0 0.0
    %3090 = vmatpush.msra.mxu0 0.0
    %3091 = vmatpush.msra.mxu0 0.0
    %3092 = vmatpush.msra.mxu0 0.0
    %3093 = vmatpush.msra.mxu0 0.0
    %3094 = vmatpush.msra.mxu0 %v293
    %3095 = vmatpush.msra.mxu0 %v291
    %3096 = vmatpush.msra.mxu0 %v289
    %3097 = vmatpush.msra.mxu0 %v287
    %3098 = vmatmul.f32.gmra.mxu0 %v3059
    %v3099 = vpop.f32.mrf.mxu0
    %v3100 = vadd.f32 %v314, %v3099
    %3101 = vmatmul.f32.gmra.mxu0 %v3062
    %v3102 = vpop.f32.mrf.mxu0
    %v3103 = vadd.f32 %v314, %v3102
    %3104 = vmatmul.f32.gmra.mxu0 %v3065
    %v3105 = vpop.f32.mrf.mxu0
    %v3106 = vadd.f32 %v314, %v3105
    %3107 = vmatmul.f32.gmra.mxu0 %v3068
    %v3108 = vpop.f32.mrf.mxu0
    %v3109 = vadd.f32 %v314, %v3108
    %3110 = vmatmul.f32.gmra.mxu0 %v3071
    %v3111 = vpop.f32.mrf.mxu0
    %v3112 = vadd.f32 %v314, %v3111
    %3113 = vmatmul.f32.gmra.mxu0 %v3074
    %v3114 = vpop.f32.mrf.mxu0
    %v3115 = vadd.f32 %v314, %v3114
    %3116 = vmatmul.f32.gmra.mxu0 %v3077
    %v3117 = vpop.f32.mrf.mxu0
    %v3118 = vadd.f32 %v314, %v3117
    %3119 = vmatmul.f32.gmra.mxu0 %v3080
    %v3120 = vpop.f32.mrf.mxu0
    %v3121 = vadd.f32 %v314, %v3120
    %3122 = vdwg.mxu0
    %3123 = vmatpush.msra.mxu0 0.0
    %3124 = vmatpush.msra.mxu0 0.0
    %3125 = vmatpush.msra.mxu0 0.0
    %3126 = vmatpush.msra.mxu0 0.0
    %3127 = vmatpush.msra.mxu0 0.0
    %3128 = vmatpush.msra.mxu0 0.0
    %3129 = vmatpush.msra.mxu0 0.0
    %3130 = vmatpush.msra.mxu0 0.0
    %3131 = vmatpush.msra.mxu0 0.0
    %3132 = vmatpush.msra.mxu0 0.0
    %3133 = vmatpush.msra.mxu0 0.0
    %3134 = vmatpush.msra.mxu0 0.0
    %3135 = vmatpush.msra.mxu0 %v294
    %3136 = vmatpush.msra.mxu0 %v292
    %3137 = vmatpush.msra.mxu0 %v290
    %3138 = vmatpush.msra.mxu0 %v288
    %3139 = vmatmul.f32.gmra.mxu0 %v3059
    %v3140 = vpop.f32.mrf.mxu0
    %v3141 = vadd.f32 %v315, %v3140
    %3142 = vmatmul.f32.gmra.mxu0 %v3062
    %v3143 = vpop.f32.mrf.mxu0
    %v3144 = vadd.f32 %v315, %v3143
    %3145 = vmatmul.f32.gmra.mxu0 %v3065
    %v3146 = vpop.f32.mrf.mxu0
    %v3147 = vadd.f32 %v315, %v3146
    %3148 = vmatmul.f32.gmra.mxu0 %v3068
    %v3149 = vpop.f32.mrf.mxu0
    %v3150 = vadd.f32 %v315, %v3149
    %3151 = vmatmul.f32.gmra.mxu0 %v3071
    %v3152 = vpop.f32.mrf.mxu0
    %v3153 = vadd.f32 %v315, %v3152
    %3154 = vmatmul.f32.gmra.mxu0 %v3074
    %v3155 = vpop.f32.mrf.mxu0
    %v3156 = vadd.f32 %v315, %v3155
    %3157 = vmatmul.f32.gmra.mxu0 %v3077
    %v3158 = vpop.f32.mrf.mxu0
    %v3159 = vadd.f32 %v315, %v3158
    %3160 = vmatmul.f32.gmra.mxu0 %v3080
    %v3161 = vpop.f32.mrf.mxu0
    %v3162 = vadd.f32 %v315, %v3161
    %3163 = vdwg.mxu0
    %3164 = vst [vmem:[#allocation5] sm:$0xff] %v3100
    %3165 = vst.msk [vmem:[#allocation5 + $0x8] sm:$0xff] %vm141, %v3141
    %3166 = vst [vmem:[#allocation5 + $0x10] sm:$0xff] %v3103
    %3167 = vst.msk [vmem:[#allocation5 + $0x18] sm:$0xff] %vm141, %v3144
    %3168 = vst [vmem:[#allocation5 + $0x20] sm:$0xff] %v3106
    %3169 = vst.msk [vmem:[#allocation5 + $0x28] sm:$0xff] %vm141, %v3147
    %3170 = vst [vmem:[#allocation5 + $0x30] sm:$0xff] %v3109
    %3171 = vst.msk [vmem:[#allocation5 + $0x38] sm:$0xff] %vm141, %v3150
    %3172 = vst [vmem:[#allocation5 + $0x40] sm:$0xff] %v3112
    %3173 = vst.msk [vmem:[#allocation5 + $0x48] sm:$0xff] %vm141, %v3153
    %3174 = vst [vmem:[#allocation5 + $0x50] sm:$0xff] %v3115
    %3175 = vst.msk [vmem:[#allocation5 + $0x58] sm:$0xff] %vm141, %v3156
    %3176 = vst [vmem:[#allocation5 + $0x60] sm:$0xff] %v3118
    %3177 = vst.msk [vmem:[#allocation5 + $0x68] sm:$0xff] %vm141, %v3159
    %3178 = vst [vmem:[#allocation5 + $0x70] sm:$0xff] %v3121
    %3179 = vst.msk [vmem:[#allocation5 + $0x78] sm:$0xff] %vm141, %v3162
    %s3180 = smul.addr %s1766, 8
    %s3181 = scalar_lea.vmem [#allocation5], %s3180
    %v3182 = vld [vmem:[%s3181] sm:$0xff]
    %v3183 = vld [vmem:[%s3181 + $0x8] sm:$0xff]
    %3184 = vmatpush.msra.mxu0 0.0
    %3185 = vmatpush.msra.mxu0 0.0
    %3186 = vmatpush.msra.mxu0 0.0
    %3187 = vmatpush.msra.mxu0 0.0
    %3188 = vmatpush.msra.mxu0 0.0
    %3189 = vmatpush.msra.mxu0 0.0
    %3190 = vmatpush.msra.mxu0 0.0
    %3191 = vmatpush.msra.mxu0 0.0
    %3192 = vmatpush.msra.mxu0 %v309
    %3193 = vmatpush.msra.mxu0 %v307
    %3194 = vmatpush.msra.mxu0 %v305
    %3195 = vmatpush.msra.mxu0 %v303
    %3196 = vmatpush.msra.mxu0 %v301
    %3197 = vmatpush.msra.mxu0 %v299
    %3198 = vmatpush.msra.mxu0 %v297
    %3199 = vmatpush.msra.mxu0 %v295
    %3200 = vmatmul.f32.gmra.mxu0 %v542
    %v3201 = vpop.f32.mrf.mxu0
    %v3202 = vadd.f32 %v537, %v3201
    %3203 = vdwg.mxu0
    %3204 = vmatpush.msra.mxu0 0.0
    %3205 = vmatpush.msra.mxu0 0.0
    %3206 = vmatpush.msra.mxu0 0.0
    %3207 = vmatpush.msra.mxu0 0.0
    %3208 = vmatpush.msra.mxu0 0.0
    %3209 = vmatpush.msra.mxu0 0.0
    %3210 = vmatpush.msra.mxu0 0.0
    %3211 = vmatpush.msra.mxu0 0.0
    %3212 = vmatpush.msra.mxu0 %v310
    %3213 = vmatpush.msra.mxu0 %v308
    %3214 = vmatpush.msra.mxu0 %v306
    %3215 = vmatpush.msra.mxu0 %v304
    %3216 = vmatpush.msra.mxu0 %v302
    %3217 = vmatpush.msra.mxu0 %v300
    %3218 = vmatpush.msra.mxu0 %v298
    %3219 = vmatpush.msra.mxu0 %v296
    %3220 = vmatmul.f32.gmra.mxu0 %v542
    %v3221 = vpop.f32.mrf.mxu0
    %v3222 = vadd.f32 %v538, %v3221
    %3223 = vdwg.mxu0
    %v3224 = vadd.f32 %v3182, %v3202
    %v3225 = vxor.u32 %v3224, 2147483648
    %v3226 = vmul.f32 %v3225, 1.442695
    %v3227 = vpow.pop %v3226
    %v3228 = vadd.f32 %v3227, 1.0
    %v3229 = vrcp.pop %v3228
    %v3230 = vmul.f32 %v3228, %v3229
    %v3231 = vsub.f32 1.0, %v3230
    %v3232 = vmul.f32 %v3229, %v3231
    %v3233 = vadd.f32 %v3229, %v3232
    %vm3234 = vweird.f32 %v3228
    %vm3235 = vweird.f32 %v3229
    %vm3236 = vmor %vm3234, %vm3235
    %v3237 = vsel %vm3236, %v3229, %v3233
    %v3238 = vand.u32 2147483647, %v3228
    %vm3239 = vcmp.eq.f32.partialorder %v3238, 8.507059e+37
    %v3240 = vand.u32 %v3228, 2147483648
    %v3241 = vor.u32 1.1754944e-38, %v3240
    %v3242 = vsel %vm3239, %v3241, %v3237
    %v3243 = vmul.f32 1.0, %v3242
    %v3244 = vmul.f32 %v3243, %v3222
    %v3245 = vadd.f32 %v3183, %v3244
    %v3246 = vtanh.pop %v3245
    %v3247 = vsub.f32 1.0, %v3243
    %3249 = vrot.lane.b32.xlu0 %v3246, 64
    %v3250 = vpop.permute.xlu0 %3249
    %v3252 = vmul.f32 %v3247, %v3250
    %v3253 = vmul.f32 %v3243, 0.0
    %v3254 = vadd.f32 %v3252, %v3253
    %s3255 = smul.addr %s1866, 8
    %s3256 = scalar_lea.vmem [#allocation5], %s3255
    %v3257 = vld [vmem:[%s3256] sm:$0xff]
    %v3258 = vld [vmem:[%s3256 + $0x8] sm:$0xff]
    %3260 = vrot.lane.b32.xlu0 %v3254, 64
    %v3261 = vpop.permute.xlu0 %3260
    %v3262 = vsel %vm141, %v3261, 0
    %3264 = vmatpush.msra.mxu0 0.0
    %3265 = vmatpush.msra.mxu0 0.0
    %3266 = vmatpush.msra.mxu0 0.0
    %3267 = vmatpush.msra.mxu0 0.0
    %3268 = vmatpush.msra.mxu0 0.0
    %3269 = vmatpush.msra.mxu0 0.0
    %3270 = vmatpush.msra.mxu0 0.0
    %3271 = vmatpush.msra.mxu0 0.0
    %3272 = vmatpush.msra.mxu0 %v309
    %3273 = vmatpush.msra.mxu0 %v307
    %3274 = vmatpush.msra.mxu0 %v305
    %3275 = vmatpush.msra.mxu0 %v303
    %3276 = vmatpush.msra.mxu0 %v301
    %3277 = vmatpush.msra.mxu0 %v299
    %3278 = vmatpush.msra.mxu0 %v297
    %3279 = vmatpush.msra.mxu0 %v295
    %3280 = vmatmul.f32.gmra.mxu0 %v3262
    %v3281 = vpop.f32.mrf.mxu0
    %v3282 = vadd.f32 %v537, %v3281
    %3283 = vdwg.mxu0
    %3284 = vmatpush.msra.mxu0 0.0
    %3285 = vmatpush.msra.mxu0 0.0
    %3286 = vmatpush.msra.mxu0 0.0
    %3287 = vmatpush.msra.mxu0 0.0
    %3288 = vmatpush.msra.mxu0 0.0
    %3289 = vmatpush.msra.mxu0 0.0
    %3290 = vmatpush.msra.mxu0 0.0
    %3291 = vmatpush.msra.mxu0 0.0
    %3292 = vmatpush.msra.mxu0 %v310
    %3293 = vmatpush.msra.mxu0 %v308
    %3294 = vmatpush.msra.mxu0 %v306
    %3295 = vmatpush.msra.mxu0 %v304
    %3296 = vmatpush.msra.mxu0 %v302
    %3297 = vmatpush.msra.mxu0 %v300
    %3298 = vmatpush.msra.mxu0 %v298
    %3299 = vmatpush.msra.mxu0 %v296
    %3300 = vmatmul.f32.gmra.mxu0 %v3262
    %v3301 = vpop.f32.mrf.mxu0
    %v3302 = vadd.f32 %v538, %v3301
    %3303 = vdwg.mxu0
    %v3304 = vadd.f32 %v3257, %v3282
    %v3305 = vxor.u32 %v3304, 2147483648
    %v3306 = vmul.f32 %v3305, 1.442695
    %v3307 = vpow.pop %v3306
    %v3308 = vadd.f32 %v3307, 1.0
    %v3309 = vrcp.pop %v3308
    %v3310 = vmul.f32 %v3308, %v3309
    %v3311 = vsub.f32 1.0, %v3310
    %v3312 = vmul.f32 %v3309, %v3311
    %v3313 = vadd.f32 %v3309, %v3312
    %vm3314 = vweird.f32 %v3308
    %vm3315 = vweird.f32 %v3309
    %vm3316 = vmor %vm3314, %vm3315
    %v3317 = vsel %vm3316, %v3309, %v3313
    %v3318 = vand.u32 2147483647, %v3308
    %vm3319 = vcmp.eq.f32.partialorder %v3318, 8.507059e+37
    %v3320 = vand.u32 %v3308, 2147483648
    %v3321 = vor.u32 1.1754944e-38, %v3320
    %v3322 = vsel %vm3319, %v3321, %v3317
    %v3323 = vmul.f32 1.0, %v3322
    %v3324 = vmul.f32 %v3323, %v3302
    %v3325 = vadd.f32 %v3258, %v3324
    %v3326 = vtanh.pop %v3325
    %v3327 = vsub.f32 1.0, %v3323
    %3329 = vrot.lane.b32.xlu0 %v3326, 64
    %v3330 = vpop.permute.xlu0 %3329
    %v3332 = vmul.f32 %v3327, %v3330
    %v3333 = vmul.f32 %v3323, %v3254
    %v3334 = vadd.f32 %v3332, %v3333
    %s3335 = smul.addr %s1969, 8
    %s3336 = scalar_lea.vmem [#allocation5], %s3335
    %v3337 = vld [vmem:[%s3336] sm:$0xff]
    %v3338 = vld [vmem:[%s3336 + $0x8] sm:$0xff]
    %3340 = vrot.lane.b32.xlu0 %v3334, 64
    %v3341 = vpop.permute.xlu0 %3340
    %v3342 = vsel %vm141, %v3341, 0
    %3344 = vmatpush.msra.mxu0 0.0
    %3345 = vmatpush.msra.mxu0 0.0
    %3346 = vmatpush.msra.mxu0 0.0
    %3347 = vmatpush.msra.mxu0 0.0
    %3348 = vmatpush.msra.mxu0 0.0
    %3349 = vmatpush.msra.mxu0 0.0
    %3350 = vmatpush.msra.mxu0 0.0
    %3351 = vmatpush.msra.mxu0 0.0
    %3352 = vmatpush.msra.mxu0 %v309
    %3353 = vmatpush.msra.mxu0 %v307
    %3354 = vmatpush.msra.mxu0 %v305
    %3355 = vmatpush.msra.mxu0 %v303
    %3356 = vmatpush.msra.mxu0 %v301
    %3357 = vmatpush.msra.mxu0 %v299
    %3358 = vmatpush.msra.mxu0 %v297
    %3359 = vmatpush.msra.mxu0 %v295
    %3360 = vmatmul.f32.gmra.mxu0 %v3342
    %v3361 = vpop.f32.mrf.mxu0
    %v3362 = vadd.f32 %v537, %v3361
    %3363 = vdwg.mxu0
    %3364 = vmatpush.msra.mxu0 0.0
    %3365 = vmatpush.msra.mxu0 0.0
    %3366 = vmatpush.msra.mxu0 0.0
    %3367 = vmatpush.msra.mxu0 0.0
    %3368 = vmatpush.msra.mxu0 0.0
    %3369 = vmatpush.msra.mxu0 0.0
    %3370 = vmatpush.msra.mxu0 0.0
    %3371 = vmatpush.msra.mxu0 0.0
    %3372 = vmatpush.msra.mxu0 %v310
    %3373 = vmatpush.msra.mxu0 %v308
    %3374 = vmatpush.msra.mxu0 %v306
    %3375 = vmatpush.msra.mxu0 %v304
    %3376 = vmatpush.msra.mxu0 %v302
    %3377 = vmatpush.msra.mxu0 %v300
    %3378 = vmatpush.msra.mxu0 %v298
    %3379 = vmatpush.msra.mxu0 %v296
    %3380 = vmatmul.f32.gmra.mxu0 %v3342
    %v3381 = vpop.f32.mrf.mxu0
    %v3382 = vadd.f32 %v538, %v3381
    %3383 = vdwg.mxu0
    %v3384 = vadd.f32 %v3337, %v3362
    %v3385 = vxor.u32 %v3384, 2147483648
    %v3386 = vmul.f32 %v3385, 1.442695
    %v3387 = vpow.pop %v3386
    %v3388 = vadd.f32 %v3387, 1.0
    %v3389 = vrcp.pop %v3388
    %v3390 = vmul.f32 %v3388, %v3389
    %v3391 = vsub.f32 1.0, %v3390
    %v3392 = vmul.f32 %v3389, %v3391
    %v3393 = vadd.f32 %v3389, %v3392
    %vm3394 = vweird.f32 %v3388
    %vm3395 = vweird.f32 %v3389
    %vm3396 = vmor %vm3394, %vm3395
    %v3397 = vsel %vm3396, %v3389, %v3393
    %v3398 = vand.u32 2147483647, %v3388
    %vm3399 = vcmp.eq.f32.partialorder %v3398, 8.507059e+37
    %v3400 = vand.u32 %v3388, 2147483648
    %v3401 = vor.u32 1.1754944e-38, %v3400
    %v3402 = vsel %vm3399, %v3401, %v3397
    %v3403 = vmul.f32 1.0, %v3402
    %v3404 = vmul.f32 %v3403, %v3382
    %v3405 = vadd.f32 %v3338, %v3404
    %v3406 = vtanh.pop %v3405
    %v3407 = vsub.f32 1.0, %v3403
    %3409 = vrot.lane.b32.xlu0 %v3406, 64
    %v3410 = vpop.permute.xlu0 %3409
    %v3412 = vmul.f32 %v3407, %v3410
    %v3413 = vmul.f32 %v3403, %v3334
    %v3414 = vadd.f32 %v3412, %v3413
    %s3415 = smul.addr %s2072, 8
    %s3416 = scalar_lea.vmem [#allocation5], %s3415
    %v3417 = vld [vmem:[%s3416] sm:$0xff]
    %v3418 = vld [vmem:[%s3416 + $0x8] sm:$0xff]
    %3420 = vrot.lane.b32.xlu0 %v3414, 64
    %v3421 = vpop.permute.xlu0 %3420
    %v3422 = vsel %vm141, %v3421, 0
    %3424 = vmatpush.msra.mxu0 0.0
    %3425 = vmatpush.msra.mxu0 0.0
    %3426 = vmatpush.msra.mxu0 0.0
    %3427 = vmatpush.msra.mxu0 0.0
    %3428 = vmatpush.msra.mxu0 0.0
    %3429 = vmatpush.msra.mxu0 0.0
    %3430 = vmatpush.msra.mxu0 0.0
    %3431 = vmatpush.msra.mxu0 0.0
    %3432 = vmatpush.msra.mxu0 %v309
    %3433 = vmatpush.msra.mxu0 %v307
    %3434 = vmatpush.msra.mxu0 %v305
    %3435 = vmatpush.msra.mxu0 %v303
    %3436 = vmatpush.msra.mxu0 %v301
    %3437 = vmatpush.msra.mxu0 %v299
    %3438 = vmatpush.msra.mxu0 %v297
    %3439 = vmatpush.msra.mxu0 %v295
    %3440 = vmatmul.f32.gmra.mxu0 %v3422
    %v3441 = vpop.f32.mrf.mxu0
    %v3442 = vadd.f32 %v537, %v3441
    %3443 = vdwg.mxu0
    %3444 = vmatpush.msra.mxu0 0.0
    %3445 = vmatpush.msra.mxu0 0.0
    %3446 = vmatpush.msra.mxu0 0.0
    %3447 = vmatpush.msra.mxu0 0.0
    %3448 = vmatpush.msra.mxu0 0.0
    %3449 = vmatpush.msra.mxu0 0.0
    %3450 = vmatpush.msra.mxu0 0.0
    %3451 = vmatpush.msra.mxu0 0.0
    %3452 = vmatpush.msra.mxu0 %v310
    %3453 = vmatpush.msra.mxu0 %v308
    %3454 = vmatpush.msra.mxu0 %v306
    %3455 = vmatpush.msra.mxu0 %v304
    %3456 = vmatpush.msra.mxu0 %v302
    %3457 = vmatpush.msra.mxu0 %v300
    %3458 = vmatpush.msra.mxu0 %v298
    %3459 = vmatpush.msra.mxu0 %v296
    %3460 = vmatmul.f32.gmra.mxu0 %v3422
    %v3461 = vpop.f32.mrf.mxu0
    %v3462 = vadd.f32 %v538, %v3461
    %3463 = vdwg.mxu0
    %v3464 = vadd.f32 %v3417, %v3442
    %v3465 = vxor.u32 %v3464, 2147483648
    %v3466 = vmul.f32 %v3465, 1.442695
    %v3467 = vpow.pop %v3466
    %v3468 = vadd.f32 %v3467, 1.0
    %v3469 = vrcp.pop %v3468
    %v3470 = vmul.f32 %v3468, %v3469
    %v3471 = vsub.f32 1.0, %v3470
    %v3472 = vmul.f32 %v3469, %v3471
    %v3473 = vadd.f32 %v3469, %v3472
    %vm3474 = vweird.f32 %v3468
    %vm3475 = vweird.f32 %v3469
    %vm3476 = vmor %vm3474, %vm3475
    %v3477 = vsel %vm3476, %v3469, %v3473
    %v3478 = vand.u32 2147483647, %v3468
    %vm3479 = vcmp.eq.f32.partialorder %v3478, 8.507059e+37
    %v3480 = vand.u32 %v3468, 2147483648
    %v3481 = vor.u32 1.1754944e-38, %v3480
    %v3482 = vsel %vm3479, %v3481, %v3477
    %v3483 = vmul.f32 1.0, %v3482
    %v3484 = vmul.f32 %v3483, %v3462
    %v3485 = vadd.f32 %v3418, %v3484
    %v3486 = vtanh.pop %v3485
    %v3487 = vsub.f32 1.0, %v3483
    %3489 = vrot.lane.b32.xlu0 %v3486, 64
    %v3490 = vpop.permute.xlu0 %3489
    %v3492 = vmul.f32 %v3487, %v3490
    %v3493 = vmul.f32 %v3483, %v3414
    %v3494 = vadd.f32 %v3492, %v3493
    %s3495 = smul.addr %s2175, 8
    %s3496 = scalar_lea.vmem [#allocation5], %s3495
    %v3497 = vld [vmem:[%s3496] sm:$0xff]
    %v3498 = vld [vmem:[%s3496 + $0x8] sm:$0xff]
    %3500 = vrot.lane.b32.xlu0 %v3494, 64
    %v3501 = vpop.permute.xlu0 %3500
    %v3502 = vsel %vm141, %v3501, 0
    %3504 = vmatpush.msra.mxu0 0.0
    %3505 = vmatpush.msra.mxu0 0.0
    %3506 = vmatpush.msra.mxu0 0.0
    %3507 = vmatpush.msra.mxu0 0.0
    %3508 = vmatpush.msra.mxu0 0.0
    %3509 = vmatpush.msra.mxu0 0.0
    %3510 = vmatpush.msra.mxu0 0.0
    %3511 = vmatpush.msra.mxu0 0.0
    %3512 = vmatpush.msra.mxu0 %v309
    %3513 = vmatpush.msra.mxu0 %v307
    %3514 = vmatpush.msra.mxu0 %v305
    %3515 = vmatpush.msra.mxu0 %v303
    %3516 = vmatpush.msra.mxu0 %v301
    %3517 = vmatpush.msra.mxu0 %v299
    %3518 = vmatpush.msra.mxu0 %v297
    %3519 = vmatpush.msra.mxu0 %v295
    %3520 = vmatmul.f32.gmra.mxu0 %v3502
    %v3521 = vpop.f32.mrf.mxu0
    %v3522 = vadd.f32 %v537, %v3521
    %3523 = vdwg.mxu0
    %3524 = vmatpush.msra.mxu0 0.0
    %3525 = vmatpush.msra.mxu0 0.0
    %3526 = vmatpush.msra.mxu0 0.0
    %3527 = vmatpush.msra.mxu0 0.0
    %3528 = vmatpush.msra.mxu0 0.0
    %3529 = vmatpush.msra.mxu0 0.0
    %3530 = vmatpush.msra.mxu0 0.0
    %3531 = vmatpush.msra.mxu0 0.0
    %3532 = vmatpush.msra.mxu0 %v310
    %3533 = vmatpush.msra.mxu0 %v308
    %3534 = vmatpush.msra.mxu0 %v306
    %3535 = vmatpush.msra.mxu0 %v304
    %3536 = vmatpush.msra.mxu0 %v302
    %3537 = vmatpush.msra.mxu0 %v300
    %3538 = vmatpush.msra.mxu0 %v298
    %3539 = vmatpush.msra.mxu0 %v296
    %3540 = vmatmul.f32.gmra.mxu0 %v3502
    %v3541 = vpop.f32.mrf.mxu0
    %v3542 = vadd.f32 %v538, %v3541
    %3543 = vdwg.mxu0
    %v3544 = vadd.f32 %v3497, %v3522
    %v3545 = vxor.u32 %v3544, 2147483648
    %v3546 = vmul.f32 %v3545, 1.442695
    %v3547 = vpow.pop %v3546
    %v3548 = vadd.f32 %v3547, 1.0
    %v3549 = vrcp.pop %v3548
    %v3550 = vmul.f32 %v3548, %v3549
    %v3551 = vsub.f32 1.0, %v3550
    %v3552 = vmul.f32 %v3549, %v3551
    %v3553 = vadd.f32 %v3549, %v3552
    %vm3554 = vweird.f32 %v3548
    %vm3555 = vweird.f32 %v3549
    %vm3556 = vmor %vm3554, %vm3555
    %v3557 = vsel %vm3556, %v3549, %v3553
    %v3558 = vand.u32 2147483647, %v3548
    %vm3559 = vcmp.eq.f32.partialorder %v3558, 8.507059e+37
    %v3560 = vand.u32 %v3548, 2147483648
    %v3561 = vor.u32 1.1754944e-38, %v3560
    %v3562 = vsel %vm3559, %v3561, %v3557
    %v3563 = vmul.f32 1.0, %v3562
    %v3564 = vmul.f32 %v3563, %v3542
    %v3565 = vadd.f32 %v3498, %v3564
    %v3566 = vtanh.pop %v3565
    %v3567 = vsub.f32 1.0, %v3563
    %3569 = vrot.lane.b32.xlu0 %v3566, 64
    %v3570 = vpop.permute.xlu0 %3569
    %v3572 = vmul.f32 %v3567, %v3570
    %v3573 = vmul.f32 %v3563, %v3494
    %v3574 = vadd.f32 %v3572, %v3573
    %s3575 = smul.addr %s2278, 8
    %s3576 = scalar_lea.vmem [#allocation5], %s3575
    %v3577 = vld [vmem:[%s3576] sm:$0xff]
    %v3578 = vld [vmem:[%s3576 + $0x8] sm:$0xff]
    %3580 = vrot.lane.b32.xlu0 %v3574, 64
    %v3581 = vpop.permute.xlu0 %3580
    %v3582 = vsel %vm141, %v3581, 0
    %3584 = vmatpush.msra.mxu0 0.0
    %3585 = vmatpush.msra.mxu0 0.0
    %3586 = vmatpush.msra.mxu0 0.0
    %3587 = vmatpush.msra.mxu0 0.0
    %3588 = vmatpush.msra.mxu0 0.0
    %3589 = vmatpush.msra.mxu0 0.0
    %3590 = vmatpush.msra.mxu0 0.0
    %3591 = vmatpush.msra.mxu0 0.0
    %3592 = vmatpush.msra.mxu0 %v309
    %3593 = vmatpush.msra.mxu0 %v307
    %3594 = vmatpush.msra.mxu0 %v305
    %3595 = vmatpush.msra.mxu0 %v303
    %3596 = vmatpush.msra.mxu0 %v301
    %3597 = vmatpush.msra.mxu0 %v299
    %3598 = vmatpush.msra.mxu0 %v297
    %3599 = vmatpush.msra.mxu0 %v295
    %3600 = vmatmul.f32.gmra.mxu0 %v3582
    %v3601 = vpop.f32.mrf.mxu0
    %v3602 = vadd.f32 %v537, %v3601
    %3603 = vdwg.mxu0
    %3604 = vmatpush.msra.mxu0 0.0
    %3605 = vmatpush.msra.mxu0 0.0
    %3606 = vmatpush.msra.mxu0 0.0
    %3607 = vmatpush.msra.mxu0 0.0
    %3608 = vmatpush.msra.mxu0 0.0
    %3609 = vmatpush.msra.mxu0 0.0
    %3610 = vmatpush.msra.mxu0 0.0
    %3611 = vmatpush.msra.mxu0 0.0
    %3612 = vmatpush.msra.mxu0 %v310
    %3613 = vmatpush.msra.mxu0 %v308
    %3614 = vmatpush.msra.mxu0 %v306
    %3615 = vmatpush.msra.mxu0 %v304
    %3616 = vmatpush.msra.mxu0 %v302
    %3617 = vmatpush.msra.mxu0 %v300
    %3618 = vmatpush.msra.mxu0 %v298
    %3619 = vmatpush.msra.mxu0 %v296
    %3620 = vmatmul.f32.gmra.mxu0 %v3582
    %v3621 = vpop.f32.mrf.mxu0
    %v3622 = vadd.f32 %v538, %v3621
    %3623 = vdwg.mxu0
    %v3624 = vadd.f32 %v3577, %v3602
    %v3625 = vxor.u32 %v3624, 2147483648
    %v3626 = vmul.f32 %v3625, 1.442695
    %v3627 = vpow.pop %v3626
    %v3628 = vadd.f32 %v3627, 1.0
    %v3629 = vrcp.pop %v3628
    %v3630 = vmul.f32 %v3628, %v3629
    %v3631 = vsub.f32 1.0, %v3630
    %v3632 = vmul.f32 %v3629, %v3631
    %v3633 = vadd.f32 %v3629, %v3632
    %vm3634 = vweird.f32 %v3628
    %vm3635 = vweird.f32 %v3629
    %vm3636 = vmor %vm3634, %vm3635
    %v3637 = vsel %vm3636, %v3629, %v3633
    %v3638 = vand.u32 2147483647, %v3628
    %vm3639 = vcmp.eq.f32.partialorder %v3638, 8.507059e+37
    %v3640 = vand.u32 %v3628, 2147483648
    %v3641 = vor.u32 1.1754944e-38, %v3640
    %v3642 = vsel %vm3639, %v3641, %v3637
    %v3643 = vmul.f32 1.0, %v3642
    %v3644 = vmul.f32 %v3643, %v3622
    %v3645 = vadd.f32 %v3578, %v3644
    %v3646 = vtanh.pop %v3645
    %v3647 = vsub.f32 1.0, %v3643
    %3649 = vrot.lane.b32.xlu0 %v3646, 64
    %v3650 = vpop.permute.xlu0 %3649
    %v3652 = vmul.f32 %v3647, %v3650
    %v3653 = vmul.f32 %v3643, %v3574
    %v3654 = vadd.f32 %v3652, %v3653
    %s3655 = smul.addr %s2381, 8
    %s3656 = scalar_lea.vmem [#allocation5], %s3655
    %v3657 = vld [vmem:[%s3656] sm:$0xff]
    %v3658 = vld [vmem:[%s3656 + $0x8] sm:$0xff]
    %3660 = vrot.lane.b32.xlu0 %v3654, 64
    %v3661 = vpop.permute.xlu0 %3660
    %v3662 = vsel %vm141, %v3661, 0
    %3664 = vmatpush.msra.mxu0 0.0
    %3665 = vmatpush.msra.mxu0 0.0
    %3666 = vmatpush.msra.mxu0 0.0
    %3667 = vmatpush.msra.mxu0 0.0
    %3668 = vmatpush.msra.mxu0 0.0
    %3669 = vmatpush.msra.mxu0 0.0
    %3670 = vmatpush.msra.mxu0 0.0
    %3671 = vmatpush.msra.mxu0 0.0
    %3672 = vmatpush.msra.mxu0 %v309
    %3673 = vmatpush.msra.mxu0 %v307
    %3674 = vmatpush.msra.mxu0 %v305
    %3675 = vmatpush.msra.mxu0 %v303
    %3676 = vmatpush.msra.mxu0 %v301
    %3677 = vmatpush.msra.mxu0 %v299
    %3678 = vmatpush.msra.mxu0 %v297
    %3679 = vmatpush.msra.mxu0 %v295
    %3680 = vmatmul.f32.gmra.mxu0 %v3662
    %v3681 = vpop.f32.mrf.mxu0
    %v3682 = vadd.f32 %v537, %v3681
    %3683 = vdwg.mxu0
    %3684 = vmatpush.msra.mxu0 0.0
    %3685 = vmatpush.msra.mxu0 0.0
    %3686 = vmatpush.msra.mxu0 0.0
    %3687 = vmatpush.msra.mxu0 0.0
    %3688 = vmatpush.msra.mxu0 0.0
    %3689 = vmatpush.msra.mxu0 0.0
    %3690 = vmatpush.msra.mxu0 0.0
    %3691 = vmatpush.msra.mxu0 0.0
    %3692 = vmatpush.msra.mxu0 %v310
    %3693 = vmatpush.msra.mxu0 %v308
    %3694 = vmatpush.msra.mxu0 %v306
    %3695 = vmatpush.msra.mxu0 %v304
    %3696 = vmatpush.msra.mxu0 %v302
    %3697 = vmatpush.msra.mxu0 %v300
    %3698 = vmatpush.msra.mxu0 %v298
    %3699 = vmatpush.msra.mxu0 %v296
    %3700 = vmatmul.f32.gmra.mxu0 %v3662
    %v3701 = vpop.f32.mrf.mxu0
    %v3702 = vadd.f32 %v538, %v3701
    %3703 = vdwg.mxu0
    %v3704 = vadd.f32 %v3657, %v3682
    %v3705 = vxor.u32 %v3704, 2147483648
    %v3706 = vmul.f32 %v3705, 1.442695
    %v3707 = vpow.pop %v3706
    %v3708 = vadd.f32 %v3707, 1.0
    %v3709 = vrcp.pop %v3708
    %v3710 = vmul.f32 %v3708, %v3709
    %v3711 = vsub.f32 1.0, %v3710
    %v3712 = vmul.f32 %v3709, %v3711
    %v3713 = vadd.f32 %v3709, %v3712
    %vm3714 = vweird.f32 %v3708
    %vm3715 = vweird.f32 %v3709
    %vm3716 = vmor %vm3714, %vm3715
    %v3717 = vsel %vm3716, %v3709, %v3713
    %v3718 = vand.u32 2147483647, %v3708
    %vm3719 = vcmp.eq.f32.partialorder %v3718, 8.507059e+37
    %v3720 = vand.u32 %v3708, 2147483648
    %v3721 = vor.u32 1.1754944e-38, %v3720
    %v3722 = vsel %vm3719, %v3721, %v3717
    %v3723 = vmul.f32 1.0, %v3722
    %v3724 = vmul.f32 %v3723, %v3702
    %v3725 = vadd.f32 %v3658, %v3724
    %v3726 = vtanh.pop %v3725
    %v3727 = vsub.f32 1.0, %v3723
    %3729 = vrot.lane.b32.xlu0 %v3726, 64
    %v3730 = vpop.permute.xlu0 %3729
    %v3732 = vmul.f32 %v3727, %v3730
    %v3733 = vmul.f32 %v3723, %v3654
    %v3734 = vadd.f32 %v3732, %v3733
    %s3735 = smul.addr %s2484, 8
    %s3736 = scalar_lea.vmem [#allocation5], %s3735
    %v3737 = vld [vmem:[%s3736] sm:$0xff]
    %v3738 = vld [vmem:[%s3736 + $0x8] sm:$0xff]
    %3740 = vrot.lane.b32.xlu0 %v3734, 64
    %v3741 = vpop.permute.xlu0 %3740
    %v3742 = vsel %vm141, %v3741, 0
    %3744 = vmatpush.msra.mxu0 0.0
    %3745 = vmatpush.msra.mxu0 0.0
    %3746 = vmatpush.msra.mxu0 0.0
    %3747 = vmatpush.msra.mxu0 0.0
    %3748 = vmatpush.msra.mxu0 0.0
    %3749 = vmatpush.msra.mxu0 0.0
    %3750 = vmatpush.msra.mxu0 0.0
    %3751 = vmatpush.msra.mxu0 0.0
    %3752 = vmatpush.msra.mxu0 %v309
    %3753 = vmatpush.msra.mxu0 %v307
    %3754 = vmatpush.msra.mxu0 %v305
    %3755 = vmatpush.msra.mxu0 %v303
    %3756 = vmatpush.msra.mxu0 %v301
    %3757 = vmatpush.msra.mxu0 %v299
    %3758 = vmatpush.msra.mxu0 %v297
    %3759 = vmatpush.msra.mxu0 %v295
    %3760 = vmatmul.f32.gmra.mxu0 %v3742
    %v3761 = vpop.f32.mrf.mxu0
    %v3762 = vadd.f32 %v537, %v3761
    %3763 = vdwg.mxu0
    %3764 = vmatpush.msra.mxu0 0.0
    %3765 = vmatpush.msra.mxu0 0.0
    %3766 = vmatpush.msra.mxu0 0.0
    %3767 = vmatpush.msra.mxu0 0.0
    %3768 = vmatpush.msra.mxu0 0.0
    %3769 = vmatpush.msra.mxu0 0.0
    %3770 = vmatpush.msra.mxu0 0.0
    %3771 = vmatpush.msra.mxu0 0.0
    %3772 = vmatpush.msra.mxu0 %v310
    %3773 = vmatpush.msra.mxu0 %v308
    %3774 = vmatpush.msra.mxu0 %v306
    %3775 = vmatpush.msra.mxu0 %v304
    %3776 = vmatpush.msra.mxu0 %v302
    %3777 = vmatpush.msra.mxu0 %v300
    %3778 = vmatpush.msra.mxu0 %v298
    %3779 = vmatpush.msra.mxu0 %v296
    %3780 = vmatmul.f32.gmra.mxu0 %v3742
    %v3781 = vpop.f32.mrf.mxu0
    %v3782 = vadd.f32 %v538, %v3781
    %3783 = vdwg.mxu0
    %v3784 = vadd.f32 %v3737, %v3762
    %v3785 = vxor.u32 %v3784, 2147483648
    %v3786 = vmul.f32 %v3785, 1.442695
    %v3787 = vpow.pop %v3786
    %v3788 = vadd.f32 %v3787, 1.0
    %v3789 = vrcp.pop %v3788
    %v3790 = vmul.f32 %v3788, %v3789
    %v3791 = vsub.f32 1.0, %v3790
    %v3792 = vmul.f32 %v3789, %v3791
    %v3793 = vadd.f32 %v3789, %v3792
    %vm3794 = vweird.f32 %v3788
    %vm3795 = vweird.f32 %v3789
    %vm3796 = vmor %vm3794, %vm3795
    %v3797 = vsel %vm3796, %v3789, %v3793
    %v3798 = vand.u32 2147483647, %v3788
    %vm3799 = vcmp.eq.f32.partialorder %v3798, 8.507059e+37
    %v3800 = vand.u32 %v3788, 2147483648
    %v3801 = vor.u32 1.1754944e-38, %v3800
    %v3802 = vsel %vm3799, %v3801, %v3797
    %v3803 = vmul.f32 1.0, %v3802
    %v3804 = vmul.f32 %v3803, %v3782
    %v3805 = vadd.f32 %v3738, %v3804
    %v3806 = vtanh.pop %v3805
    %v3807 = vsub.f32 1.0, %v3803
    %3809 = vrot.lane.b32.xlu0 %v3806, 64
    %v3810 = vpop.permute.xlu0 %3809
    %v3812 = vmul.f32 %v3807, %v3810
    %v3813 = vmul.f32 %v3803, %v3734
    %v3814 = vadd.f32 %v3812, %v3813
    %v3815 = vld [vmem:[%s9] sm:$0xff]
    %v3816 = vld [vmem:[%s9 + $0x8] sm:$0xff]
    %v3817 = vld [vmem:[%s9 + $0x10] sm:$0xff]
    %v3818 = vld [vmem:[%s9 + $0x18] sm:$0xff]
    %v3819 = vld [vmem:[%s9 + $0x20] sm:$0xff]
    %v3820 = vld [vmem:[%s9 + $0x28] sm:$0xff]
    %v3821 = vld [vmem:[%s9 + $0x30] sm:$0xff]
    %v3822 = vld [vmem:[%s9 + $0x38] sm:$0xff]
    %v3823 = vld [vmem:[%s10] sm:$0x1]
    %v3825 = vperm.slane %v3823, 0
    %3828 = vrot.lane.b32.xlu0 %v3814, 64
    %v3829 = vpop.permute.xlu0 %3828
    %v3830 = vsel %vm141, %v3829, 0
    %3832 = vmatpush.msra.mxu0 0.0
    %3833 = vmatpush.msra.mxu0 0.0
    %3834 = vmatpush.msra.mxu0 0.0
    %3835 = vmatpush.msra.mxu0 0.0
    %3836 = vmatpush.msra.mxu0 0.0
    %3837 = vmatpush.msra.mxu0 0.0
    %3838 = vmatpush.msra.mxu0 0.0
    %3839 = vmatpush.msra.mxu0 0.0
    %3840 = vmatpush.msra.mxu0 %v3822
    %3841 = vmatpush.msra.mxu0 %v3821
    %3842 = vmatpush.msra.mxu0 %v3820
    %3843 = vmatpush.msra.mxu0 %v3819
    %3844 = vmatpush.msra.mxu0 %v3818
    %3845 = vmatpush.msra.mxu0 %v3817
    %3846 = vmatpush.msra.mxu0 %v3816
    %3847 = vmatpush.msra.mxu0 %v3815
    %3848 = vmatmul.f32.gmra.mxu0 %v3830
    %v3849 = vpop.f32.mrf.mxu0
    %v3850 = vadd.f32 %v3825, %v3849
    %3851 = vdwg.mxu0
    %3852 = vst.msk [vmem:[#allocation8] sm:$0xff] %vm318, %v3850
    // Predicated region
    $region70: #{paraphrase_generator_forward.1} parent=1 // pred_check
      _
    $region71: #{paraphrase_generator_forward.1} parent=1 // pred_check_branch
      %3854 = sbr.rel (0) target = $region73
    $region72: #{paraphrase_generator_forward.1} parent=1 // pred_region
      %3856 = vsyncadd [#allocation7], 0
      %s3857 = sshll.u32 [#allocation6], 4
      %s3858 = int_to_ptr.vmem [resolvable:$true] %s3857
      %s3859 = sshll.u32 %s17, 4
      %s3860 = int_to_ptr.hbm [resolvable:$true] %s3859
      %3865 = dma.vmem_to_hbm [thread:$0]  %s3858, 1024, %s3860, [#allocation7], 128, 128, 8
    $region73: #{paraphrase_generator_forward.1} parent=1 // pred_fallthru
      _
    // Predicated region
    $region74: #{paraphrase_generator_forward.1} parent=1 // pred_check
      _
    $region75: #{paraphrase_generator_forward.1} parent=1 // pred_check_branch
      %3867 = sbr.rel (0) target = $region77
    $region76: #{paraphrase_generator_forward.1} parent=1 // pred_region
      %3869 = vsyncadd [#allocation9], 0
      %s3871 = sshll.u32 [#allocation8], 4
      %s3872 = int_to_ptr.vmem [resolvable:$true] %s3871
      %s3873 = sshll.u32 %s18, 4
      %s3874 = int_to_ptr.hbm [resolvable:$true] %s3873
      %3876 = dma.vmem_to_hbm [thread:$0]  %s3872, 128, %s3874, [#allocation9]
    $region77: #{paraphrase_generator_forward.1} parent=1 // pred_fallthru
      _
    // Predicated region
    $region78: #{paraphrase_generator_forward.1} parent=1 // pred_check
      _
    $region79: #{paraphrase_generator_forward.1} parent=1 // pred_check_branch
      %3878 = sbr.rel (0) target = $region81
    $region80: #{paraphrase_generator_forward.1} parent=1 // pred_region
      %3880 = vsyncadd [#allocation9], 0
      %s3882 = sshll.u32 [#allocation10], 4
      %s3883 = int_to_ptr.vmem [resolvable:$true] %s3882
      %s3884 = sshll.u32 %s19, 4
      %s3885 = int_to_ptr.hbm [resolvable:$true] %s3884
      %3887 = dma.vmem_to_hbm [thread:$0]  %s3883, 128, %s3885, [#allocation9]
    $region81: #{paraphrase_generator_forward.1} parent=1 // pred_fallthru
      _
    // Predicated region
    $region82: #{paraphrase_generator_forward.1} parent=1 // pred_check
      _
    $region83: #{paraphrase_generator_forward.1} parent=1 // pred_check_branch
      %3889 = sbr.rel (0) target = $region85
    $region84: #{paraphrase_generator_forward.1} parent=1 // pred_region
      %3891 = dma.done [#allocation7], 1024
    $region85: #{paraphrase_generator_forward.1} parent=1 // pred_fallthru
      _
    // Predicated region
    $region86: #{paraphrase_generator_forward.1} parent=1 // pred_check
      _
    $region87: #{paraphrase_generator_forward.1} parent=1 // pred_check_branch
      %3893 = sbr.rel (0) target = $region89
    $region88: #{paraphrase_generator_forward.1} parent=1 // pred_region
      %3895 = dma.done [#allocation9], 128
    $region89: #{paraphrase_generator_forward.1} parent=1 // pred_fallthru
      _
    // Predicated region
    $region90: #{paraphrase_generator_forward.1} parent=1 // pred_check
      _
    $region91: #{paraphrase_generator_forward.1} parent=1 // pred_check_branch
      %3897 = sbr.rel (0) target = $region93
    $region92: #{paraphrase_generator_forward.1} parent=1 // pred_region
      %3899 = dma.done [#allocation9], 128
    $region93: #{paraphrase_generator_forward.1} parent=1 // pred_fallthru
      _
    %3900 = vsyncpa [#allocation7], 1
    %3901 = vsyncpa [#allocation9], 1

</llo_original>
